<compile_context>
chip_gen: v7x
topology: tpu7x:2x2x1
jax: 0.10.0
libtpu: 0.0.40
codegen_flags: <defaults>
</compile_context>

<pallas_src>
import jax
import jax.numpy as jnp
from jax import lax
from jax.experimental import pallas as pl
from jax.experimental.pallas import tpu as pltpu

EPS = 1e-5  # PyTorch GroupNorm default


# ---------------------------------------------------------------------------
# Truncated real-DFT basis matrices (computed once in the wrapper).
# ---------------------------------------------------------------------------
def _fourier_basis(H, W, modes1, modes2):
    """Real matrices realizing the truncated rfft2 and its (zero-padded) irfft2.

    Mode enumeration: p = a * modes2 + b with
      k1[a] in [0..modes1-1] ++ [H-modes1..H-1],  k2[b] in [0..modes2-1].

    Returns
      fwd_r, fwd_i : (S, P)   modes = x_flat @ fwd_r  +  i * (x_flat @ fwd_i)
      inv_r, inv_i : (P, S)   y_flat = out_r @ inv_r  +  out_i @ inv_i
    The inverse matrices encode pocketfft/torch c2r semantics (Hermitian
    doubling for 0 < k2 < W/2; self-conjugate columns k2 = 0 / W/2 scaled by 1)
    and the 1/(H*W) normalization.
    """
    k1 = jnp.concatenate(
        [jnp.arange(modes1), jnp.arange(H - modes1, H)]).astype(jnp.float32)
    k2 = jnp.arange(modes2).astype(jnp.float32)
    h = jnp.arange(H).astype(jnp.float32)
    w = jnp.arange(W).astype(jnp.float32)
    theta = 2.0 * jnp.pi * (
        k1[:, None, None, None] * h[None, None, :, None] / H
        + k2[None, :, None, None] * w[None, None, None, :] / W)
    P = 2 * modes1 * modes2
    S = H * W
    cos_t = jnp.cos(theta).reshape(P, S)
    sin_t = jnp.sin(theta).reshape(P, S)

    fwd_r = cos_t.T.astype(jnp.float32)          # (S, P)
    fwd_i = (-sin_t.T).astype(jnp.float32)       # (S, P)

    is_self_conj = (jnp.arange(modes2) == 0)
    if W % 2 == 0:
        is_self_conj = is_self_conj | (jnp.arange(modes2) == W // 2)
    col_scale = jnp.where(is_self_conj, 1.0, 2.0) / float(H * W)      # (modes2,)
    scale_p = jnp.tile(col_scale, (2 * modes1,)).astype(jnp.float32)  # (P,)
    inv_r = (scale_p[:, None] * cos_t).astype(jnp.float32)            # (P, S)
    inv_i = (-scale_p[:, None] * sin_t).astype(jnp.float32)           # (P, S)
    return fwd_r, fwd_i, inv_r, inv_i


# ---------------------------------------------------------------------------
# Kernel A (primary): weights folded into the inverse basis -> two matmuls.
# ---------------------------------------------------------------------------
def _spectral_folded_kernel(x_ref, fwd_ref, bmat_ref, g_ref, b_ref, o_ref):
    nb, cin, S = x_ref.shape
    k2 = bmat_ref.shape[0]        # Cin * P2pad
    cs = o_ref.shape[1]           # Cout * S

    # (1) truncated rfft2 of all nb*Cin channel-images: ONE MXU matmul
    #     (real|imag fused along the columns of fwd_ref).
    x2 = x_ref[...].reshape(nb * cin, S)
    m = jnp.dot(x2, fwd_ref[...], preferred_element_type=jnp.float32)

    # (2) complex channel mix + zero-padded irfft2, folded into ONE matmul.
    m2 = m.astype(bmat_ref.dtype).reshape(nb, k2)
    y = jnp.dot(m2, bmat_ref[...], preferred_element_type=jnp.float32)  # (nb, Cout*S)

    # (3) GroupNorm(num_groups=1) with the affine folded into a single FMA pass.
    inv_n = 1.0 / float(cs)
    mean = jnp.sum(y, axis=1, keepdims=True) * inv_n
    var = jnp.sum(y * y, axis=1, keepdims=True) * inv_n - mean * mean
    a = g_ref[...] * lax.rsqrt(var + EPS)             # (nb, Cout*S)
    o_ref[...] = (y * a + (b_ref[...] - mean * a)).astype(o_ref.dtype)


# ---------------------------------------------------------------------------
# Kernel B (fallback for sizes where the folded matrix would not fit VMEM):
# fused fwd matmul, per-mode complex mix on the VPU, fused inverse matmul.
# ---------------------------------------------------------------------------
def _spectral_unfolded_kernel(x_ref, fwd_ref, wr_ref, wi_ref, inv_ref,
                              g_ref, b_ref, o_ref):
    nb, cin, S = x_ref.shape
    cout = wr_ref.shape[1]
    P = wr_ref.shape[2]

    x2 = x_ref[...].reshape(nb * cin, S)
    m = jnp.dot(x2, fwd_ref[...], preferred_element_type=jnp.float32)
    m = m.reshape(nb, cin, 1, -1)
    mr = m[..., :P]
    mi = m[..., P:2 * P]

    # per-mode complex channel mixing (VPU).
    # TODO(synk): at production sizes move this Cin contraction onto the MXU.
    wr = wr_ref[...][None]                       # (1, cin, cout, P)
    wi = wi_ref[...][None]
    out_r = jnp.sum(mr * wr - mi * wi, axis=1)   # (nb, cout, P)
    out_i = jnp.sum(mr * wi + mi * wr, axis=1)

    om = jnp.concatenate([out_r, out_i], axis=-1)          # (nb, cout, 2P)
    om = om.astype(inv_ref.dtype).reshape(nb * cout, 2 * P)
    y = jnp.dot(om, inv_ref[...], preferred_element_type=jnp.float32)
    y = y.reshape(nb, cout, S)

    inv_n = 1.0 / float(cout * S)
    s1 = jnp.sum(jnp.sum(y, axis=2, keepdims=True), axis=1, keepdims=True)
    s2 = jnp.sum(jnp.sum(y * y, axis=2, keepdims=True), axis=1, keepdims=True)
    mean = s1 * inv_n
    var = s2 * inv_n - mean * mean
    a = g_ref[...][None] * lax.rsqrt(var + EPS)            # (nb, cout, 1)
    o_ref[...] = (y * a + (b_ref[...][None] - mean * a)).astype(o_ref.dtype)


# ---------------------------------------------------------------------------
# Wrapper helpers
# ---------------------------------------------------------------------------
def _vmem_budget_bytes():
    """Per-generation VMEM limit (review opts #3/#4/#5): ~3/4 of physical
    capacity, i.e. ~48 MiB on v7x (64 MiB) and ~96 MiB on v5e/v6e (128 MiB)."""
    try:
        cap = pltpu.get_tpu_info().vmem_capacity_bytes
    except Exception:
        cap = 64 * 1024 * 1024
    return int(min(cap * 3 // 4, 100 * 1024 * 1024))


def _choose_block_n(N, per_sample_bytes, budget_bytes, *, rows_per_sample,
                    target_rows=256, allowed=lambda d: True):
    """Largest sample-block that fits the VMEM budget; prefer the smallest one
    whose matmul M dimension already reaches `target_rows` (MXU fill).  No
    forced >=2 grid steps (only 2-TC v7x would benefit; review opt #9)."""
    divs = [d for d in range(1, N + 1) if N % d == 0 and allowed(d)]
    if not divs:
        divs = [N]
    fits = [d for d in divs if d * per_sample_bytes <= budget_bytes]
    if not fits:
        fits = [divs[0]]
    for d in fits:
        if d * rows_per_sample >= target_rows:
            return d
    return fits[-1]


def _const_spec(shape):
    ndim = len(shape)
    return pl.BlockSpec(shape, lambda n: (0,) * ndim)


# ---------------------------------------------------------------------------
# Wrapper
# ---------------------------------------------------------------------------
def spectral_conv2d_forward(x_nchw, params, modes1, modes2, *,
                            matmul_dtype=jnp.bfloat16, force_unfolded=False):
    """x_nchw: (N, Cin, H, W) f32.  params = (weights1, weights2, gamma, beta),
    weights* complex64 of shape (Cin, Cout, modes1, modes2).  Returns
    (N, Cout, H, W) f32 matching the PyTorch module's forward."""
    w1, w2, gamma, beta = params
    N, Cin, H, W = x_nchw.shape
    Cout = w1.shape[1]
    S = H * W
    P = 2 * modes1 * modes2
    assert 2 * modes1 <= H, "kept k1 blocks must not overlap"
    assert W % 2 == 0 and modes2 <= W // 2 + 1

    fwd_r, fwd_i, inv_r, inv_i = _fourier_basis(H, W, modes1, modes2)

    # Kept-mode weights flattened to (Cin, Cout, P): rows [0:m1] from weights1
    # (low k1), rows [m1:2m1] from weights2 (high k1) — matches the basis.
    w_all = jnp.concatenate([w1, w2], axis=2).reshape(Cin, Cout, P)
    w_r = jnp.real(w_all).astype(jnp.float32)
    w_i = jnp.imag(w_all).astype(jnp.float32)

    itemsize = jnp.dtype(matmul_dtype).itemsize
    vmem_limit = _vmem_budget_bytes()

    # Fused forward basis [Re | Im] zero-padded to a lane-aligned mode count
    # (review opts #1, #10): m = x_flat @ fwd gives real modes in [:P], imag
    # modes in [P:2P], zeros beyond.
    P2 = 2 * P
    P2p = max(128, ((P2 + 127) // 128) * 128)
    fwd = jnp.zeros((S, P2p), jnp.float32)
    fwd = fwd.at[:, :P].set(fwd_r).at[:, P:P2].set(fwd_i).astype(matmul_dtype)

    # NCHW -> (N, Cin, S): pure reshape (no transpose); S rides the lane axis.
    x_f = x_nchw.reshape(N, Cin, S).astype(matmul_dtype)

    folded_bytes = Cin * P2p * Cout * S * itemsize
    use_folded = (not force_unfolded) and folded_bytes <= vmem_limit // 4

    if use_folded:
        # --- fold "complex channel mix + irfft2" into one (Cin*P2p, Cout*S)
        #     matrix (review opt #8a): y = m2 @ bmat.
        br = (jnp.einsum('iop,ps->ipos', w_r, inv_r)
              + jnp.einsum('iop,ps->ipos', w_i, inv_i))      # coeff of Re(modes)
        bi = (jnp.einsum('iop,ps->ipos', w_r, inv_i)
              - jnp.einsum('iop,ps->ipos', w_i, inv_r))      # coeff of Im(modes)
        bmat = jnp.zeros((Cin, P2p, Cout, S), jnp.float32)
        bmat = bmat.at[:, :P].set(br).at[:, P:P2].set(bi)
        bmat = bmat.reshape(Cin * P2p, Cout * S).astype(matmul_dtype)

        g_row = jnp.repeat(gamma.astype(jnp.float32), S).reshape(1, Cout * S)
        b_row = jnp.repeat(beta.astype(jnp.float32), S).reshape(1, Cout * S)

        const_bytes = (fwd.size + bmat.size) * itemsize + (g_row.size + b_row.size) * 4
        per_sample = (2 * Cin * S * itemsize          # x block, double-buffered
                      + 2 * Cout * S * 4              # out block, double-buffered
                      + Cin * P2p * 4 + Cout * S * 4)  # m + y f32 intermediates
        budget = max(vmem_limit - 2 * const_bytes - (4 << 20), per_sample)
        # 2-D output block -> leading block dim must be 8-aligned or == N.
        nb = _choose_block_n(N, per_sample, budget, rows_per_sample=Cin,
                             allowed=lambda d: d == N or d % 8 == 0)
        grid = (N // nb,)

        flops = 2 * N * Cin * P2 * S * (1 + Cout)
        bytes_accessed = N * S * (Cin * itemsize + Cout * 4) + const_bytes

        out = pl.pallas_call(
            _spectral_folded_kernel,
            out_shape=jax.ShapeDtypeStruct((N, Cout * S), jnp.float32),
            grid_spec=pltpu.PrefetchScalarGridSpec(
                num_scalar_prefetch=0,
                grid=grid,
                in_specs=[
                    pl.BlockSpec((nb, Cin, S), lambda n: (n, 0, 0)),   # x block
                    _const_spec(fwd.shape), _const_spec(bmat.shape),
                    _const_spec(g_row.shape), _const_spec(b_row.shape),
                ],
                out_specs=pl.BlockSpec((nb, Cout * S), lambda n: (n, 0)),
            ),
            compiler_params=pltpu.CompilerParams(
                dimension_semantics=("parallel",),
                vmem_limit_bytes=vmem_limit),
            cost_estimate=pl.CostEstimate(flops=int(flops), transcendentals=0,
                                          bytes_accessed=int(bytes_accessed)),
        )(x_f, fwd, bmat, g_row, b_row)
        return out.reshape(N, Cout, H, W)

    # ------------------- fallback: per-mode mix on the VPU -------------------
    inv = jnp.concatenate([inv_r, inv_i], axis=0).astype(matmul_dtype)   # (2P, S)
    g_col = gamma.reshape(Cout, 1).astype(jnp.float32)
    b_col = beta.reshape(Cout, 1).astype(jnp.float32)

    const_bytes = ((fwd.size + inv.size) * itemsize
                   + (w_r.size + w_i.size + 2 * Cout) * 4)
    per_sample = (2 * Cin * S * itemsize + 2 * Cout * S * 4
                  + Cin * P2p * 4 + 4 * Cin * Cout * P * 4 + Cout * S * 4)
    budget = max(vmem_limit - 2 * const_bytes - (4 << 20), per_sample)
    nb = _choose_block_n(N, per_sample, budget, rows_per_sample=min(Cin, Cout))
    grid = (N // nb,)

    flops = 2 * N * (Cin * S * P2 + Cout * P2 * S) + 8 * N * Cin * Cout * P
    bytes_accessed = N * S * (Cin * itemsize + Cout * 4) + const_bytes

    out = pl.pallas_call(
        _spectral_unfolded_kernel,
        out_shape=jax.ShapeDtypeStruct((N, Cout, S), jnp.float32),
        grid_spec=pltpu.PrefetchScalarGridSpec(
            num_scalar_prefetch=0,
            grid=grid,
            in_specs=[
                pl.BlockSpec((nb, Cin, S), lambda n: (n, 0, 0)),       # x block
                _const_spec(fwd.shape), _const_spec(w_r.shape),
                _const_spec(w_i.shape), _const_spec(inv.shape),
                _const_spec(g_col.shape), _const_spec(b_col.shape),
            ],
            out_specs=pl.BlockSpec((nb, Cout, S), lambda n: (n, 0, 0)),
        ),
        compiler_params=pltpu.CompilerParams(
            dimension_semantics=("parallel",),
            vmem_limit_bytes=vmem_limit),
        cost_estimate=pl.CostEstimate(flops=int(flops), transcendentals=0,
                                      bytes_accessed=int(bytes_accessed)),
    )(x_f, fwd, w_r, w_i, inv, g_col, b_col)
    return out.reshape(N, Cout, H, W)


# ---------------------------------------------------------------------------
# Pure-JAX reference with torch-faithful semantics (for the sanity check).
# ---------------------------------------------------------------------------
def reference_forward(x, params, modes1, modes2):
    w1, w2, gamma, beta = params
    N, Cin, H, W = x.shape
    Cout = w1.shape[1]
    Wh = W // 2 + 1

    x_ft = jnp.fft.rfft2(x, axes=(-2, -1)).astype(jnp.complex64)

    def mix(xs, ws):  # einsum('bixy,ioxy->boxy') done elementwise (exact c64)
        return jnp.sum(xs[:, :, None] * ws[None], axis=1)

    top = mix(x_ft[:, :, :modes1, :modes2], w1)
    bot = mix(x_ft[:, :, H - modes1:, :modes2], w2)
    out_ft = jnp.zeros((N, Cout, H, Wh), jnp.complex64)
    out_ft = out_ft.at[:, :, :modes1, :modes2].set(top)
    out_ft = out_ft.at[:, :, H - modes1:, :modes2].set(bot)

    # irfft2 = ifft along -2, then c2r along -1 (pocketfft/torch semantics).
    y_half = jnp.fft.ifft(out_ft, axis=-2)
    mirror = jnp.conj(y_half[..., 1:Wh - 1][..., ::-1])
    y_full = jnp.concatenate([y_half, mirror], axis=-1)
    y = jnp.real(jnp.fft.ifft(y_full, axis=-1)).astype(jnp.float32)

    mean = jnp.mean(y, axis=(1, 2, 3), keepdims=True)
    var = jnp.mean((y - mean) ** 2, axis=(1, 2, 3), keepdims=True)
    y = (y - mean) * lax.rsqrt(var + EPS)
    return y * gamma[None, :, None, None] + beta[None, :, None, None]


def init_params(key, in_channels, out_channels, modes1, modes2):
    """Mirror the PyTorch init: scale * torch.rand(..., dtype=cfloat)
    (real and imag each uniform in [0,1)); GroupNorm affine = (1, 0)."""
    scale = 1.0 / (in_channels * out_channels)
    k1, k2, k3, k4 = jax.random.split(key, 4)
    shape = (in_channels, out_channels, modes1, modes2)
    w1 = scale * (jax.random.uniform(k1, shape, jnp.float32)
                  + 1j * jax.random.uniform(k2, shape, jnp.float32))
    w2 = scale * (jax.random.uniform(k3, shape, jnp.float32)
                  + 1j * jax.random.uniform(k4, shape, jnp.float32))
    gamma = jnp.ones((out_channels,), jnp.float32)
    beta = jnp.zeros((out_channels,), jnp.float32)
    return (w1.astype(jnp.complex64), w2.astype(jnp.complex64), gamma, beta)


if __name__ == "__main__":
    key = jax.random.PRNGKey(0)
    kx, kp = jax.random.split(key)

    N, Cin, Cout, H, W = 2, 4, 8, 16, 16
    modes1, modes2 = 4, 4

    x = jax.random.normal(kx, (N, Cin, H, W), jnp.float32)
    params = init_params(kp, Cin, Cout, modes1, modes2)
    ref = jax.block_until_ready(reference_forward(x, params, modes1, modes2))

    # 1) exact-math check: f32 MXU operands, tight tolerance.
    out_f32 = jax.block_until_ready(
        spectral_conv2d_forward(x, params, modes1, modes2,
                                matmul_dtype=jnp.float32))
    assert out_f32.shape == (N, Cout, H, W)
    assert jnp.allclose(out_f32, ref, atol=1e-3, rtol=1e-3), (
        "f32 mismatch: max abs err = %g"
        % float(jnp.max(jnp.abs(out_f32 - ref))))

    # 2) default perf path: bf16 MXU operands, f32 accumulation (review opt #7).
    #    bf16 input quantization gives ~1% relative error; tolerance widened.
    out = jax.block_until_ready(
        spectral_conv2d_forward(x, params, modes1, modes2))
    assert jnp.allclose(out, ref, atol=3e-2, rtol=3e-2), (
        "bf16 mismatch: max abs err = %g"
        % float(jnp.max(jnp.abs(out - ref))))

    # 3) fallback (un-folded) kernel used when the folded matrix is too large.
    out_u = jax.block_until_ready(
        spectral_conv2d_forward(x, params, modes1, modes2, force_unfolded=True))
    assert jnp.allclose(out_u, ref, atol=3e-2, rtol=3e-2), (
        "fallback mismatch: max abs err = %g"
        % float(jnp.max(jnp.abs(out_u - ref))))

    print("KERNEL_OK")
</pallas_src>

<mosaic_0001>
module attributes {stable_mosaic.version = 11 : i64} {
  func.func @_spectral_folded_kernel(%arg0: i32, %arg1: memref<2x4x256xf32, #tpu.memory_space<vmem>>, %arg2: memref<256x128xf32, #tpu.memory_space<vmem>>, %arg3: memref<512x2048xf32, #tpu.memory_space<vmem>>, %arg4: memref<1x2048xf32, #tpu.memory_space<vmem>>, %arg5: memref<1x2048xf32, #tpu.memory_space<vmem>>, %arg6: memref<2x2048xf32, #tpu.memory_space<vmem>>) attributes {dimension_semantics = [#tpu.dimension_semantics<parallel>], iteration_bounds = array<i64: 1>, scalar_prefetch = 0 : i64, scratch_operands = 0 : i64, tpu.core_type = #tpu.core_type<tc>, window_params = [{transform_indices = @transform_0, window_bounds = array<i64: 2, 4, 256>}, {pipeline_mode = #tpu.pipeline_mode<synchronous>, transform_indices = @transform_1, window_bounds = array<i64: 256, 128>}, {pipeline_mode = #tpu.pipeline_mode<synchronous>, transform_indices = @transform_2, window_bounds = array<i64: 512, 2048>}, {pipeline_mode = #tpu.pipeline_mode<synchronous>, transform_indices = @transform_3, window_bounds = array<i64: 1, 2048>}, {pipeline_mode = #tpu.pipeline_mode<synchronous>, transform_indices = @transform_4, window_bounds = array<i64: 1, 2048>}, {transform_indices = @transform_5, window_bounds = array<i64: 2, 2048>}]} {
    %c0 = arith.constant 0 : index
    %c0_0 = arith.constant 0 : index
    %c0_1 = arith.constant 0 : index
    %0 = vector.load %arg1[%c0, %c0_0, %c0_1] : memref<2x4x256xf32, #tpu.memory_space<vmem>>, vector<2x4x256xf32>
    %1 = vector.shape_cast %0 : vector<2x4x256xf32> to vector<8x256xf32>
    %c0_2 = arith.constant 0 : index
    %c0_3 = arith.constant 0 : index
    %2 = vector.load %arg2[%c0_2, %c0_3] : memref<256x128xf32, #tpu.memory_space<vmem>>, vector<256x128xf32>
    %cst = arith.constant dense<0.000000e+00> : vector<8x128xf32>
    %3 = tpu.matmul %1, %2, %cst {dimension_numbers = #tpu.dot_dimension_numbers<[1], [0], [0], [1], [0, 0, 1, 1], [], []>} : vector<8x256xf32>, vector<256x128xf32>, vector<8x128xf32> -> vector<8x128xf32>
    %4 = vector.shape_cast %3 : vector<8x128xf32> to vector<2x512xf32>
    %c0_4 = arith.constant 0 : index
    %c0_5 = arith.constant 0 : index
    %5 = vector.load %arg3[%c0_4, %c0_5] : memref<512x2048xf32, #tpu.memory_space<vmem>>, vector<512x2048xf32>
    %cst_6 = arith.constant dense<0.000000e+00> : vector<2x2048xf32>
    %6 = tpu.matmul %4, %5, %cst_6 {dimension_numbers = #tpu.dot_dimension_numbers<[1], [0], [0], [1], [0, 0, 1, 1], [], []>} : vector<2x512xf32>, vector<512x2048xf32>, vector<2x2048xf32> -> vector<2x2048xf32>
    %cst_7 = arith.constant dense<0.000000e+00> : vector<2xf32>
    %7 = vector.multi_reduction <add>, %6, %cst_7 [1] : vector<2x2048xf32> to vector<2xf32>
    %8 = vector.shape_cast %7 : vector<2xf32> to vector<2x1xf32>
    %cst_8 = arith.constant 4.8828125E-4 : f32
    %9 = vector.broadcast %cst_8 : f32 to vector<2x1xf32>
    %10 = arith.mulf %8, %9 : vector<2x1xf32>
    %11 = arith.mulf %6, %6 : vector<2x2048xf32>
    %cst_9 = arith.constant dense<0.000000e+00> : vector<2xf32>
    %12 = vector.multi_reduction <add>, %11, %cst_9 [1] : vector<2x2048xf32> to vector<2xf32>
    %13 = vector.shape_cast %12 : vector<2xf32> to vector<2x1xf32>
    %cst_10 = arith.constant 4.8828125E-4 : f32
    %14 = vector.broadcast %cst_10 : f32 to vector<2x1xf32>
    %15 = arith.mulf %13, %14 : vector<2x1xf32>
    %16 = arith.mulf %10, %10 : vector<2x1xf32>
    %17 = arith.subf %15, %16 : vector<2x1xf32>
    %c0_11 = arith.constant 0 : index
    %c0_12 = arith.constant 0 : index
    %18 = vector.load %arg4[%c0_11, %c0_12] : memref<1x2048xf32, #tpu.memory_space<vmem>>, vector<1x2048xf32>
    %cst_13 = arith.constant 9.99999974E-6 : f32
    %19 = vector.broadcast %cst_13 : f32 to vector<2x1xf32>
    %20 = arith.addf %17, %19 : vector<2x1xf32>
    %21 = math.rsqrt %20 : vector<2x1xf32>
    %22 = vector.broadcast %18 : vector<1x2048xf32> to vector<2x2048xf32>
    %23 = vector.broadcast %21 : vector<2x1xf32> to vector<2x2048xf32>
    %24 = arith.mulf %22, %23 : vector<2x2048xf32>
    %25 = arith.mulf %6, %24 : vector<2x2048xf32>
    %c0_14 = arith.constant 0 : index
    %c0_15 = arith.constant 0 : index
    %26 = vector.load %arg5[%c0_14, %c0_15] : memref<1x2048xf32, #tpu.memory_space<vmem>>, vector<1x2048xf32>
    %27 = vector.broadcast %10 : vector<2x1xf32> to vector<2x2048xf32>
    %28 = arith.mulf %27, %24 : vector<2x2048xf32>
    %29 = vector.broadcast %26 : vector<1x2048xf32> to vector<2x2048xf32>
    %30 = arith.subf %29, %28 : vector<2x2048xf32>
    %31 = arith.addf %25, %30 : vector<2x2048xf32>
    %c0_16 = arith.constant 0 : index
    %c0_17 = arith.constant 0 : index
    %32 = vector.load %arg6[%c0_16, %c0_17] : memref<2x2048xf32, #tpu.memory_space<vmem>>, vector<2x2048xf32>
    tpu.vector_store %arg6[%c0_16, %c0_17], %31 {strides = array<i32>} : memref<2x2048xf32, #tpu.memory_space<vmem>>, vector<2x2048xf32>,
    return
  }
  func.func @transform_0(%arg0: i32) -> (i32, i32, i32) {
    %c0_i32 = arith.constant 0 : i32
    %c0_i32_0 = arith.constant 0 : i32
    %c0_i32_1 = arith.constant 0 : i32
    return %arg0, %c0_i32, %c0_i32_0 : i32, i32, i32
  }
  func.func @transform_1(%arg0: i32) -> (i32, i32) {
    %c0_i32 = arith.constant 0 : i32
    %c0_i32_0 = arith.constant 0 : i32
    %c0_i32_1 = arith.constant 0 : i32
    return %c0_i32, %c0_i32_0 : i32, i32
  }
  func.func @transform_2(%arg0: i32) -> (i32, i32) {
    %c0_i32 = arith.constant 0 : i32
    %c0_i32_0 = arith.constant 0 : i32
    %c0_i32_1 = arith.constant 0 : i32
    return %c0_i32, %c0_i32_0 : i32, i32
  }
  func.func @transform_3(%arg0: i32) -> (i32, i32) {
    %c0_i32 = arith.constant 0 : i32
    %c0_i32_0 = arith.constant 0 : i32
    %c0_i32_1 = arith.constant 0 : i32
    return %c0_i32, %c0_i32_0 : i32, i32
  }
  func.func @transform_4(%arg0: i32) -> (i32, i32) {
    %c0_i32 = arith.constant 0 : i32
    %c0_i32_0 = arith.constant 0 : i32
    %c0_i32_1 = arith.constant 0 : i32
    return %c0_i32, %c0_i32_0 : i32, i32
  }
  func.func @transform_5(%arg0: i32) -> (i32, i32) {
    %c0_i32 = arith.constant 0 : i32
    %c0_i32_0 = arith.constant 0 : i32
    return %arg0, %c0_i32 : i32, i32
  }
}

</mosaic_0001>

<llo_original>
// kernel: tpu_custom_call.1
$region0: #{tpu_custom_call.1}
  #allocation0 [shape = 'u32[]', space=smem, size = 0x4, offset = 0x4, fixed_abs, tag = 'smem constant byte address 0x4 - core index']
  #allocation1 [shape = 'u32[144,128]{1,0:T(1,128)}', space=vmem, size = 0x12000, scoped, tag = 'internal scratch']
  %s0 = inlined_call_operand.hbm [shape: f32[2,4,256], index: 0, kind: input, shape index: {}]
  %s1 = inlined_call_operand.hbm [shape: f32[256,128], index: 1, kind: input, shape index: {}]
  %s2 = inlined_call_operand.hbm [shape: f32[512,2048], index: 2, kind: input, shape index: {}]
  %s3 = inlined_call_operand.hbm [shape: f32[1,2048], index: 3, kind: input, shape index: {}]
  %s4 = inlined_call_operand.hbm [shape: f32[1,2048], index: 4, kind: input, shape index: {}]
  %s5 = inlined_call_operand.hbm [shape: f32[2,2048], index: 5, kind: output, shape index: {}]
  %s6 = sld [smem:[#allocation0]]
  $region50: #{tpu_custom_call.1} parent=0
    _
  %s8 = ssub.s32 1, %s6
  %s9 = scalar_select 0, %s8, %s6
  $region1: #{tpu_custom_call.1} parent=0
    #allocation2 [shape = 'u8[8192]{0}', space=vmem, size = 0x2000, scoped, tag = 'input window, operand 0, single buffered']
    #allocation3 [shape = 's32[1]{0}', space=sflag, size = 0x4, scoped, tag = 'scoped memory for tpu_custom_call.1']
    #allocation4 [shape = 's32[1]{0}', space=sflag, size = 0x4, scoped, tag = 'scoped memory for tpu_custom_call.1']
    #allocation5 [shape = 'u8[131072]{0}', space=vmem, size = 0x20000, scoped, tag = 'input window, operand 1, single buffered']
    #allocation6 [shape = 's32[1]{0}', space=sflag, size = 0x4, scoped, tag = 'scoped memory for tpu_custom_call.1']
    #allocation7 [shape = 'u8[4194304]{0}', space=vmem, size = 0x400000, scoped, tag = 'input window, operand 2, single buffered']
    #allocation8 [shape = 'u8[8192]{0}', space=vmem, size = 0x2000, scoped, tag = 'input window, operand 3, single buffered']
    #allocation9 [shape = 's32[1]{0}', space=sflag, size = 0x4, scoped, tag = 'scoped memory for tpu_custom_call.1']
    #allocation10 [shape = 'u8[8192]{0}', space=vmem, size = 0x2000, scoped, tag = 'input window, operand 4, single buffered']
    #allocation11 [shape = 'u8[16384]{0}', space=vmem, size = 0x4000, scoped, tag = 'output window, operand 0, single buffered']
    %10 = vsyncpa [#allocation3], 0
    %11 = vsyncpa [#allocation6], 0
    %12 = vsyncpa [#allocation9], 0
    %13 = vsyncpa [#allocation4], 0
    // Predicated region
    $region2: #{tpu_custom_call.1} parent=1 // pred_check
      _
    $region3: #{tpu_custom_call.1} parent=1 // pred_check_branch
      %15 = sbr.rel (0) target = $region5
    $region4: #{tpu_custom_call.1} parent=1 // pred_region
      %s17 = ssub.s32 256, 256
      %18 = vsyncadd [#allocation3], %s17
      %s19 = sshll.u32 [#allocation2], 4
      %s20 = int_to_ptr.vmem [resolvable:$true] %s19
      %25 = dma.hbm_to_vmem [thread:$0]  %s0, 256, %s20, [#allocation3], 128, 128, 8
    $region5: #{tpu_custom_call.1} parent=1 // pred_fallthru
      _
    // Predicated region
    $region6: #{tpu_custom_call.1} parent=1 // pred_check
      _
    $region7: #{tpu_custom_call.1} parent=1 // pred_check_branch
      %27 = sbr.rel (0) target = $region9
    $region8: #{tpu_custom_call.1} parent=1 // pred_region
      %s29 = ssub.s32 4096, 4096
      %30 = vsyncadd [#allocation6], %s29
      %s31 = sshll.u32 [#allocation5], 4
      %s32 = int_to_ptr.vmem [resolvable:$true] %s31
      %37 = dma.hbm_to_vmem [thread:$0]  %s1, 4096, %s32, [#allocation6], 128, 128, 8
    $region9: #{tpu_custom_call.1} parent=1 // pred_fallthru
      _
    // Predicated region
    $region10: #{tpu_custom_call.1} parent=1 // pred_check
      _
    $region11: #{tpu_custom_call.1} parent=1 // pred_check_branch
      %39 = sbr.rel (0) target = $region13
    $region12: #{tpu_custom_call.1} parent=1 // pred_region
      %s41 = ssub.s32 131072, 131072
      %42 = vsyncadd [#allocation6], %s41
      %s43 = sshll.u32 [#allocation7], 4
      %s44 = int_to_ptr.vmem [resolvable:$true] %s43
      %49 = dma.hbm_to_vmem [thread:$0]  %s2, 131072, %s44, [#allocation6], 2048, 2048, 128
    $region13: #{tpu_custom_call.1} parent=1 // pred_fallthru
      _
    // Predicated region
    $region14: #{tpu_custom_call.1} parent=1 // pred_check
      _
    $region15: #{tpu_custom_call.1} parent=1 // pred_check_branch
      %51 = sbr.rel (0) target = $region17
    $region16: #{tpu_custom_call.1} parent=1 // pred_region
      %s53 = ssub.s32 256, 256
      %54 = vsyncadd [#allocation9], %s53
      %s56 = sshll.u32 [#allocation8], 4
      %s57 = int_to_ptr.vmem [resolvable:$true] %s56
      %59 = dma.hbm_to_vmem [thread:$0]  %s3, 256, %s57, [#allocation9]
    $region17: #{tpu_custom_call.1} parent=1 // pred_fallthru
      _
    // Predicated region
    $region18: #{tpu_custom_call.1} parent=1 // pred_check
      _
    $region19: #{tpu_custom_call.1} parent=1 // pred_check_branch
      %61 = sbr.rel (0) target = $region21
    $region20: #{tpu_custom_call.1} parent=1 // pred_region
      %s63 = ssub.s32 256, 256
      %64 = vsyncadd [#allocation9], %s63
      %s66 = sshll.u32 [#allocation10], 4
      %s67 = int_to_ptr.vmem [resolvable:$true] %s66
      %69 = dma.hbm_to_vmem [thread:$0]  %s4, 256, %s67, [#allocation9]
    $region21: #{tpu_custom_call.1} parent=1 // pred_fallthru
      _
    // Predicated region
    $region22: #{tpu_custom_call.1} parent=1 // pred_check
      _
    $region23: #{tpu_custom_call.1} parent=1 // pred_check_branch
      %71 = sbr.rel (0) target = $region25
    $region24: #{tpu_custom_call.1} parent=1 // pred_region
      %72 = dma.done [#allocation3], 256
    $region25: #{tpu_custom_call.1} parent=1 // pred_fallthru
      _
    // Predicated region
    $region26: #{tpu_custom_call.1} parent=1 // pred_check
      _
    $region27: #{tpu_custom_call.1} parent=1 // pred_check_branch
      %74 = sbr.rel (0) target = $region29
    $region28: #{tpu_custom_call.1} parent=1 // pred_region
      %75 = dma.done [#allocation6], 4096
    $region29: #{tpu_custom_call.1} parent=1 // pred_fallthru
      _
    // Predicated region
    $region30: #{tpu_custom_call.1} parent=1 // pred_check
      _
    $region31: #{tpu_custom_call.1} parent=1 // pred_check_branch
      %77 = sbr.rel (0) target = $region33
    $region32: #{tpu_custom_call.1} parent=1 // pred_region
      %78 = dma.done [#allocation6], 131072
    $region33: #{tpu_custom_call.1} parent=1 // pred_fallthru
      _
    // Predicated region
    $region34: #{tpu_custom_call.1} parent=1 // pred_check
      _
    $region35: #{tpu_custom_call.1} parent=1 // pred_check_branch
      %80 = sbr.rel (0) target = $region37
    $region36: #{tpu_custom_call.1} parent=1 // pred_region
      %81 = dma.done [#allocation9], 256
    $region37: #{tpu_custom_call.1} parent=1 // pred_fallthru
      _
    // Predicated region
    $region38: #{tpu_custom_call.1} parent=1 // pred_check
      _
    $region39: #{tpu_custom_call.1} parent=1 // pred_check_branch
      %83 = sbr.rel (0) target = $region41
    $region40: #{tpu_custom_call.1} parent=1 // pred_region
      %84 = dma.done [#allocation9], 256
    $region41: #{tpu_custom_call.1} parent=1 // pred_fallthru
      _
    %v85 = vld [vmem:[#allocation2] sm:$0xff]
    %v86 = vld [vmem:[#allocation2 + $0x8] sm:$0xff]
    %v87 = vld [vmem:[#allocation5] sm:$0xff]
    %v88 = vld [vmem:[#allocation5 + $0x8] sm:$0xff]
    %v89 = vld [vmem:[#allocation5 + $0x10] sm:$0xff]
    %v90 = vld [vmem:[#allocation5 + $0x18] sm:$0xff]
    %v91 = vld [vmem:[#allocation5 + $0x20] sm:$0xff]
    %v92 = vld [vmem:[#allocation5 + $0x28] sm:$0xff]
    %v93 = vld [vmem:[#allocation5 + $0x30] sm:$0xff]
    %v94 = vld [vmem:[#allocation5 + $0x38] sm:$0xff]
    %v95 = vld [vmem:[#allocation5 + $0x40] sm:$0xff]
    %v96 = vld [vmem:[#allocation5 + $0x48] sm:$0xff]
    %v97 = vld [vmem:[#allocation5 + $0x50] sm:$0xff]
    %v98 = vld [vmem:[#allocation5 + $0x58] sm:$0xff]
    %v99 = vld [vmem:[#allocation5 + $0x60] sm:$0xff]
    %v100 = vld [vmem:[#allocation5 + $0x68] sm:$0xff]
    %v101 = vld [vmem:[#allocation5 + $0x70] sm:$0xff]
    %v102 = vld [vmem:[#allocation5 + $0x78] sm:$0xff]
    %v103 = vld [vmem:[#allocation5 + $0x80] sm:$0xff]
    %v104 = vld [vmem:[#allocation5 + $0x88] sm:$0xff]
    %v105 = vld [vmem:[#allocation5 + $0x90] sm:$0xff]
    %v106 = vld [vmem:[#allocation5 + $0x98] sm:$0xff]
    %v107 = vld [vmem:[#allocation5 + $0xa0] sm:$0xff]
    %v108 = vld [vmem:[#allocation5 + $0xa8] sm:$0xff]
    %v109 = vld [vmem:[#allocation5 + $0xb0] sm:$0xff]
    %v110 = vld [vmem:[#allocation5 + $0xb8] sm:$0xff]
    %v111 = vld [vmem:[#allocation5 + $0xc0] sm:$0xff]
    %v112 = vld [vmem:[#allocation5 + $0xc8] sm:$0xff]
    %v113 = vld [vmem:[#allocation5 + $0xd0] sm:$0xff]
    %v114 = vld [vmem:[#allocation5 + $0xd8] sm:$0xff]
    %v115 = vld [vmem:[#allocation5 + $0xe0] sm:$0xff]
    %v116 = vld [vmem:[#allocation5 + $0xe8] sm:$0xff]
    %v117 = vld [vmem:[#allocation5 + $0xf0] sm:$0xff]
    %v118 = vld [vmem:[#allocation5 + $0xf8] sm:$0xff]
    %v121 = vcombine.low %v85, %v86
    %v122 = vcombine.high %v85, %v86
    %125 = vmatprep.subr.mxu0 0.0
    %126 = vmatpush1.msra.mxu0 %v87
    %127 = vmatprep.subr.mxu0 0.0
    %128 = vmatpush1.msra.mxu0 %v88
    %129 = vmatprep.subr.mxu0 0.0
    %130 = vmatpush1.msra.mxu0 %v89
    %131 = vmatprep.subr.mxu0 0.0
    %132 = vmatpush1.msra.mxu0 %v90
    %133 = vmatprep.subr.mxu0 0.0
    %134 = vmatpush1.msra.mxu0 %v91
    %135 = vmatprep.subr.mxu0 0.0
    %136 = vmatpush1.msra.mxu0 %v92
    %137 = vmatprep.subr.mxu0 0.0
    %138 = vmatpush1.msra.mxu0 %v93
    %139 = vmatprep.subr.mxu0 0.0
    %140 = vmatpush1.msra.mxu0 %v94
    %141 = vmatprep.subr.mxu0 0.0
    %142 = vmatpush1.msra.mxu0 %v95
    %143 = vmatprep.subr.mxu0 0.0
    %144 = vmatpush1.msra.mxu0 %v96
    %145 = vmatprep.subr.mxu0 0.0
    %146 = vmatpush1.msra.mxu0 %v97
    %147 = vmatprep.subr.mxu0 0.0
    %148 = vmatpush1.msra.mxu0 %v98
    %149 = vmatprep.subr.mxu0 0.0
    %150 = vmatpush1.msra.mxu0 %v99
    %151 = vmatprep.subr.mxu0 0.0
    %152 = vmatpush1.msra.mxu0 %v100
    %153 = vmatprep.subr.mxu0 0.0
    %154 = vmatpush1.msra.mxu0 %v101
    %155 = vmatprep.subr.mxu0 0.0
    %156 = vmatpush1.msra.mxu0 %v102
    %157 = vmatprep.subr.mxu0 0.0
    %158 = vmatpush1.msra.mxu0 %v103
    %159 = vmatprep.subr.mxu0 0.0
    %160 = vmatpush1.msra.mxu0 %v104
    %161 = vmatprep.subr.mxu0 0.0
    %162 = vmatpush1.msra.mxu0 %v105
    %163 = vmatprep.subr.mxu0 0.0
    %164 = vmatpush1.msra.mxu0 %v106
    %165 = vmatprep.subr.mxu0 0.0
    %166 = vmatpush1.msra.mxu0 %v107
    %167 = vmatprep.subr.mxu0 0.0
    %168 = vmatpush1.msra.mxu0 %v108
    %169 = vmatprep.subr.mxu0 0.0
    %170 = vmatpush1.msra.mxu0 %v109
    %171 = vmatprep.subr.mxu0 0.0
    %172 = vmatpush1.msra.mxu0 %v110
    %173 = vmatprep.subr.mxu0 0.0
    %174 = vmatpush1.msra.mxu0 %v111
    %175 = vmatprep.subr.mxu0 0.0
    %176 = vmatpush1.msra.mxu0 %v112
    %177 = vmatprep.subr.mxu0 0.0
    %178 = vmatpush1.msra.mxu0 %v113
    %179 = vmatprep.subr.mxu0 0.0
    %180 = vmatpush1.msra.mxu0 %v114
    %181 = vmatprep.subr.mxu0 0.0
    %182 = vmatpush1.msra.mxu0 %v115
    %183 = vmatprep.subr.mxu0 0.0
    %184 = vmatpush1.msra.mxu0 %v116
    %185 = vmatprep.subr.mxu0 0.0
    %186 = vmatpush1.msra.mxu0 %v117
    %187 = vmatprep.subr.mxu0 0.0
    %188 = vmatpush1.msra.mxu0 %v118
    %189 = vmatprep.mubr.f32.mxu0 %v122
    %190 = vmatmul.mubr.f32.gmra.mrb[0].mxu0 %v121
    %v191 = vpop.f32.mrb[0].mxu0
    %v192 = vadd.f32 0.0, %v191
    %v193 = vpop.f32.mrb[0].mxu0
    %194 = vdwg.mxu0
    %v196 = vunpack.c.l.s4 1935823168
    %v197 = vunpack.c.0.s8 %v196
    %v198 = vlaneseq
    %v199 = vshrl.u32 %v198, 7
    %v200 = vsub.s32 %v197, %v199
    %v201 = vrot.slane %v192, %v200
    %v202 = vld [vmem:[#allocation7] sm:$0xff]
    %v203 = vld [vmem:[#allocation7 + $0x8] sm:$0xff]
    %v204 = vld [vmem:[#allocation7 + $0x10] sm:$0xff]
    %v205 = vld [vmem:[#allocation7 + $0x18] sm:$0xff]
    %v206 = vld [vmem:[#allocation7 + $0x20] sm:$0xff]
    %v207 = vld [vmem:[#allocation7 + $0x28] sm:$0xff]
    %v208 = vld [vmem:[#allocation7 + $0x30] sm:$0xff]
    %v209 = vld [vmem:[#allocation7 + $0x38] sm:$0xff]
    %v210 = vld [vmem:[#allocation7 + $0x40] sm:$0xff]
    %v211 = vld [vmem:[#allocation7 + $0x48] sm:$0xff]
    %v212 = vld [vmem:[#allocation7 + $0x50] sm:$0xff]
    %v213 = vld [vmem:[#allocation7 + $0x58] sm:$0xff]
    %v214 = vld [vmem:[#allocation7 + $0x60] sm:$0xff]
    %v215 = vld [vmem:[#allocation7 + $0x68] sm:$0xff]
    %v216 = vld [vmem:[#allocation7 + $0x70] sm:$0xff]
    %v217 = vld [vmem:[#allocation7 + $0x78] sm:$0xff]
    %v218 = vld [vmem:[#allocation7 + $0x80] sm:$0xff]
    %v219 = vld [vmem:[#allocation7 + $0x88] sm:$0xff]
    %v220 = vld [vmem:[#allocation7 + $0x90] sm:$0xff]
    %v221 = vld [vmem:[#allocation7 + $0x98] sm:$0xff]
    %v222 = vld [vmem:[#allocation7 + $0xa0] sm:$0xff]
    %v223 = vld [vmem:[#allocation7 + $0xa8] sm:$0xff]
    %v224 = vld [vmem:[#allocation7 + $0xb0] sm:$0xff]
    %v225 = vld [vmem:[#allocation7 + $0xb8] sm:$0xff]
    %v226 = vld [vmem:[#allocation7 + $0xc0] sm:$0xff]
    %v227 = vld [vmem:[#allocation7 + $0xc8] sm:$0xff]
    %v228 = vld [vmem:[#allocation7 + $0xd0] sm:$0xff]
    %v229 = vld [vmem:[#allocation7 + $0xd8] sm:$0xff]
    %v230 = vld [vmem:[#allocation7 + $0xe0] sm:$0xff]
    %v231 = vld [vmem:[#allocation7 + $0xe8] sm:$0xff]
    %v232 = vld [vmem:[#allocation7 + $0xf0] sm:$0xff]
    %v233 = vld [vmem:[#allocation7 + $0xf8] sm:$0xff]
    %v234 = vld [vmem:[#allocation7 + $0x100] sm:$0xff]
    %v235 = vld [vmem:[#allocation7 + $0x108] sm:$0xff]
    %v236 = vld [vmem:[#allocation7 + $0x110] sm:$0xff]
    %v237 = vld [vmem:[#allocation7 + $0x118] sm:$0xff]
    %v238 = vld [vmem:[#allocation7 + $0x120] sm:$0xff]
    %v239 = vld [vmem:[#allocation7 + $0x128] sm:$0xff]
    %v240 = vld [vmem:[#allocation7 + $0x130] sm:$0xff]
    %v241 = vld [vmem:[#allocation7 + $0x138] sm:$0xff]
    %v242 = vld [vmem:[#allocation7 + $0x140] sm:$0xff]
    %v243 = vld [vmem:[#allocation7 + $0x148] sm:$0xff]
    %v244 = vld [vmem:[#allocation7 + $0x150] sm:$0xff]
    %v245 = vld [vmem:[#allocation7 + $0x158] sm:$0xff]
    %v246 = vld [vmem:[#allocation7 + $0x160] sm:$0xff]
    %v247 = vld [vmem:[#allocation7 + $0x168] sm:$0xff]
    %v248 = vld [vmem:[#allocation7 + $0x170] sm:$0xff]
    %v249 = vld [vmem:[#allocation7 + $0x178] sm:$0xff]
    %v250 = vld [vmem:[#allocation7 + $0x180] sm:$0xff]
    %v251 = vld [vmem:[#allocation7 + $0x188] sm:$0xff]
    %v252 = vld [vmem:[#allocation7 + $0x190] sm:$0xff]
    %v253 = vld [vmem:[#allocation7 + $0x198] sm:$0xff]
    %v254 = vld [vmem:[#allocation7 + $0x1a0] sm:$0xff]
    %v255 = vld [vmem:[#allocation7 + $0x1a8] sm:$0xff]
    %v256 = vld [vmem:[#allocation7 + $0x1b0] sm:$0xff]
    %v257 = vld [vmem:[#allocation7 + $0x1b8] sm:$0xff]
    %v258 = vld [vmem:[#allocation7 + $0x1c0] sm:$0xff]
    %v259 = vld [vmem:[#allocation7 + $0x1c8] sm:$0xff]
    %v260 = vld [vmem:[#allocation7 + $0x1d0] sm:$0xff]
    %v261 = vld [vmem:[#allocation7 + $0x1d8] sm:$0xff]
    %v262 = vld [vmem:[#allocation7 + $0x1e0] sm:$0xff]
    %v263 = vld [vmem:[#allocation7 + $0x1e8] sm:$0xff]
    %v264 = vld [vmem:[#allocation7 + $0x1f0] sm:$0xff]
    %v265 = vld [vmem:[#allocation7 + $0x1f8] sm:$0xff]
    %v266 = vld [vmem:[#allocation7 + $0x200] sm:$0xff]
    %v267 = vld [vmem:[#allocation7 + $0x208] sm:$0xff]
    %v268 = vld [vmem:[#allocation7 + $0x210] sm:$0xff]
    %v269 = vld [vmem:[#allocation7 + $0x218] sm:$0xff]
    %v270 = vld [vmem:[#allocation7 + $0x220] sm:$0xff]
    %v271 = vld [vmem:[#allocation7 + $0x228] sm:$0xff]
    %v272 = vld [vmem:[#allocation7 + $0x230] sm:$0xff]
    %v273 = vld [vmem:[#allocation7 + $0x238] sm:$0xff]
    %v274 = vld [vmem:[#allocation7 + $0x240] sm:$0xff]
    %v275 = vld [vmem:[#allocation7 + $0x248] sm:$0xff]
    %v276 = vld [vmem:[#allocation7 + $0x250] sm:$0xff]
    %v277 = vld [vmem:[#allocation7 + $0x258] sm:$0xff]
    %v278 = vld [vmem:[#allocation7 + $0x260] sm:$0xff]
    %v279 = vld [vmem:[#allocation7 + $0x268] sm:$0xff]
    %v280 = vld [vmem:[#allocation7 + $0x270] sm:$0xff]
    %v281 = vld [vmem:[#allocation7 + $0x278] sm:$0xff]
    %v282 = vld [vmem:[#allocation7 + $0x280] sm:$0xff]
    %v283 = vld [vmem:[#allocation7 + $0x288] sm:$0xff]
    %v284 = vld [vmem:[#allocation7 + $0x290] sm:$0xff]
    %v285 = vld [vmem:[#allocation7 + $0x298] sm:$0xff]
    %v286 = vld [vmem:[#allocation7 + $0x2a0] sm:$0xff]
    %v287 = vld [vmem:[#allocation7 + $0x2a8] sm:$0xff]
    %v288 = vld [vmem:[#allocation7 + $0x2b0] sm:$0xff]
    %v289 = vld [vmem:[#allocation7 + $0x2b8] sm:$0xff]
    %v290 = vld [vmem:[#allocation7 + $0x2c0] sm:$0xff]
    %v291 = vld [vmem:[#allocation7 + $0x2c8] sm:$0xff]
    %v292 = vld [vmem:[#allocation7 + $0x2d0] sm:$0xff]
    %v293 = vld [vmem:[#allocation7 + $0x2d8] sm:$0xff]
    %v294 = vld [vmem:[#allocation7 + $0x2e0] sm:$0xff]
    %v295 = vld [vmem:[#allocation7 + $0x2e8] sm:$0xff]
    %v296 = vld [vmem:[#allocation7 + $0x2f0] sm:$0xff]
    %v297 = vld [vmem:[#allocation7 + $0x2f8] sm:$0xff]
    %v298 = vld [vmem:[#allocation7 + $0x300] sm:$0xff]
    %v299 = vld [vmem:[#allocation7 + $0x308] sm:$0xff]
    %v300 = vld [vmem:[#allocation7 + $0x310] sm:$0xff]
    %v301 = vld [vmem:[#allocation7 + $0x318] sm:$0xff]
    %v302 = vld [vmem:[#allocation7 + $0x320] sm:$0xff]
    %v303 = vld [vmem:[#allocation7 + $0x328] sm:$0xff]
    %v304 = vld [vmem:[#allocation7 + $0x330] sm:$0xff]
    %v305 = vld [vmem:[#allocation7 + $0x338] sm:$0xff]
    %v306 = vld [vmem:[#allocation7 + $0x340] sm:$0xff]
    %v307 = vld [vmem:[#allocation7 + $0x348] sm:$0xff]
    %v308 = vld [vmem:[#allocation7 + $0x350] sm:$0xff]
    %v309 = vld [vmem:[#allocation7 + $0x358] sm:$0xff]
    %v310 = vld [vmem:[#allocation7 + $0x360] sm:$0xff]
    %v311 = vld [vmem:[#allocation7 + $0x368] sm:$0xff]
    %v312 = vld [vmem:[#allocation7 + $0x370] sm:$0xff]
    %v313 = vld [vmem:[#allocation7 + $0x378] sm:$0xff]
    %v314 = vld [vmem:[#allocation7 + $0x380] sm:$0xff]
    %v315 = vld [vmem:[#allocation7 + $0x388] sm:$0xff]
    %v316 = vld [vmem:[#allocation7 + $0x390] sm:$0xff]
    %v317 = vld [vmem:[#allocation7 + $0x398] sm:$0xff]
    %v318 = vld [vmem:[#allocation7 + $0x3a0] sm:$0xff]
    %v319 = vld [vmem:[#allocation7 + $0x3a8] sm:$0xff]
    %v320 = vld [vmem:[#allocation7 + $0x3b0] sm:$0xff]
    %v321 = vld [vmem:[#allocation7 + $0x3b8] sm:$0xff]
    %v322 = vld [vmem:[#allocation7 + $0x3c0] sm:$0xff]
    %v323 = vld [vmem:[#allocation7 + $0x3c8] sm:$0xff]
    %v324 = vld [vmem:[#allocation7 + $0x3d0] sm:$0xff]
    %v325 = vld [vmem:[#allocation7 + $0x3d8] sm:$0xff]
    %v326 = vld [vmem:[#allocation7 + $0x3e0] sm:$0xff]
    %v327 = vld [vmem:[#allocation7 + $0x3e8] sm:$0xff]
    %v328 = vld [vmem:[#allocation7 + $0x3f0] sm:$0xff]
    %v329 = vld [vmem:[#allocation7 + $0x3f8] sm:$0xff]
    %v330 = vld [vmem:[#allocation7 + $0x400] sm:$0xff]
    %v331 = vld [vmem:[#allocation7 + $0x408] sm:$0xff]
    %v332 = vld [vmem:[#allocation7 + $0x410] sm:$0xff]
    %v333 = vld [vmem:[#allocation7 + $0x418] sm:$0xff]
    %v334 = vld [vmem:[#allocation7 + $0x420] sm:$0xff]
    %v335 = vld [vmem:[#allocation7 + $0x428] sm:$0xff]
    %v336 = vld [vmem:[#allocation7 + $0x430] sm:$0xff]
    %v337 = vld [vmem:[#allocation7 + $0x438] sm:$0xff]
    %v338 = vld [vmem:[#allocation7 + $0x440] sm:$0xff]
    %v339 = vld [vmem:[#allocation7 + $0x448] sm:$0xff]
    %v340 = vld [vmem:[#allocation7 + $0x450] sm:$0xff]
    %v341 = vld [vmem:[#allocation7 + $0x458] sm:$0xff]
    %v342 = vld [vmem:[#allocation7 + $0x460] sm:$0xff]
    %v343 = vld [vmem:[#allocation7 + $0x468] sm:$0xff]
    %v344 = vld [vmem:[#allocation7 + $0x470] sm:$0xff]
    %v345 = vld [vmem:[#allocation7 + $0x478] sm:$0xff]
    %v346 = vld [vmem:[#allocation7 + $0x480] sm:$0xff]
    %v347 = vld [vmem:[#allocation7 + $0x488] sm:$0xff]
    %v348 = vld [vmem:[#allocation7 + $0x490] sm:$0xff]
    %v349 = vld [vmem:[#allocation7 + $0x498] sm:$0xff]
    %v350 = vld [vmem:[#allocation7 + $0x4a0] sm:$0xff]
    %v351 = vld [vmem:[#allocation7 + $0x4a8] sm:$0xff]
    %v352 = vld [vmem:[#allocation7 + $0x4b0] sm:$0xff]
    %v353 = vld [vmem:[#allocation7 + $0x4b8] sm:$0xff]
    %v354 = vld [vmem:[#allocation7 + $0x4c0] sm:$0xff]
    %v355 = vld [vmem:[#allocation7 + $0x4c8] sm:$0xff]
    %v356 = vld [vmem:[#allocation7 + $0x4d0] sm:$0xff]
    %v357 = vld [vmem:[#allocation7 + $0x4d8] sm:$0xff]
    %v358 = vld [vmem:[#allocation7 + $0x4e0] sm:$0xff]
    %v359 = vld [vmem:[#allocation7 + $0x4e8] sm:$0xff]
    %v360 = vld [vmem:[#allocation7 + $0x4f0] sm:$0xff]
    %v361 = vld [vmem:[#allocation7 + $0x4f8] sm:$0xff]
    %v362 = vld [vmem:[#allocation7 + $0x500] sm:$0xff]
    %v363 = vld [vmem:[#allocation7 + $0x508] sm:$0xff]
    %v364 = vld [vmem:[#allocation7 + $0x510] sm:$0xff]
    %v365 = vld [vmem:[#allocation7 + $0x518] sm:$0xff]
    %v366 = vld [vmem:[#allocation7 + $0x520] sm:$0xff]
    %v367 = vld [vmem:[#allocation7 + $0x528] sm:$0xff]
    %v368 = vld [vmem:[#allocation7 + $0x530] sm:$0xff]
    %v369 = vld [vmem:[#allocation7 + $0x538] sm:$0xff]
    %v370 = vld [vmem:[#allocation7 + $0x540] sm:$0xff]
    %v371 = vld [vmem:[#allocation7 + $0x548] sm:$0xff]
    %v372 = vld [vmem:[#allocation7 + $0x550] sm:$0xff]
    %v373 = vld [vmem:[#allocation7 + $0x558] sm:$0xff]
    %v374 = vld [vmem:[#allocation7 + $0x560] sm:$0xff]
    %v375 = vld [vmem:[#allocation7 + $0x568] sm:$0xff]
    %v376 = vld [vmem:[#allocation7 + $0x570] sm:$0xff]
    %v377 = vld [vmem:[#allocation7 + $0x578] sm:$0xff]
    %v378 = vld [vmem:[#allocation7 + $0x580] sm:$0xff]
    %v379 = vld [vmem:[#allocation7 + $0x588] sm:$0xff]
    %v380 = vld [vmem:[#allocation7 + $0x590] sm:$0xff]
    %v381 = vld [vmem:[#allocation7 + $0x598] sm:$0xff]
    %v382 = vld [vmem:[#allocation7 + $0x5a0] sm:$0xff]
    %v383 = vld [vmem:[#allocation7 + $0x5a8] sm:$0xff]
    %v384 = vld [vmem:[#allocation7 + $0x5b0] sm:$0xff]
    %v385 = vld [vmem:[#allocation7 + $0x5b8] sm:$0xff]
    %v386 = vld [vmem:[#allocation7 + $0x5c0] sm:$0xff]
    %v387 = vld [vmem:[#allocation7 + $0x5c8] sm:$0xff]
    %v388 = vld [vmem:[#allocation7 + $0x5d0] sm:$0xff]
    %v389 = vld [vmem:[#allocation7 + $0x5d8] sm:$0xff]
    %v390 = vld [vmem:[#allocation7 + $0x5e0] sm:$0xff]
    %v391 = vld [vmem:[#allocation7 + $0x5e8] sm:$0xff]
    %v392 = vld [vmem:[#allocation7 + $0x5f0] sm:$0xff]
    %v393 = vld [vmem:[#allocation7 + $0x5f8] sm:$0xff]
    %v394 = vld [vmem:[#allocation7 + $0x600] sm:$0xff]
    %v395 = vld [vmem:[#allocation7 + $0x608] sm:$0xff]
    %v396 = vld [vmem:[#allocation7 + $0x610] sm:$0xff]
    %v397 = vld [vmem:[#allocation7 + $0x618] sm:$0xff]
    %v398 = vld [vmem:[#allocation7 + $0x620] sm:$0xff]
    %v399 = vld [vmem:[#allocation7 + $0x628] sm:$0xff]
    %v400 = vld [vmem:[#allocation7 + $0x630] sm:$0xff]
    %v401 = vld [vmem:[#allocation7 + $0x638] sm:$0xff]
    %v402 = vld [vmem:[#allocation7 + $0x640] sm:$0xff]
    %v403 = vld [vmem:[#allocation7 + $0x648] sm:$0xff]
    %v404 = vld [vmem:[#allocation7 + $0x650] sm:$0xff]
    %v405 = vld [vmem:[#allocation7 + $0x658] sm:$0xff]
    %v406 = vld [vmem:[#allocation7 + $0x660] sm:$0xff]
    %v407 = vld [vmem:[#allocation7 + $0x668] sm:$0xff]
    %v408 = vld [vmem:[#allocation7 + $0x670] sm:$0xff]
    %v409 = vld [vmem:[#allocation7 + $0x678] sm:$0xff]
    %v410 = vld [vmem:[#allocation7 + $0x680] sm:$0xff]
    %v411 = vld [vmem:[#allocation7 + $0x688] sm:$0xff]
    %v412 = vld [vmem:[#allocation7 + $0x690] sm:$0xff]
    %v413 = vld [vmem:[#allocation7 + $0x698] sm:$0xff]
    %v414 = vld [vmem:[#allocation7 + $0x6a0] sm:$0xff]
    %v415 = vld [vmem:[#allocation7 + $0x6a8] sm:$0xff]
    %v416 = vld [vmem:[#allocation7 + $0x6b0] sm:$0xff]
    %v417 = vld [vmem:[#allocation7 + $0x6b8] sm:$0xff]
    %v418 = vld [vmem:[#allocation7 + $0x6c0] sm:$0xff]
    %v419 = vld [vmem:[#allocation7 + $0x6c8] sm:$0xff]
    %v420 = vld [vmem:[#allocation7 + $0x6d0] sm:$0xff]
    %v421 = vld [vmem:[#allocation7 + $0x6d8] sm:$0xff]
    %v422 = vld [vmem:[#allocation7 + $0x6e0] sm:$0xff]
    %v423 = vld [vmem:[#allocation7 + $0x6e8] sm:$0xff]
    %v424 = vld [vmem:[#allocation7 + $0x6f0] sm:$0xff]
    %v425 = vld [vmem:[#allocation7 + $0x6f8] sm:$0xff]
    %v426 = vld [vmem:[#allocation7 + $0x700] sm:$0xff]
    %v427 = vld [vmem:[#allocation7 + $0x708] sm:$0xff]
    %v428 = vld [vmem:[#allocation7 + $0x710] sm:$0xff]
    %v429 = vld [vmem:[#allocation7 + $0x718] sm:$0xff]
    %v430 = vld [vmem:[#allocation7 + $0x720] sm:$0xff]
    %v431 = vld [vmem:[#allocation7 + $0x728] sm:$0xff]
    %v432 = vld [vmem:[#allocation7 + $0x730] sm:$0xff]
    %v433 = vld [vmem:[#allocation7 + $0x738] sm:$0xff]
    %v434 = vld [vmem:[#allocation7 + $0x740] sm:$0xff]
    %v435 = vld [vmem:[#allocation7 + $0x748] sm:$0xff]
    %v436 = vld [vmem:[#allocation7 + $0x750] sm:$0xff]
    %v437 = vld [vmem:[#allocation7 + $0x758] sm:$0xff]
    %v438 = vld [vmem:[#allocation7 + $0x760] sm:$0xff]
    %v439 = vld [vmem:[#allocation7 + $0x768] sm:$0xff]
    %v440 = vld [vmem:[#allocation7 + $0x770] sm:$0xff]
    %v441 = vld [vmem:[#allocation7 + $0x778] sm:$0xff]
    %v442 = vld [vmem:[#allocation7 + $0x780] sm:$0xff]
    %v443 = vld [vmem:[#allocation7 + $0x788] sm:$0xff]
    %v444 = vld [vmem:[#allocation7 + $0x790] sm:$0xff]
    %v445 = vld [vmem:[#allocation7 + $0x798] sm:$0xff]
    %v446 = vld [vmem:[#allocation7 + $0x7a0] sm:$0xff]
    %v447 = vld [vmem:[#allocation7 + $0x7a8] sm:$0xff]
    %v448 = vld [vmem:[#allocation7 + $0x7b0] sm:$0xff]
    %v449 = vld [vmem:[#allocation7 + $0x7b8] sm:$0xff]
    %v450 = vld [vmem:[#allocation7 + $0x7c0] sm:$0xff]
    %v451 = vld [vmem:[#allocation7 + $0x7c8] sm:$0xff]
    %v452 = vld [vmem:[#allocation7 + $0x7d0] sm:$0xff]
    %v453 = vld [vmem:[#allocation7 + $0x7d8] sm:$0xff]
    %v454 = vld [vmem:[#allocation7 + $0x7e0] sm:$0xff]
    %v455 = vld [vmem:[#allocation7 + $0x7e8] sm:$0xff]
    %v456 = vld [vmem:[#allocation7 + $0x7f0] sm:$0xff]
    %v457 = vld [vmem:[#allocation7 + $0x7f8] sm:$0xff]
    %v458 = vld [vmem:[#allocation7 + $0x800] sm:$0xff]
    %v459 = vld [vmem:[#allocation7 + $0x808] sm:$0xff]
    %v460 = vld [vmem:[#allocation7 + $0x810] sm:$0xff]
    %v461 = vld [vmem:[#allocation7 + $0x818] sm:$0xff]
    %v462 = vld [vmem:[#allocation7 + $0x820] sm:$0xff]
    %v463 = vld [vmem:[#allocation7 + $0x828] sm:$0xff]
    %v464 = vld [vmem:[#allocation7 + $0x830] sm:$0xff]
    %v465 = vld [vmem:[#allocation7 + $0x838] sm:$0xff]
    %v466 = vld [vmem:[#allocation7 + $0x840] sm:$0xff]
    %v467 = vld [vmem:[#allocation7 + $0x848] sm:$0xff]
    %v468 = vld [vmem:[#allocation7 + $0x850] sm:$0xff]
    %v469 = vld [vmem:[#allocation7 + $0x858] sm:$0xff]
    %v470 = vld [vmem:[#allocation7 + $0x860] sm:$0xff]
    %v471 = vld [vmem:[#allocation7 + $0x868] sm:$0xff]
    %v472 = vld [vmem:[#allocation7 + $0x870] sm:$0xff]
    %v473 = vld [vmem:[#allocation7 + $0x878] sm:$0xff]
    %v474 = vld [vmem:[#allocation7 + $0x880] sm:$0xff]
    %v475 = vld [vmem:[#allocation7 + $0x888] sm:$0xff]
    %v476 = vld [vmem:[#allocation7 + $0x890] sm:$0xff]
    %v477 = vld [vmem:[#allocation7 + $0x898] sm:$0xff]
    %v478 = vld [vmem:[#allocation7 + $0x8a0] sm:$0xff]
    %v479 = vld [vmem:[#allocation7 + $0x8a8] sm:$0xff]
    %v480 = vld [vmem:[#allocation7 + $0x8b0] sm:$0xff]
    %v481 = vld [vmem:[#allocation7 + $0x8b8] sm:$0xff]
    %v482 = vld [vmem:[#allocation7 + $0x8c0] sm:$0xff]
    %v483 = vld [vmem:[#allocation7 + $0x8c8] sm:$0xff]
    %v484 = vld [vmem:[#allocation7 + $0x8d0] sm:$0xff]
    %v485 = vld [vmem:[#allocation7 + $0x8d8] sm:$0xff]
    %v486 = vld [vmem:[#allocation7 + $0x8e0] sm:$0xff]
    %v487 = vld [vmem:[#allocation7 + $0x8e8] sm:$0xff]
    %v488 = vld [vmem:[#allocation7 + $0x8f0] sm:$0xff]
    %v489 = vld [vmem:[#allocation7 + $0x8f8] sm:$0xff]
    %v490 = vld [vmem:[#allocation7 + $0x900] sm:$0xff]
    %v491 = vld [vmem:[#allocation7 + $0x908] sm:$0xff]
    %v492 = vld [vmem:[#allocation7 + $0x910] sm:$0xff]
    %v493 = vld [vmem:[#allocation7 + $0x918] sm:$0xff]
    %v494 = vld [vmem:[#allocation7 + $0x920] sm:$0xff]
    %v495 = vld [vmem:[#allocation7 + $0x928] sm:$0xff]
    %v496 = vld [vmem:[#allocation7 + $0x930] sm:$0xff]
    %v497 = vld [vmem:[#allocation7 + $0x938] sm:$0xff]
    %v498 = vld [vmem:[#allocation7 + $0x940] sm:$0xff]
    %v499 = vld [vmem:[#allocation7 + $0x948] sm:$0xff]
    %v500 = vld [vmem:[#allocation7 + $0x950] sm:$0xff]
    %v501 = vld [vmem:[#allocation7 + $0x958] sm:$0xff]
    %v502 = vld [vmem:[#allocation7 + $0x960] sm:$0xff]
    %v503 = vld [vmem:[#allocation7 + $0x968] sm:$0xff]
    %v504 = vld [vmem:[#allocation7 + $0x970] sm:$0xff]
    %v505 = vld [vmem:[#allocation7 + $0x978] sm:$0xff]
    %v506 = vld [vmem:[#allocation7 + $0x980] sm:$0xff]
    %v507 = vld [vmem:[#allocation7 + $0x988] sm:$0xff]
    %v508 = vld [vmem:[#allocation7 + $0x990] sm:$0xff]
    %v509 = vld [vmem:[#allocation7 + $0x998] sm:$0xff]
    %v510 = vld [vmem:[#allocation7 + $0x9a0] sm:$0xff]
    %v511 = vld [vmem:[#allocation7 + $0x9a8] sm:$0xff]
    %v512 = vld [vmem:[#allocation7 + $0x9b0] sm:$0xff]
    %v513 = vld [vmem:[#allocation7 + $0x9b8] sm:$0xff]
    %v514 = vld [vmem:[#allocation7 + $0x9c0] sm:$0xff]
    %v515 = vld [vmem:[#allocation7 + $0x9c8] sm:$0xff]
    %v516 = vld [vmem:[#allocation7 + $0x9d0] sm:$0xff]
    %v517 = vld [vmem:[#allocation7 + $0x9d8] sm:$0xff]
    %v518 = vld [vmem:[#allocation7 + $0x9e0] sm:$0xff]
    %v519 = vld [vmem:[#allocation7 + $0x9e8] sm:$0xff]
    %v520 = vld [vmem:[#allocation7 + $0x9f0] sm:$0xff]
    %v521 = vld [vmem:[#allocation7 + $0x9f8] sm:$0xff]
    %v522 = vld [vmem:[#allocation7 + $0xa00] sm:$0xff]
    %v523 = vld [vmem:[#allocation7 + $0xa08] sm:$0xff]
    %v524 = vld [vmem:[#allocation7 + $0xa10] sm:$0xff]
    %v525 = vld [vmem:[#allocation7 + $0xa18] sm:$0xff]
    %v526 = vld [vmem:[#allocation7 + $0xa20] sm:$0xff]
    %v527 = vld [vmem:[#allocation7 + $0xa28] sm:$0xff]
    %v528 = vld [vmem:[#allocation7 + $0xa30] sm:$0xff]
    %v529 = vld [vmem:[#allocation7 + $0xa38] sm:$0xff]
    %v530 = vld [vmem:[#allocation7 + $0xa40] sm:$0xff]
    %v531 = vld [vmem:[#allocation7 + $0xa48] sm:$0xff]
    %v532 = vld [vmem:[#allocation7 + $0xa50] sm:$0xff]
    %v533 = vld [vmem:[#allocation7 + $0xa58] sm:$0xff]
    %v534 = vld [vmem:[#allocation7 + $0xa60] sm:$0xff]
    %v535 = vld [vmem:[#allocation7 + $0xa68] sm:$0xff]
    %v536 = vld [vmem:[#allocation7 + $0xa70] sm:$0xff]
    %v537 = vld [vmem:[#allocation7 + $0xa78] sm:$0xff]
    %v538 = vld [vmem:[#allocation7 + $0xa80] sm:$0xff]
    %v539 = vld [vmem:[#allocation7 + $0xa88] sm:$0xff]
    %v540 = vld [vmem:[#allocation7 + $0xa90] sm:$0xff]
    %v541 = vld [vmem:[#allocation7 + $0xa98] sm:$0xff]
    %v542 = vld [vmem:[#allocation7 + $0xaa0] sm:$0xff]
    %v543 = vld [vmem:[#allocation7 + $0xaa8] sm:$0xff]
    %v544 = vld [vmem:[#allocation7 + $0xab0] sm:$0xff]
    %v545 = vld [vmem:[#allocation7 + $0xab8] sm:$0xff]
    %v546 = vld [vmem:[#allocation7 + $0xac0] sm:$0xff]
    %v547 = vld [vmem:[#allocation7 + $0xac8] sm:$0xff]
    %v548 = vld [vmem:[#allocation7 + $0xad0] sm:$0xff]
    %v549 = vld [vmem:[#allocation7 + $0xad8] sm:$0xff]
    %v550 = vld [vmem:[#allocation7 + $0xae0] sm:$0xff]
    %v551 = vld [vmem:[#allocation7 + $0xae8] sm:$0xff]
    %v552 = vld [vmem:[#allocation7 + $0xaf0] sm:$0xff]
    %v553 = vld [vmem:[#allocation7 + $0xaf8] sm:$0xff]
    %v554 = vld [vmem:[#allocation7 + $0xb00] sm:$0xff]
    %v555 = vld [vmem:[#allocation7 + $0xb08] sm:$0xff]
    %v556 = vld [vmem:[#allocation7 + $0xb10] sm:$0xff]
    %v557 = vld [vmem:[#allocation7 + $0xb18] sm:$0xff]
    %v558 = vld [vmem:[#allocation7 + $0xb20] sm:$0xff]
    %v559 = vld [vmem:[#allocation7 + $0xb28] sm:$0xff]
    %v560 = vld [vmem:[#allocation7 + $0xb30] sm:$0xff]
    %v561 = vld [vmem:[#allocation7 + $0xb38] sm:$0xff]
    %v562 = vld [vmem:[#allocation7 + $0xb40] sm:$0xff]
    %v563 = vld [vmem:[#allocation7 + $0xb48] sm:$0xff]
    %v564 = vld [vmem:[#allocation7 + $0xb50] sm:$0xff]
    %v565 = vld [vmem:[#allocation7 + $0xb58] sm:$0xff]
    %v566 = vld [vmem:[#allocation7 + $0xb60] sm:$0xff]
    %v567 = vld [vmem:[#allocation7 + $0xb68] sm:$0xff]
    %v568 = vld [vmem:[#allocation7 + $0xb70] sm:$0xff]
    %v569 = vld [vmem:[#allocation7 + $0xb78] sm:$0xff]
    %v570 = vld [vmem:[#allocation7 + $0xb80] sm:$0xff]
    %v571 = vld [vmem:[#allocation7 + $0xb88] sm:$0xff]
    %v572 = vld [vmem:[#allocation7 + $0xb90] sm:$0xff]
    %v573 = vld [vmem:[#allocation7 + $0xb98] sm:$0xff]
    %v574 = vld [vmem:[#allocation7 + $0xba0] sm:$0xff]
    %v575 = vld [vmem:[#allocation7 + $0xba8] sm:$0xff]
    %v576 = vld [vmem:[#allocation7 + $0xbb0] sm:$0xff]
    %v577 = vld [vmem:[#allocation7 + $0xbb8] sm:$0xff]
    %v578 = vld [vmem:[#allocation7 + $0xbc0] sm:$0xff]
    %v579 = vld [vmem:[#allocation7 + $0xbc8] sm:$0xff]
    %v580 = vld [vmem:[#allocation7 + $0xbd0] sm:$0xff]
    %v581 = vld [vmem:[#allocation7 + $0xbd8] sm:$0xff]
    %v582 = vld [vmem:[#allocation7 + $0xbe0] sm:$0xff]
    %v583 = vld [vmem:[#allocation7 + $0xbe8] sm:$0xff]
    %v584 = vld [vmem:[#allocation7 + $0xbf0] sm:$0xff]
    %v585 = vld [vmem:[#allocation7 + $0xbf8] sm:$0xff]
    %v586 = vld [vmem:[#allocation7 + $0xc00] sm:$0xff]
    %v587 = vld [vmem:[#allocation7 + $0xc08] sm:$0xff]
    %v588 = vld [vmem:[#allocation7 + $0xc10] sm:$0xff]
    %v589 = vld [vmem:[#allocation7 + $0xc18] sm:$0xff]
    %v590 = vld [vmem:[#allocation7 + $0xc20] sm:$0xff]
    %v591 = vld [vmem:[#allocation7 + $0xc28] sm:$0xff]
    %v592 = vld [vmem:[#allocation7 + $0xc30] sm:$0xff]
    %v593 = vld [vmem:[#allocation7 + $0xc38] sm:$0xff]
    %v594 = vld [vmem:[#allocation7 + $0xc40] sm:$0xff]
    %v595 = vld [vmem:[#allocation7 + $0xc48] sm:$0xff]
    %v596 = vld [vmem:[#allocation7 + $0xc50] sm:$0xff]
    %v597 = vld [vmem:[#allocation7 + $0xc58] sm:$0xff]
    %v598 = vld [vmem:[#allocation7 + $0xc60] sm:$0xff]
    %v599 = vld [vmem:[#allocation7 + $0xc68] sm:$0xff]
    %v600 = vld [vmem:[#allocation7 + $0xc70] sm:$0xff]
    %v601 = vld [vmem:[#allocation7 + $0xc78] sm:$0xff]
    %v602 = vld [vmem:[#allocation7 + $0xc80] sm:$0xff]
    %v603 = vld [vmem:[#allocation7 + $0xc88] sm:$0xff]
    %v604 = vld [vmem:[#allocation7 + $0xc90] sm:$0xff]
    %v605 = vld [vmem:[#allocation7 + $0xc98] sm:$0xff]
    %v606 = vld [vmem:[#allocation7 + $0xca0] sm:$0xff]
    %v607 = vld [vmem:[#allocation7 + $0xca8] sm:$0xff]
    %v608 = vld [vmem:[#allocation7 + $0xcb0] sm:$0xff]
    %v609 = vld [vmem:[#allocation7 + $0xcb8] sm:$0xff]
    %v610 = vld [vmem:[#allocation7 + $0xcc0] sm:$0xff]
    %v611 = vld [vmem:[#allocation7 + $0xcc8] sm:$0xff]
    %v612 = vld [vmem:[#allocation7 + $0xcd0] sm:$0xff]
    %v613 = vld [vmem:[#allocation7 + $0xcd8] sm:$0xff]
    %v614 = vld [vmem:[#allocation7 + $0xce0] sm:$0xff]
    %v615 = vld [vmem:[#allocation7 + $0xce8] sm:$0xff]
    %v616 = vld [vmem:[#allocation7 + $0xcf0] sm:$0xff]
    %v617 = vld [vmem:[#allocation7 + $0xcf8] sm:$0xff]
    %v618 = vld [vmem:[#allocation7 + $0xd00] sm:$0xff]
    %v619 = vld [vmem:[#allocation7 + $0xd08] sm:$0xff]
    %v620 = vld [vmem:[#allocation7 + $0xd10] sm:$0xff]
    %v621 = vld [vmem:[#allocation7 + $0xd18] sm:$0xff]
    %v622 = vld [vmem:[#allocation7 + $0xd20] sm:$0xff]
    %v623 = vld [vmem:[#allocation7 + $0xd28] sm:$0xff]
    %v624 = vld [vmem:[#allocation7 + $0xd30] sm:$0xff]
    %v625 = vld [vmem:[#allocation7 + $0xd38] sm:$0xff]
    %v626 = vld [vmem:[#allocation7 + $0xd40] sm:$0xff]
    %v627 = vld [vmem:[#allocation7 + $0xd48] sm:$0xff]
    %v628 = vld [vmem:[#allocation7 + $0xd50] sm:$0xff]
    %v629 = vld [vmem:[#allocation7 + $0xd58] sm:$0xff]
    %v630 = vld [vmem:[#allocation7 + $0xd60] sm:$0xff]
    %v631 = vld [vmem:[#allocation7 + $0xd68] sm:$0xff]
    %v632 = vld [vmem:[#allocation7 + $0xd70] sm:$0xff]
    %v633 = vld [vmem:[#allocation7 + $0xd78] sm:$0xff]
    %v634 = vld [vmem:[#allocation7 + $0xd80] sm:$0xff]
    %v635 = vld [vmem:[#allocation7 + $0xd88] sm:$0xff]
    %v636 = vld [vmem:[#allocation7 + $0xd90] sm:$0xff]
    %v637 = vld [vmem:[#allocation7 + $0xd98] sm:$0xff]
    %v638 = vld [vmem:[#allocation7 + $0xda0] sm:$0xff]
    %v639 = vld [vmem:[#allocation7 + $0xda8] sm:$0xff]
    %v640 = vld [vmem:[#allocation7 + $0xdb0] sm:$0xff]
    %v641 = vld [vmem:[#allocation7 + $0xdb8] sm:$0xff]
    %v642 = vld [vmem:[#allocation7 + $0xdc0] sm:$0xff]
    %v643 = vld [vmem:[#allocation7 + $0xdc8] sm:$0xff]
    %v644 = vld [vmem:[#allocation7 + $0xdd0] sm:$0xff]
    %v645 = vld [vmem:[#allocation7 + $0xdd8] sm:$0xff]
    %v646 = vld [vmem:[#allocation7 + $0xde0] sm:$0xff]
    %v647 = vld [vmem:[#allocation7 + $0xde8] sm:$0xff]
    %v648 = vld [vmem:[#allocation7 + $0xdf0] sm:$0xff]
    %v649 = vld [vmem:[#allocation7 + $0xdf8] sm:$0xff]
    %v650 = vld [vmem:[#allocation7 + $0xe00] sm:$0xff]
    %v651 = vld [vmem:[#allocation7 + $0xe08] sm:$0xff]
    %v652 = vld [vmem:[#allocation7 + $0xe10] sm:$0xff]
    %v653 = vld [vmem:[#allocation7 + $0xe18] sm:$0xff]
    %v654 = vld [vmem:[#allocation7 + $0xe20] sm:$0xff]
    %v655 = vld [vmem:[#allocation7 + $0xe28] sm:$0xff]
    %v656 = vld [vmem:[#allocation7 + $0xe30] sm:$0xff]
    %v657 = vld [vmem:[#allocation7 + $0xe38] sm:$0xff]
    %v658 = vld [vmem:[#allocation7 + $0xe40] sm:$0xff]
    %v659 = vld [vmem:[#allocation7 + $0xe48] sm:$0xff]
    %v660 = vld [vmem:[#allocation7 + $0xe50] sm:$0xff]
    %v661 = vld [vmem:[#allocation7 + $0xe58] sm:$0xff]
    %v662 = vld [vmem:[#allocation7 + $0xe60] sm:$0xff]
    %v663 = vld [vmem:[#allocation7 + $0xe68] sm:$0xff]
    %v664 = vld [vmem:[#allocation7 + $0xe70] sm:$0xff]
    %v665 = vld [vmem:[#allocation7 + $0xe78] sm:$0xff]
    %v666 = vld [vmem:[#allocation7 + $0xe80] sm:$0xff]
    %v667 = vld [vmem:[#allocation7 + $0xe88] sm:$0xff]
    %v668 = vld [vmem:[#allocation7 + $0xe90] sm:$0xff]
    %v669 = vld [vmem:[#allocation7 + $0xe98] sm:$0xff]
    %v670 = vld [vmem:[#allocation7 + $0xea0] sm:$0xff]
    %v671 = vld [vmem:[#allocation7 + $0xea8] sm:$0xff]
    %v672 = vld [vmem:[#allocation7 + $0xeb0] sm:$0xff]
    %v673 = vld [vmem:[#allocation7 + $0xeb8] sm:$0xff]
    %v674 = vld [vmem:[#allocation7 + $0xec0] sm:$0xff]
    %v675 = vld [vmem:[#allocation7 + $0xec8] sm:$0xff]
    %v676 = vld [vmem:[#allocation7 + $0xed0] sm:$0xff]
    %v677 = vld [vmem:[#allocation7 + $0xed8] sm:$0xff]
    %v678 = vld [vmem:[#allocation7 + $0xee0] sm:$0xff]
    %v679 = vld [vmem:[#allocation7 + $0xee8] sm:$0xff]
    %v680 = vld [vmem:[#allocation7 + $0xef0] sm:$0xff]
    %v681 = vld [vmem:[#allocation7 + $0xef8] sm:$0xff]
    %v682 = vld [vmem:[#allocation7 + $0xf00] sm:$0xff]
    %v683 = vld [vmem:[#allocation7 + $0xf08] sm:$0xff]
    %v684 = vld [vmem:[#allocation7 + $0xf10] sm:$0xff]
    %v685 = vld [vmem:[#allocation7 + $0xf18] sm:$0xff]
    %v686 = vld [vmem:[#allocation7 + $0xf20] sm:$0xff]
    %v687 = vld [vmem:[#allocation7 + $0xf28] sm:$0xff]
    %v688 = vld [vmem:[#allocation7 + $0xf30] sm:$0xff]
    %v689 = vld [vmem:[#allocation7 + $0xf38] sm:$0xff]
    %v690 = vld [vmem:[#allocation7 + $0xf40] sm:$0xff]
    %v691 = vld [vmem:[#allocation7 + $0xf48] sm:$0xff]
    %v692 = vld [vmem:[#allocation7 + $0xf50] sm:$0xff]
    %v693 = vld [vmem:[#allocation7 + $0xf58] sm:$0xff]
    %v694 = vld [vmem:[#allocation7 + $0xf60] sm:$0xff]
    %v695 = vld [vmem:[#allocation7 + $0xf68] sm:$0xff]
    %v696 = vld [vmem:[#allocation7 + $0xf70] sm:$0xff]
    %v697 = vld [vmem:[#allocation7 + $0xf78] sm:$0xff]
    %v698 = vld [vmem:[#allocation7 + $0xf80] sm:$0xff]
    %v699 = vld [vmem:[#allocation7 + $0xf88] sm:$0xff]
    %v700 = vld [vmem:[#allocation7 + $0xf90] sm:$0xff]
    %v701 = vld [vmem:[#allocation7 + $0xf98] sm:$0xff]
    %v702 = vld [vmem:[#allocation7 + $0xfa0] sm:$0xff]
    %v703 = vld [vmem:[#allocation7 + $0xfa8] sm:$0xff]
    %v704 = vld [vmem:[#allocation7 + $0xfb0] sm:$0xff]
    %v705 = vld [vmem:[#allocation7 + $0xfb8] sm:$0xff]
    %v706 = vld [vmem:[#allocation7 + $0xfc0] sm:$0xff]
    %v707 = vld [vmem:[#allocation7 + $0xfc8] sm:$0xff]
    %v708 = vld [vmem:[#allocation7 + $0xfd0] sm:$0xff]
    %v709 = vld [vmem:[#allocation7 + $0xfd8] sm:$0xff]
    %v710 = vld [vmem:[#allocation7 + $0xfe0] sm:$0xff]
    %v711 = vld [vmem:[#allocation7 + $0xfe8] sm:$0xff]
    %v712 = vld [vmem:[#allocation7 + $0xff0] sm:$0xff]
    %v713 = vld [vmem:[#allocation7 + $0xff8] sm:$0xff]
    %v714 = vld [vmem:[#allocation7 + $0x1000] sm:$0xff]
    %v715 = vld [vmem:[#allocation7 + $0x1008] sm:$0xff]
    %v716 = vld [vmem:[#allocation7 + $0x1010] sm:$0xff]
    %v717 = vld [vmem:[#allocation7 + $0x1018] sm:$0xff]
    %v718 = vld [vmem:[#allocation7 + $0x1020] sm:$0xff]
    %v719 = vld [vmem:[#allocation7 + $0x1028] sm:$0xff]
    %v720 = vld [vmem:[#allocation7 + $0x1030] sm:$0xff]
    %v721 = vld [vmem:[#allocation7 + $0x1038] sm:$0xff]
    %v722 = vld [vmem:[#allocation7 + $0x1040] sm:$0xff]
    %v723 = vld [vmem:[#allocation7 + $0x1048] sm:$0xff]
    %v724 = vld [vmem:[#allocation7 + $0x1050] sm:$0xff]
    %v725 = vld [vmem:[#allocation7 + $0x1058] sm:$0xff]
    %v726 = vld [vmem:[#allocation7 + $0x1060] sm:$0xff]
    %v727 = vld [vmem:[#allocation7 + $0x1068] sm:$0xff]
    %v728 = vld [vmem:[#allocation7 + $0x1070] sm:$0xff]
    %v729 = vld [vmem:[#allocation7 + $0x1078] sm:$0xff]
    %v730 = vld [vmem:[#allocation7 + $0x1080] sm:$0xff]
    %v731 = vld [vmem:[#allocation7 + $0x1088] sm:$0xff]
    %v732 = vld [vmem:[#allocation7 + $0x1090] sm:$0xff]
    %v733 = vld [vmem:[#allocation7 + $0x1098] sm:$0xff]
    %v734 = vld [vmem:[#allocation7 + $0x10a0] sm:$0xff]
    %v735 = vld [vmem:[#allocation7 + $0x10a8] sm:$0xff]
    %v736 = vld [vmem:[#allocation7 + $0x10b0] sm:$0xff]
    %v737 = vld [vmem:[#allocation7 + $0x10b8] sm:$0xff]
    %v738 = vld [vmem:[#allocation7 + $0x10c0] sm:$0xff]
    %v739 = vld [vmem:[#allocation7 + $0x10c8] sm:$0xff]
    %v740 = vld [vmem:[#allocation7 + $0x10d0] sm:$0xff]
    %v741 = vld [vmem:[#allocation7 + $0x10d8] sm:$0xff]
    %v742 = vld [vmem:[#allocation7 + $0x10e0] sm:$0xff]
    %v743 = vld [vmem:[#allocation7 + $0x10e8] sm:$0xff]
    %v744 = vld [vmem:[#allocation7 + $0x10f0] sm:$0xff]
    %v745 = vld [vmem:[#allocation7 + $0x10f8] sm:$0xff]
    %v746 = vld [vmem:[#allocation7 + $0x1100] sm:$0xff]
    %v747 = vld [vmem:[#allocation7 + $0x1108] sm:$0xff]
    %v748 = vld [vmem:[#allocation7 + $0x1110] sm:$0xff]
    %v749 = vld [vmem:[#allocation7 + $0x1118] sm:$0xff]
    %v750 = vld [vmem:[#allocation7 + $0x1120] sm:$0xff]
    %v751 = vld [vmem:[#allocation7 + $0x1128] sm:$0xff]
    %v752 = vld [vmem:[#allocation7 + $0x1130] sm:$0xff]
    %v753 = vld [vmem:[#allocation7 + $0x1138] sm:$0xff]
    %v754 = vld [vmem:[#allocation7 + $0x1140] sm:$0xff]
    %v755 = vld [vmem:[#allocation7 + $0x1148] sm:$0xff]
    %v756 = vld [vmem:[#allocation7 + $0x1150] sm:$0xff]
    %v757 = vld [vmem:[#allocation7 + $0x1158] sm:$0xff]
    %v758 = vld [vmem:[#allocation7 + $0x1160] sm:$0xff]
    %v759 = vld [vmem:[#allocation7 + $0x1168] sm:$0xff]
    %v760 = vld [vmem:[#allocation7 + $0x1170] sm:$0xff]
    %v761 = vld [vmem:[#allocation7 + $0x1178] sm:$0xff]
    %v762 = vld [vmem:[#allocation7 + $0x1180] sm:$0xff]
    %v763 = vld [vmem:[#allocation7 + $0x1188] sm:$0xff]
    %v764 = vld [vmem:[#allocation7 + $0x1190] sm:$0xff]
    %v765 = vld [vmem:[#allocation7 + $0x1198] sm:$0xff]
    %v766 = vld [vmem:[#allocation7 + $0x11a0] sm:$0xff]
    %v767 = vld [vmem:[#allocation7 + $0x11a8] sm:$0xff]
    %v768 = vld [vmem:[#allocation7 + $0x11b0] sm:$0xff]
    %v769 = vld [vmem:[#allocation7 + $0x11b8] sm:$0xff]
    %v770 = vld [vmem:[#allocation7 + $0x11c0] sm:$0xff]
    %v771 = vld [vmem:[#allocation7 + $0x11c8] sm:$0xff]
    %v772 = vld [vmem:[#allocation7 + $0x11d0] sm:$0xff]
    %v773 = vld [vmem:[#allocation7 + $0x11d8] sm:$0xff]
    %v774 = vld [vmem:[#allocation7 + $0x11e0] sm:$0xff]
    %v775 = vld [vmem:[#allocation7 + $0x11e8] sm:$0xff]
    %v776 = vld [vmem:[#allocation7 + $0x11f0] sm:$0xff]
    %v777 = vld [vmem:[#allocation7 + $0x11f8] sm:$0xff]
    %v778 = vld [vmem:[#allocation7 + $0x1200] sm:$0xff]
    %v779 = vld [vmem:[#allocation7 + $0x1208] sm:$0xff]
    %v780 = vld [vmem:[#allocation7 + $0x1210] sm:$0xff]
    %v781 = vld [vmem:[#allocation7 + $0x1218] sm:$0xff]
    %v782 = vld [vmem:[#allocation7 + $0x1220] sm:$0xff]
    %v783 = vld [vmem:[#allocation7 + $0x1228] sm:$0xff]
    %v784 = vld [vmem:[#allocation7 + $0x1230] sm:$0xff]
    %v785 = vld [vmem:[#allocation7 + $0x1238] sm:$0xff]
    %v786 = vld [vmem:[#allocation7 + $0x1240] sm:$0xff]
    %v787 = vld [vmem:[#allocation7 + $0x1248] sm:$0xff]
    %v788 = vld [vmem:[#allocation7 + $0x1250] sm:$0xff]
    %v789 = vld [vmem:[#allocation7 + $0x1258] sm:$0xff]
    %v790 = vld [vmem:[#allocation7 + $0x1260] sm:$0xff]
    %v791 = vld [vmem:[#allocation7 + $0x1268] sm:$0xff]
    %v792 = vld [vmem:[#allocation7 + $0x1270] sm:$0xff]
    %v793 = vld [vmem:[#allocation7 + $0x1278] sm:$0xff]
    %v794 = vld [vmem:[#allocation7 + $0x1280] sm:$0xff]
    %v795 = vld [vmem:[#allocation7 + $0x1288] sm:$0xff]
    %v796 = vld [vmem:[#allocation7 + $0x1290] sm:$0xff]
    %v797 = vld [vmem:[#allocation7 + $0x1298] sm:$0xff]
    %v798 = vld [vmem:[#allocation7 + $0x12a0] sm:$0xff]
    %v799 = vld [vmem:[#allocation7 + $0x12a8] sm:$0xff]
    %v800 = vld [vmem:[#allocation7 + $0x12b0] sm:$0xff]
    %v801 = vld [vmem:[#allocation7 + $0x12b8] sm:$0xff]
    %v802 = vld [vmem:[#allocation7 + $0x12c0] sm:$0xff]
    %v803 = vld [vmem:[#allocation7 + $0x12c8] sm:$0xff]
    %v804 = vld [vmem:[#allocation7 + $0x12d0] sm:$0xff]
    %v805 = vld [vmem:[#allocation7 + $0x12d8] sm:$0xff]
    %v806 = vld [vmem:[#allocation7 + $0x12e0] sm:$0xff]
    %v807 = vld [vmem:[#allocation7 + $0x12e8] sm:$0xff]
    %v808 = vld [vmem:[#allocation7 + $0x12f0] sm:$0xff]
    %v809 = vld [vmem:[#allocation7 + $0x12f8] sm:$0xff]
    %v810 = vld [vmem:[#allocation7 + $0x1300] sm:$0xff]
    %v811 = vld [vmem:[#allocation7 + $0x1308] sm:$0xff]
    %v812 = vld [vmem:[#allocation7 + $0x1310] sm:$0xff]
    %v813 = vld [vmem:[#allocation7 + $0x1318] sm:$0xff]
    %v814 = vld [vmem:[#allocation7 + $0x1320] sm:$0xff]
    %v815 = vld [vmem:[#allocation7 + $0x1328] sm:$0xff]
    %v816 = vld [vmem:[#allocation7 + $0x1330] sm:$0xff]
    %v817 = vld [vmem:[#allocation7 + $0x1338] sm:$0xff]
    %v818 = vld [vmem:[#allocation7 + $0x1340] sm:$0xff]
    %v819 = vld [vmem:[#allocation7 + $0x1348] sm:$0xff]
    %v820 = vld [vmem:[#allocation7 + $0x1350] sm:$0xff]
    %v821 = vld [vmem:[#allocation7 + $0x1358] sm:$0xff]
    %v822 = vld [vmem:[#allocation7 + $0x1360] sm:$0xff]
    %v823 = vld [vmem:[#allocation7 + $0x1368] sm:$0xff]
    %v824 = vld [vmem:[#allocation7 + $0x1370] sm:$0xff]
    %v825 = vld [vmem:[#allocation7 + $0x1378] sm:$0xff]
    %v826 = vld [vmem:[#allocation7 + $0x1380] sm:$0xff]
    %v827 = vld [vmem:[#allocation7 + $0x1388] sm:$0xff]
    %v828 = vld [vmem:[#allocation7 + $0x1390] sm:$0xff]
    %v829 = vld [vmem:[#allocation7 + $0x1398] sm:$0xff]
    %v830 = vld [vmem:[#allocation7 + $0x13a0] sm:$0xff]
    %v831 = vld [vmem:[#allocation7 + $0x13a8] sm:$0xff]
    %v832 = vld [vmem:[#allocation7 + $0x13b0] sm:$0xff]
    %v833 = vld [vmem:[#allocation7 + $0x13b8] sm:$0xff]
    %v834 = vld [vmem:[#allocation7 + $0x13c0] sm:$0xff]
    %v835 = vld [vmem:[#allocation7 + $0x13c8] sm:$0xff]
    %v836 = vld [vmem:[#allocation7 + $0x13d0] sm:$0xff]
    %v837 = vld [vmem:[#allocation7 + $0x13d8] sm:$0xff]
    %v838 = vld [vmem:[#allocation7 + $0x13e0] sm:$0xff]
    %v839 = vld [vmem:[#allocation7 + $0x13e8] sm:$0xff]
    %v840 = vld [vmem:[#allocation7 + $0x13f0] sm:$0xff]
    %v841 = vld [vmem:[#allocation7 + $0x13f8] sm:$0xff]
    %v842 = vld [vmem:[#allocation7 + $0x1400] sm:$0xff]
    %v843 = vld [vmem:[#allocation7 + $0x1408] sm:$0xff]
    %v844 = vld [vmem:[#allocation7 + $0x1410] sm:$0xff]
    %v845 = vld [vmem:[#allocation7 + $0x1418] sm:$0xff]
    %v846 = vld [vmem:[#allocation7 + $0x1420] sm:$0xff]
    %v847 = vld [vmem:[#allocation7 + $0x1428] sm:$0xff]
    %v848 = vld [vmem:[#allocation7 + $0x1430] sm:$0xff]
    %v849 = vld [vmem:[#allocation7 + $0x1438] sm:$0xff]
    %v850 = vld [vmem:[#allocation7 + $0x1440] sm:$0xff]
    %v851 = vld [vmem:[#allocation7 + $0x1448] sm:$0xff]
    %v852 = vld [vmem:[#allocation7 + $0x1450] sm:$0xff]
    %v853 = vld [vmem:[#allocation7 + $0x1458] sm:$0xff]
    %v854 = vld [vmem:[#allocation7 + $0x1460] sm:$0xff]
    %v855 = vld [vmem:[#allocation7 + $0x1468] sm:$0xff]
    %v856 = vld [vmem:[#allocation7 + $0x1470] sm:$0xff]
    %v857 = vld [vmem:[#allocation7 + $0x1478] sm:$0xff]
    %v858 = vld [vmem:[#allocation7 + $0x1480] sm:$0xff]
    %v859 = vld [vmem:[#allocation7 + $0x1488] sm:$0xff]
    %v860 = vld [vmem:[#allocation7 + $0x1490] sm:$0xff]
    %v861 = vld [vmem:[#allocation7 + $0x1498] sm:$0xff]
    %v862 = vld [vmem:[#allocation7 + $0x14a0] sm:$0xff]
    %v863 = vld [vmem:[#allocation7 + $0x14a8] sm:$0xff]
    %v864 = vld [vmem:[#allocation7 + $0x14b0] sm:$0xff]
    %v865 = vld [vmem:[#allocation7 + $0x14b8] sm:$0xff]
    %v866 = vld [vmem:[#allocation7 + $0x14c0] sm:$0xff]
    %v867 = vld [vmem:[#allocation7 + $0x14c8] sm:$0xff]
    %v868 = vld [vmem:[#allocation7 + $0x14d0] sm:$0xff]
    %v869 = vld [vmem:[#allocation7 + $0x14d8] sm:$0xff]
    %v870 = vld [vmem:[#allocation7 + $0x14e0] sm:$0xff]
    %v871 = vld [vmem:[#allocation7 + $0x14e8] sm:$0xff]
    %v872 = vld [vmem:[#allocation7 + $0x14f0] sm:$0xff]
    %v873 = vld [vmem:[#allocation7 + $0x14f8] sm:$0xff]
    %v874 = vld [vmem:[#allocation7 + $0x1500] sm:$0xff]
    %v875 = vld [vmem:[#allocation7 + $0x1508] sm:$0xff]
    %v876 = vld [vmem:[#allocation7 + $0x1510] sm:$0xff]
    %v877 = vld [vmem:[#allocation7 + $0x1518] sm:$0xff]
    %v878 = vld [vmem:[#allocation7 + $0x1520] sm:$0xff]
    %v879 = vld [vmem:[#allocation7 + $0x1528] sm:$0xff]
    %v880 = vld [vmem:[#allocation7 + $0x1530] sm:$0xff]
    %v881 = vld [vmem:[#allocation7 + $0x1538] sm:$0xff]
    %v882 = vld [vmem:[#allocation7 + $0x1540] sm:$0xff]
    %v883 = vld [vmem:[#allocation7 + $0x1548] sm:$0xff]
    %v884 = vld [vmem:[#allocation7 + $0x1550] sm:$0xff]
    %v885 = vld [vmem:[#allocation7 + $0x1558] sm:$0xff]
    %v886 = vld [vmem:[#allocation7 + $0x1560] sm:$0xff]
    %v887 = vld [vmem:[#allocation7 + $0x1568] sm:$0xff]
    %v888 = vld [vmem:[#allocation7 + $0x1570] sm:$0xff]
    %v889 = vld [vmem:[#allocation7 + $0x1578] sm:$0xff]
    %v890 = vld [vmem:[#allocation7 + $0x1580] sm:$0xff]
    %v891 = vld [vmem:[#allocation7 + $0x1588] sm:$0xff]
    %v892 = vld [vmem:[#allocation7 + $0x1590] sm:$0xff]
    %v893 = vld [vmem:[#allocation7 + $0x1598] sm:$0xff]
    %v894 = vld [vmem:[#allocation7 + $0x15a0] sm:$0xff]
    %v895 = vld [vmem:[#allocation7 + $0x15a8] sm:$0xff]
    %v896 = vld [vmem:[#allocation7 + $0x15b0] sm:$0xff]
    %v897 = vld [vmem:[#allocation7 + $0x15b8] sm:$0xff]
    %v898 = vld [vmem:[#allocation7 + $0x15c0] sm:$0xff]
    %v899 = vld [vmem:[#allocation7 + $0x15c8] sm:$0xff]
    %v900 = vld [vmem:[#allocation7 + $0x15d0] sm:$0xff]
    %v901 = vld [vmem:[#allocation7 + $0x15d8] sm:$0xff]
    %v902 = vld [vmem:[#allocation7 + $0x15e0] sm:$0xff]
    %v903 = vld [vmem:[#allocation7 + $0x15e8] sm:$0xff]
    %v904 = vld [vmem:[#allocation7 + $0x15f0] sm:$0xff]
    %v905 = vld [vmem:[#allocation7 + $0x15f8] sm:$0xff]
    %v906 = vld [vmem:[#allocation7 + $0x1600] sm:$0xff]
    %v907 = vld [vmem:[#allocation7 + $0x1608] sm:$0xff]
    %v908 = vld [vmem:[#allocation7 + $0x1610] sm:$0xff]
    %v909 = vld [vmem:[#allocation7 + $0x1618] sm:$0xff]
    %v910 = vld [vmem:[#allocation7 + $0x1620] sm:$0xff]
    %v911 = vld [vmem:[#allocation7 + $0x1628] sm:$0xff]
    %v912 = vld [vmem:[#allocation7 + $0x1630] sm:$0xff]
    %v913 = vld [vmem:[#allocation7 + $0x1638] sm:$0xff]
    %v914 = vld [vmem:[#allocation7 + $0x1640] sm:$0xff]
    %v915 = vld [vmem:[#allocation7 + $0x1648] sm:$0xff]
    %v916 = vld [vmem:[#allocation7 + $0x1650] sm:$0xff]
    %v917 = vld [vmem:[#allocation7 + $0x1658] sm:$0xff]
    %v918 = vld [vmem:[#allocation7 + $0x1660] sm:$0xff]
    %v919 = vld [vmem:[#allocation7 + $0x1668] sm:$0xff]
    %v920 = vld [vmem:[#allocation7 + $0x1670] sm:$0xff]
    %v921 = vld [vmem:[#allocation7 + $0x1678] sm:$0xff]
    %v922 = vld [vmem:[#allocation7 + $0x1680] sm:$0xff]
    %v923 = vld [vmem:[#allocation7 + $0x1688] sm:$0xff]
    %v924 = vld [vmem:[#allocation7 + $0x1690] sm:$0xff]
    %v925 = vld [vmem:[#allocation7 + $0x1698] sm:$0xff]
    %v926 = vld [vmem:[#allocation7 + $0x16a0] sm:$0xff]
    %v927 = vld [vmem:[#allocation7 + $0x16a8] sm:$0xff]
    %v928 = vld [vmem:[#allocation7 + $0x16b0] sm:$0xff]
    %v929 = vld [vmem:[#allocation7 + $0x16b8] sm:$0xff]
    %v930 = vld [vmem:[#allocation7 + $0x16c0] sm:$0xff]
    %v931 = vld [vmem:[#allocation7 + $0x16c8] sm:$0xff]
    %v932 = vld [vmem:[#allocation7 + $0x16d0] sm:$0xff]
    %v933 = vld [vmem:[#allocation7 + $0x16d8] sm:$0xff]
    %v934 = vld [vmem:[#allocation7 + $0x16e0] sm:$0xff]
    %v935 = vld [vmem:[#allocation7 + $0x16e8] sm:$0xff]
    %v936 = vld [vmem:[#allocation7 + $0x16f0] sm:$0xff]
    %v937 = vld [vmem:[#allocation7 + $0x16f8] sm:$0xff]
    %v938 = vld [vmem:[#allocation7 + $0x1700] sm:$0xff]
    %v939 = vld [vmem:[#allocation7 + $0x1708] sm:$0xff]
    %v940 = vld [vmem:[#allocation7 + $0x1710] sm:$0xff]
    %v941 = vld [vmem:[#allocation7 + $0x1718] sm:$0xff]
    %v942 = vld [vmem:[#allocation7 + $0x1720] sm:$0xff]
    %v943 = vld [vmem:[#allocation7 + $0x1728] sm:$0xff]
    %v944 = vld [vmem:[#allocation7 + $0x1730] sm:$0xff]
    %v945 = vld [vmem:[#allocation7 + $0x1738] sm:$0xff]
    %v946 = vld [vmem:[#allocation7 + $0x1740] sm:$0xff]
    %v947 = vld [vmem:[#allocation7 + $0x1748] sm:$0xff]
    %v948 = vld [vmem:[#allocation7 + $0x1750] sm:$0xff]
    %v949 = vld [vmem:[#allocation7 + $0x1758] sm:$0xff]
    %v950 = vld [vmem:[#allocation7 + $0x1760] sm:$0xff]
    %v951 = vld [vmem:[#allocation7 + $0x1768] sm:$0xff]
    %v952 = vld [vmem:[#allocation7 + $0x1770] sm:$0xff]
    %v953 = vld [vmem:[#allocation7 + $0x1778] sm:$0xff]
    %v954 = vld [vmem:[#allocation7 + $0x1780] sm:$0xff]
    %v955 = vld [vmem:[#allocation7 + $0x1788] sm:$0xff]
    %v956 = vld [vmem:[#allocation7 + $0x1790] sm:$0xff]
    %v957 = vld [vmem:[#allocation7 + $0x1798] sm:$0xff]
    %v958 = vld [vmem:[#allocation7 + $0x17a0] sm:$0xff]
    %v959 = vld [vmem:[#allocation7 + $0x17a8] sm:$0xff]
    %v960 = vld [vmem:[#allocation7 + $0x17b0] sm:$0xff]
    %v961 = vld [vmem:[#allocation7 + $0x17b8] sm:$0xff]
    %v962 = vld [vmem:[#allocation7 + $0x17c0] sm:$0xff]
    %v963 = vld [vmem:[#allocation7 + $0x17c8] sm:$0xff]
    %v964 = vld [vmem:[#allocation7 + $0x17d0] sm:$0xff]
    %v965 = vld [vmem:[#allocation7 + $0x17d8] sm:$0xff]
    %v966 = vld [vmem:[#allocation7 + $0x17e0] sm:$0xff]
    %v967 = vld [vmem:[#allocation7 + $0x17e8] sm:$0xff]
    %v968 = vld [vmem:[#allocation7 + $0x17f0] sm:$0xff]
    %v969 = vld [vmem:[#allocation7 + $0x17f8] sm:$0xff]
    %v970 = vld [vmem:[#allocation7 + $0x1800] sm:$0xff]
    %v971 = vld [vmem:[#allocation7 + $0x1808] sm:$0xff]
    %v972 = vld [vmem:[#allocation7 + $0x1810] sm:$0xff]
    %v973 = vld [vmem:[#allocation7 + $0x1818] sm:$0xff]
    %v974 = vld [vmem:[#allocation7 + $0x1820] sm:$0xff]
    %v975 = vld [vmem:[#allocation7 + $0x1828] sm:$0xff]
    %v976 = vld [vmem:[#allocation7 + $0x1830] sm:$0xff]
    %v977 = vld [vmem:[#allocation7 + $0x1838] sm:$0xff]
    %v978 = vld [vmem:[#allocation7 + $0x1840] sm:$0xff]
    %v979 = vld [vmem:[#allocation7 + $0x1848] sm:$0xff]
    %v980 = vld [vmem:[#allocation7 + $0x1850] sm:$0xff]
    %v981 = vld [vmem:[#allocation7 + $0x1858] sm:$0xff]
    %v982 = vld [vmem:[#allocation7 + $0x1860] sm:$0xff]
    %v983 = vld [vmem:[#allocation7 + $0x1868] sm:$0xff]
    %v984 = vld [vmem:[#allocation7 + $0x1870] sm:$0xff]
    %v985 = vld [vmem:[#allocation7 + $0x1878] sm:$0xff]
    %v986 = vld [vmem:[#allocation7 + $0x1880] sm:$0xff]
    %v987 = vld [vmem:[#allocation7 + $0x1888] sm:$0xff]
    %v988 = vld [vmem:[#allocation7 + $0x1890] sm:$0xff]
    %v989 = vld [vmem:[#allocation7 + $0x1898] sm:$0xff]
    %v990 = vld [vmem:[#allocation7 + $0x18a0] sm:$0xff]
    %v991 = vld [vmem:[#allocation7 + $0x18a8] sm:$0xff]
    %v992 = vld [vmem:[#allocation7 + $0x18b0] sm:$0xff]
    %v993 = vld [vmem:[#allocation7 + $0x18b8] sm:$0xff]
    %v994 = vld [vmem:[#allocation7 + $0x18c0] sm:$0xff]
    %v995 = vld [vmem:[#allocation7 + $0x18c8] sm:$0xff]
    %v996 = vld [vmem:[#allocation7 + $0x18d0] sm:$0xff]
    %v997 = vld [vmem:[#allocation7 + $0x18d8] sm:$0xff]
    %v998 = vld [vmem:[#allocation7 + $0x18e0] sm:$0xff]
    %v999 = vld [vmem:[#allocation7 + $0x18e8] sm:$0xff]
    %v1000 = vld [vmem:[#allocation7 + $0x18f0] sm:$0xff]
    %v1001 = vld [vmem:[#allocation7 + $0x18f8] sm:$0xff]
    %v1002 = vld [vmem:[#allocation7 + $0x1900] sm:$0xff]
    %v1003 = vld [vmem:[#allocation7 + $0x1908] sm:$0xff]
    %v1004 = vld [vmem:[#allocation7 + $0x1910] sm:$0xff]
    %v1005 = vld [vmem:[#allocation7 + $0x1918] sm:$0xff]
    %v1006 = vld [vmem:[#allocation7 + $0x1920] sm:$0xff]
    %v1007 = vld [vmem:[#allocation7 + $0x1928] sm:$0xff]
    %v1008 = vld [vmem:[#allocation7 + $0x1930] sm:$0xff]
    %v1009 = vld [vmem:[#allocation7 + $0x1938] sm:$0xff]
    %v1010 = vld [vmem:[#allocation7 + $0x1940] sm:$0xff]
    %v1011 = vld [vmem:[#allocation7 + $0x1948] sm:$0xff]
    %v1012 = vld [vmem:[#allocation7 + $0x1950] sm:$0xff]
    %v1013 = vld [vmem:[#allocation7 + $0x1958] sm:$0xff]
    %v1014 = vld [vmem:[#allocation7 + $0x1960] sm:$0xff]
    %v1015 = vld [vmem:[#allocation7 + $0x1968] sm:$0xff]
    %v1016 = vld [vmem:[#allocation7 + $0x1970] sm:$0xff]
    %v1017 = vld [vmem:[#allocation7 + $0x1978] sm:$0xff]
    %v1018 = vld [vmem:[#allocation7 + $0x1980] sm:$0xff]
    %v1019 = vld [vmem:[#allocation7 + $0x1988] sm:$0xff]
    %v1020 = vld [vmem:[#allocation7 + $0x1990] sm:$0xff]
    %v1021 = vld [vmem:[#allocation7 + $0x1998] sm:$0xff]
    %v1022 = vld [vmem:[#allocation7 + $0x19a0] sm:$0xff]
    %v1023 = vld [vmem:[#allocation7 + $0x19a8] sm:$0xff]
    %v1024 = vld [vmem:[#allocation7 + $0x19b0] sm:$0xff]
    %v1025 = vld [vmem:[#allocation7 + $0x19b8] sm:$0xff]
    %v1026 = vld [vmem:[#allocation7 + $0x19c0] sm:$0xff]
    %v1027 = vld [vmem:[#allocation7 + $0x19c8] sm:$0xff]
    %v1028 = vld [vmem:[#allocation7 + $0x19d0] sm:$0xff]
    %v1029 = vld [vmem:[#allocation7 + $0x19d8] sm:$0xff]
    %v1030 = vld [vmem:[#allocation7 + $0x19e0] sm:$0xff]
    %v1031 = vld [vmem:[#allocation7 + $0x19e8] sm:$0xff]
    %v1032 = vld [vmem:[#allocation7 + $0x19f0] sm:$0xff]
    %v1033 = vld [vmem:[#allocation7 + $0x19f8] sm:$0xff]
    %v1034 = vld [vmem:[#allocation7 + $0x1a00] sm:$0xff]
    %v1035 = vld [vmem:[#allocation7 + $0x1a08] sm:$0xff]
    %v1036 = vld [vmem:[#allocation7 + $0x1a10] sm:$0xff]
    %v1037 = vld [vmem:[#allocation7 + $0x1a18] sm:$0xff]
    %v1038 = vld [vmem:[#allocation7 + $0x1a20] sm:$0xff]
    %v1039 = vld [vmem:[#allocation7 + $0x1a28] sm:$0xff]
    %v1040 = vld [vmem:[#allocation7 + $0x1a30] sm:$0xff]
    %v1041 = vld [vmem:[#allocation7 + $0x1a38] sm:$0xff]
    %v1042 = vld [vmem:[#allocation7 + $0x1a40] sm:$0xff]
    %v1043 = vld [vmem:[#allocation7 + $0x1a48] sm:$0xff]
    %v1044 = vld [vmem:[#allocation7 + $0x1a50] sm:$0xff]
    %v1045 = vld [vmem:[#allocation7 + $0x1a58] sm:$0xff]
    %v1046 = vld [vmem:[#allocation7 + $0x1a60] sm:$0xff]
    %v1047 = vld [vmem:[#allocation7 + $0x1a68] sm:$0xff]
    %v1048 = vld [vmem:[#allocation7 + $0x1a70] sm:$0xff]
    %v1049 = vld [vmem:[#allocation7 + $0x1a78] sm:$0xff]
    %v1050 = vld [vmem:[#allocation7 + $0x1a80] sm:$0xff]
    %v1051 = vld [vmem:[#allocation7 + $0x1a88] sm:$0xff]
    %v1052 = vld [vmem:[#allocation7 + $0x1a90] sm:$0xff]
    %v1053 = vld [vmem:[#allocation7 + $0x1a98] sm:$0xff]
    %v1054 = vld [vmem:[#allocation7 + $0x1aa0] sm:$0xff]
    %v1055 = vld [vmem:[#allocation7 + $0x1aa8] sm:$0xff]
    %v1056 = vld [vmem:[#allocation7 + $0x1ab0] sm:$0xff]
    %v1057 = vld [vmem:[#allocation7 + $0x1ab8] sm:$0xff]
    %v1058 = vld [vmem:[#allocation7 + $0x1ac0] sm:$0xff]
    %v1059 = vld [vmem:[#allocation7 + $0x1ac8] sm:$0xff]
    %v1060 = vld [vmem:[#allocation7 + $0x1ad0] sm:$0xff]
    %v1061 = vld [vmem:[#allocation7 + $0x1ad8] sm:$0xff]
    %v1062 = vld [vmem:[#allocation7 + $0x1ae0] sm:$0xff]
    %v1063 = vld [vmem:[#allocation7 + $0x1ae8] sm:$0xff]
    %v1064 = vld [vmem:[#allocation7 + $0x1af0] sm:$0xff]
    %v1065 = vld [vmem:[#allocation7 + $0x1af8] sm:$0xff]
    %v1066 = vld [vmem:[#allocation7 + $0x1b00] sm:$0xff]
    %v1067 = vld [vmem:[#allocation7 + $0x1b08] sm:$0xff]
    %v1068 = vld [vmem:[#allocation7 + $0x1b10] sm:$0xff]
    %v1069 = vld [vmem:[#allocation7 + $0x1b18] sm:$0xff]
    %v1070 = vld [vmem:[#allocation7 + $0x1b20] sm:$0xff]
    %v1071 = vld [vmem:[#allocation7 + $0x1b28] sm:$0xff]
    %v1072 = vld [vmem:[#allocation7 + $0x1b30] sm:$0xff]
    %v1073 = vld [vmem:[#allocation7 + $0x1b38] sm:$0xff]
    %v1074 = vld [vmem:[#allocation7 + $0x1b40] sm:$0xff]
    %v1075 = vld [vmem:[#allocation7 + $0x1b48] sm:$0xff]
    %v1076 = vld [vmem:[#allocation7 + $0x1b50] sm:$0xff]
    %v1077 = vld [vmem:[#allocation7 + $0x1b58] sm:$0xff]
    %v1078 = vld [vmem:[#allocation7 + $0x1b60] sm:$0xff]
    %v1079 = vld [vmem:[#allocation7 + $0x1b68] sm:$0xff]
    %v1080 = vld [vmem:[#allocation7 + $0x1b70] sm:$0xff]
    %v1081 = vld [vmem:[#allocation7 + $0x1b78] sm:$0xff]
    %v1082 = vld [vmem:[#allocation7 + $0x1b80] sm:$0xff]
    %v1083 = vld [vmem:[#allocation7 + $0x1b88] sm:$0xff]
    %v1084 = vld [vmem:[#allocation7 + $0x1b90] sm:$0xff]
    %v1085 = vld [vmem:[#allocation7 + $0x1b98] sm:$0xff]
    %v1086 = vld [vmem:[#allocation7 + $0x1ba0] sm:$0xff]
    %v1087 = vld [vmem:[#allocation7 + $0x1ba8] sm:$0xff]
    %v1088 = vld [vmem:[#allocation7 + $0x1bb0] sm:$0xff]
    %v1089 = vld [vmem:[#allocation7 + $0x1bb8] sm:$0xff]
    %v1090 = vld [vmem:[#allocation7 + $0x1bc0] sm:$0xff]
    %v1091 = vld [vmem:[#allocation7 + $0x1bc8] sm:$0xff]
    %v1092 = vld [vmem:[#allocation7 + $0x1bd0] sm:$0xff]
    %v1093 = vld [vmem:[#allocation7 + $0x1bd8] sm:$0xff]
    %v1094 = vld [vmem:[#allocation7 + $0x1be0] sm:$0xff]
    %v1095 = vld [vmem:[#allocation7 + $0x1be8] sm:$0xff]
    %v1096 = vld [vmem:[#allocation7 + $0x1bf0] sm:$0xff]
    %v1097 = vld [vmem:[#allocation7 + $0x1bf8] sm:$0xff]
    %v1098 = vld [vmem:[#allocation7 + $0x1c00] sm:$0xff]
    %v1099 = vld [vmem:[#allocation7 + $0x1c08] sm:$0xff]
    %v1100 = vld [vmem:[#allocation7 + $0x1c10] sm:$0xff]
    %v1101 = vld [vmem:[#allocation7 + $0x1c18] sm:$0xff]
    %v1102 = vld [vmem:[#allocation7 + $0x1c20] sm:$0xff]
    %v1103 = vld [vmem:[#allocation7 + $0x1c28] sm:$0xff]
    %v1104 = vld [vmem:[#allocation7 + $0x1c30] sm:$0xff]
    %v1105 = vld [vmem:[#allocation7 + $0x1c38] sm:$0xff]
    %v1106 = vld [vmem:[#allocation7 + $0x1c40] sm:$0xff]
    %v1107 = vld [vmem:[#allocation7 + $0x1c48] sm:$0xff]
    %v1108 = vld [vmem:[#allocation7 + $0x1c50] sm:$0xff]
    %v1109 = vld [vmem:[#allocation7 + $0x1c58] sm:$0xff]
    %v1110 = vld [vmem:[#allocation7 + $0x1c60] sm:$0xff]
    %v1111 = vld [vmem:[#allocation7 + $0x1c68] sm:$0xff]
    %v1112 = vld [vmem:[#allocation7 + $0x1c70] sm:$0xff]
    %v1113 = vld [vmem:[#allocation7 + $0x1c78] sm:$0xff]
    %v1114 = vld [vmem:[#allocation7 + $0x1c80] sm:$0xff]
    %v1115 = vld [vmem:[#allocation7 + $0x1c88] sm:$0xff]
    %v1116 = vld [vmem:[#allocation7 + $0x1c90] sm:$0xff]
    %v1117 = vld [vmem:[#allocation7 + $0x1c98] sm:$0xff]
    %v1118 = vld [vmem:[#allocation7 + $0x1ca0] sm:$0xff]
    %v1119 = vld [vmem:[#allocation7 + $0x1ca8] sm:$0xff]
    %v1120 = vld [vmem:[#allocation7 + $0x1cb0] sm:$0xff]
    %v1121 = vld [vmem:[#allocation7 + $0x1cb8] sm:$0xff]
    %v1122 = vld [vmem:[#allocation7 + $0x1cc0] sm:$0xff]
    %v1123 = vld [vmem:[#allocation7 + $0x1cc8] sm:$0xff]
    %v1124 = vld [vmem:[#allocation7 + $0x1cd0] sm:$0xff]
    %v1125 = vld [vmem:[#allocation7 + $0x1cd8] sm:$0xff]
    %v1126 = vld [vmem:[#allocation7 + $0x1ce0] sm:$0xff]
    %v1127 = vld [vmem:[#allocation7 + $0x1ce8] sm:$0xff]
    %v1128 = vld [vmem:[#allocation7 + $0x1cf0] sm:$0xff]
    %v1129 = vld [vmem:[#allocation7 + $0x1cf8] sm:$0xff]
    %v1130 = vld [vmem:[#allocation7 + $0x1d00] sm:$0xff]
    %v1131 = vld [vmem:[#allocation7 + $0x1d08] sm:$0xff]
    %v1132 = vld [vmem:[#allocation7 + $0x1d10] sm:$0xff]
    %v1133 = vld [vmem:[#allocation7 + $0x1d18] sm:$0xff]
    %v1134 = vld [vmem:[#allocation7 + $0x1d20] sm:$0xff]
    %v1135 = vld [vmem:[#allocation7 + $0x1d28] sm:$0xff]
    %v1136 = vld [vmem:[#allocation7 + $0x1d30] sm:$0xff]
    %v1137 = vld [vmem:[#allocation7 + $0x1d38] sm:$0xff]
    %v1138 = vld [vmem:[#allocation7 + $0x1d40] sm:$0xff]
    %v1139 = vld [vmem:[#allocation7 + $0x1d48] sm:$0xff]
    %v1140 = vld [vmem:[#allocation7 + $0x1d50] sm:$0xff]
    %v1141 = vld [vmem:[#allocation7 + $0x1d58] sm:$0xff]
    %v1142 = vld [vmem:[#allocation7 + $0x1d60] sm:$0xff]
    %v1143 = vld [vmem:[#allocation7 + $0x1d68] sm:$0xff]
    %v1144 = vld [vmem:[#allocation7 + $0x1d70] sm:$0xff]
    %v1145 = vld [vmem:[#allocation7 + $0x1d78] sm:$0xff]
    %v1146 = vld [vmem:[#allocation7 + $0x1d80] sm:$0xff]
    %v1147 = vld [vmem:[#allocation7 + $0x1d88] sm:$0xff]
    %v1148 = vld [vmem:[#allocation7 + $0x1d90] sm:$0xff]
    %v1149 = vld [vmem:[#allocation7 + $0x1d98] sm:$0xff]
    %v1150 = vld [vmem:[#allocation7 + $0x1da0] sm:$0xff]
    %v1151 = vld [vmem:[#allocation7 + $0x1da8] sm:$0xff]
    %v1152 = vld [vmem:[#allocation7 + $0x1db0] sm:$0xff]
    %v1153 = vld [vmem:[#allocation7 + $0x1db8] sm:$0xff]
    %v1154 = vld [vmem:[#allocation7 + $0x1dc0] sm:$0xff]
    %v1155 = vld [vmem:[#allocation7 + $0x1dc8] sm:$0xff]
    %v1156 = vld [vmem:[#allocation7 + $0x1dd0] sm:$0xff]
    %v1157 = vld [vmem:[#allocation7 + $0x1dd8] sm:$0xff]
    %v1158 = vld [vmem:[#allocation7 + $0x1de0] sm:$0xff]
    %v1159 = vld [vmem:[#allocation7 + $0x1de8] sm:$0xff]
    %v1160 = vld [vmem:[#allocation7 + $0x1df0] sm:$0xff]
    %v1161 = vld [vmem:[#allocation7 + $0x1df8] sm:$0xff]
    %v1162 = vld [vmem:[#allocation7 + $0x1e00] sm:$0xff]
    %v1163 = vld [vmem:[#allocation7 + $0x1e08] sm:$0xff]
    %v1164 = vld [vmem:[#allocation7 + $0x1e10] sm:$0xff]
    %v1165 = vld [vmem:[#allocation7 + $0x1e18] sm:$0xff]
    %v1166 = vld [vmem:[#allocation7 + $0x1e20] sm:$0xff]
    %v1167 = vld [vmem:[#allocation7 + $0x1e28] sm:$0xff]
    %v1168 = vld [vmem:[#allocation7 + $0x1e30] sm:$0xff]
    %v1169 = vld [vmem:[#allocation7 + $0x1e38] sm:$0xff]
    %v1170 = vld [vmem:[#allocation7 + $0x1e40] sm:$0xff]
    %v1171 = vld [vmem:[#allocation7 + $0x1e48] sm:$0xff]
    %v1172 = vld [vmem:[#allocation7 + $0x1e50] sm:$0xff]
    %v1173 = vld [vmem:[#allocation7 + $0x1e58] sm:$0xff]
    %v1174 = vld [vmem:[#allocation7 + $0x1e60] sm:$0xff]
    %v1175 = vld [vmem:[#allocation7 + $0x1e68] sm:$0xff]
    %v1176 = vld [vmem:[#allocation7 + $0x1e70] sm:$0xff]
    %v1177 = vld [vmem:[#allocation7 + $0x1e78] sm:$0xff]
    %v1178 = vld [vmem:[#allocation7 + $0x1e80] sm:$0xff]
    %v1179 = vld [vmem:[#allocation7 + $0x1e88] sm:$0xff]
    %v1180 = vld [vmem:[#allocation7 + $0x1e90] sm:$0xff]
    %v1181 = vld [vmem:[#allocation7 + $0x1e98] sm:$0xff]
    %v1182 = vld [vmem:[#allocation7 + $0x1ea0] sm:$0xff]
    %v1183 = vld [vmem:[#allocation7 + $0x1ea8] sm:$0xff]
    %v1184 = vld [vmem:[#allocation7 + $0x1eb0] sm:$0xff]
    %v1185 = vld [vmem:[#allocation7 + $0x1eb8] sm:$0xff]
    %v1186 = vld [vmem:[#allocation7 + $0x1ec0] sm:$0xff]
    %v1187 = vld [vmem:[#allocation7 + $0x1ec8] sm:$0xff]
    %v1188 = vld [vmem:[#allocation7 + $0x1ed0] sm:$0xff]
    %v1189 = vld [vmem:[#allocation7 + $0x1ed8] sm:$0xff]
    %v1190 = vld [vmem:[#allocation7 + $0x1ee0] sm:$0xff]
    %v1191 = vld [vmem:[#allocation7 + $0x1ee8] sm:$0xff]
    %v1192 = vld [vmem:[#allocation7 + $0x1ef0] sm:$0xff]
    %v1193 = vld [vmem:[#allocation7 + $0x1ef8] sm:$0xff]
    %v1194 = vld [vmem:[#allocation7 + $0x1f00] sm:$0xff]
    %v1195 = vld [vmem:[#allocation7 + $0x1f08] sm:$0xff]
    %v1196 = vld [vmem:[#allocation7 + $0x1f10] sm:$0xff]
    %v1197 = vld [vmem:[#allocation7 + $0x1f18] sm:$0xff]
    %v1198 = vld [vmem:[#allocation7 + $0x1f20] sm:$0xff]
    %v1199 = vld [vmem:[#allocation7 + $0x1f28] sm:$0xff]
    %v1200 = vld [vmem:[#allocation7 + $0x1f30] sm:$0xff]
    %v1201 = vld [vmem:[#allocation7 + $0x1f38] sm:$0xff]
    %v1202 = vld [vmem:[#allocation7 + $0x1f40] sm:$0xff]
    %v1203 = vld [vmem:[#allocation7 + $0x1f48] sm:$0xff]
    %v1204 = vld [vmem:[#allocation7 + $0x1f50] sm:$0xff]
    %v1205 = vld [vmem:[#allocation7 + $0x1f58] sm:$0xff]
    %v1206 = vld [vmem:[#allocation7 + $0x1f60] sm:$0xff]
    %v1207 = vld [vmem:[#allocation7 + $0x1f68] sm:$0xff]
    %v1208 = vld [vmem:[#allocation7 + $0x1f70] sm:$0xff]
    %v1209 = vld [vmem:[#allocation7 + $0x1f78] sm:$0xff]
    %v1210 = vld [vmem:[#allocation7 + $0x1f80] sm:$0xff]
    %v1211 = vld [vmem:[#allocation7 + $0x1f88] sm:$0xff]
    %v1212 = vld [vmem:[#allocation7 + $0x1f90] sm:$0xff]
    %v1213 = vld [vmem:[#allocation7 + $0x1f98] sm:$0xff]
    %v1214 = vld [vmem:[#allocation7 + $0x1fa0] sm:$0xff]
    %v1215 = vld [vmem:[#allocation7 + $0x1fa8] sm:$0xff]
    %v1216 = vld [vmem:[#allocation7 + $0x1fb0] sm:$0xff]
    %v1217 = vld [vmem:[#allocation7 + $0x1fb8] sm:$0xff]
    %v1218 = vld [vmem:[#allocation7 + $0x1fc0] sm:$0xff]
    %v1219 = vld [vmem:[#allocation7 + $0x1fc8] sm:$0xff]
    %v1220 = vld [vmem:[#allocation7 + $0x1fd0] sm:$0xff]
    %v1221 = vld [vmem:[#allocation7 + $0x1fd8] sm:$0xff]
    %v1222 = vld [vmem:[#allocation7 + $0x1fe0] sm:$0xff]
    %v1223 = vld [vmem:[#allocation7 + $0x1fe8] sm:$0xff]
    %v1224 = vld [vmem:[#allocation7 + $0x1ff0] sm:$0xff]
    %v1225 = vld [vmem:[#allocation7 + $0x1ff8] sm:$0xff]
    %v1227 = vcombine.high %v201, %v201
    %v1229 = vunpack.c.l.s4 1983009808
    %v1230 = vunpack.c.0.s8 %v1229
    %v1231 = vlaneseq
    %v1232 = vshrl.u32 %v1231, 7
    %v1233 = vsub.s32 %v1230, %v1232
    %v1234 = vrot.slane %v201, %v1233
    %v1236 = vunpack.c.l.s4 1983009808
    %v1237 = vunpack.c.0.s8 %v1236
    %v1238 = vlaneseq
    %v1239 = vshrl.u32 %v1238, 7
    %v1240 = vsub.s32 %v1237, %v1239
    %v1241 = vrot.slane %v1227, %v1240
    %v1242 = vcombine.high %v1234, %v1234
    %v1243 = vcombine.high %v1241, %v1241
    %1248 = vmatprep.subr.mxu0 %v203
    %1249 = vmatpush1.msra.mxu0 %v202
    %1250 = vmatprep.subr.mxu0 %v219
    %1251 = vmatpush1.msra.mxu0 %v218
    %1252 = vmatprep.subr.mxu0 %v235
    %1253 = vmatpush1.msra.mxu0 %v234
    %1254 = vmatprep.subr.mxu0 %v251
    %1255 = vmatpush1.msra.mxu0 %v250
    %1256 = vmatprep.subr.mxu0 %v267
    %1257 = vmatpush1.msra.mxu0 %v266
    %1258 = vmatprep.subr.mxu0 %v283
    %1259 = vmatpush1.msra.mxu0 %v282
    %1260 = vmatprep.subr.mxu0 %v299
    %1261 = vmatpush1.msra.mxu0 %v298
    %1262 = vmatprep.subr.mxu0 %v315
    %1263 = vmatpush1.msra.mxu0 %v314
    %1264 = vmatprep.subr.mxu0 %v331
    %1265 = vmatpush1.msra.mxu0 %v330
    %1266 = vmatprep.subr.mxu0 %v347
    %1267 = vmatpush1.msra.mxu0 %v346
    %1268 = vmatprep.subr.mxu0 %v363
    %1269 = vmatpush1.msra.mxu0 %v362
    %1270 = vmatprep.subr.mxu0 %v379
    %1271 = vmatpush1.msra.mxu0 %v378
    %1272 = vmatprep.subr.mxu0 %v395
    %1273 = vmatpush1.msra.mxu0 %v394
    %1274 = vmatprep.subr.mxu0 %v411
    %1275 = vmatpush1.msra.mxu0 %v410
    %1276 = vmatprep.subr.mxu0 %v427
    %1277 = vmatpush1.msra.mxu0 %v426
    %1278 = vmatprep.subr.mxu0 %v443
    %1279 = vmatpush1.msra.mxu0 %v442
    %1280 = vmatprep.subr.mxu0 %v459
    %1281 = vmatpush1.msra.mxu0 %v458
    %1282 = vmatprep.subr.mxu0 %v475
    %1283 = vmatpush1.msra.mxu0 %v474
    %1284 = vmatprep.subr.mxu0 %v491
    %1285 = vmatpush1.msra.mxu0 %v490
    %1286 = vmatprep.subr.mxu0 %v507
    %1287 = vmatpush1.msra.mxu0 %v506
    %1288 = vmatprep.subr.mxu0 %v523
    %1289 = vmatpush1.msra.mxu0 %v522
    %1290 = vmatprep.subr.mxu0 %v539
    %1291 = vmatpush1.msra.mxu0 %v538
    %1292 = vmatprep.subr.mxu0 %v555
    %1293 = vmatpush1.msra.mxu0 %v554
    %1294 = vmatprep.subr.mxu0 %v571
    %1295 = vmatpush1.msra.mxu0 %v570
    %1296 = vmatprep.subr.mxu0 %v587
    %1297 = vmatpush1.msra.mxu0 %v586
    %1298 = vmatprep.subr.mxu0 %v603
    %1299 = vmatpush1.msra.mxu0 %v602
    %1300 = vmatprep.subr.mxu0 %v619
    %1301 = vmatpush1.msra.mxu0 %v618
    %1302 = vmatprep.subr.mxu0 %v635
    %1303 = vmatpush1.msra.mxu0 %v634
    %1304 = vmatprep.subr.mxu0 %v651
    %1305 = vmatpush1.msra.mxu0 %v650
    %1306 = vmatprep.subr.mxu0 %v667
    %1307 = vmatpush1.msra.mxu0 %v666
    %1308 = vmatprep.subr.mxu0 %v683
    %1309 = vmatpush1.msra.mxu0 %v682
    %1310 = vmatprep.subr.mxu0 %v699
    %1311 = vmatpush1.msra.mxu0 %v698
    %1312 = vmatprep.mubr.f32.mxu0 %v1242
    %1313 = vmatmul.mubr.f32.gmra.mrb[0].mxu0 %v1234
    %v1314 = vpop.f32.mrb[0].mxu0
    %v1315 = vadd.f32 0.0, %v1314
    %v1316 = vpop.f32.mrb[0].mxu0
    %v1317 = vadd.f32 0.0, %v1316
    %1318 = vdwg.mxu0
    %1319 = vmatprep.subr.mxu0 %v715
    %1320 = vmatpush1.msra.mxu0 %v714
    %1321 = vmatprep.subr.mxu0 %v731
    %1322 = vmatpush1.msra.mxu0 %v730
    %1323 = vmatprep.subr.mxu0 %v747
    %1324 = vmatpush1.msra.mxu0 %v746
    %1325 = vmatprep.subr.mxu0 %v763
    %1326 = vmatpush1.msra.mxu0 %v762
    %1327 = vmatprep.subr.mxu0 %v779
    %1328 = vmatpush1.msra.mxu0 %v778
    %1329 = vmatprep.subr.mxu0 %v795
    %1330 = vmatpush1.msra.mxu0 %v794
    %1331 = vmatprep.subr.mxu0 %v811
    %1332 = vmatpush1.msra.mxu0 %v810
    %1333 = vmatprep.subr.mxu0 %v827
    %1334 = vmatpush1.msra.mxu0 %v826
    %1335 = vmatprep.subr.mxu0 %v843
    %1336 = vmatpush1.msra.mxu0 %v842
    %1337 = vmatprep.subr.mxu0 %v859
    %1338 = vmatpush1.msra.mxu0 %v858
    %1339 = vmatprep.subr.mxu0 %v875
    %1340 = vmatpush1.msra.mxu0 %v874
    %1341 = vmatprep.subr.mxu0 %v891
    %1342 = vmatpush1.msra.mxu0 %v890
    %1343 = vmatprep.subr.mxu0 %v907
    %1344 = vmatpush1.msra.mxu0 %v906
    %1345 = vmatprep.subr.mxu0 %v923
    %1346 = vmatpush1.msra.mxu0 %v922
    %1347 = vmatprep.subr.mxu0 %v939
    %1348 = vmatpush1.msra.mxu0 %v938
    %1349 = vmatprep.subr.mxu0 %v955
    %1350 = vmatpush1.msra.mxu0 %v954
    %1351 = vmatprep.subr.mxu0 %v971
    %1352 = vmatpush1.msra.mxu0 %v970
    %1353 = vmatprep.subr.mxu0 %v987
    %1354 = vmatpush1.msra.mxu0 %v986
    %1355 = vmatprep.subr.mxu0 %v1003
    %1356 = vmatpush1.msra.mxu0 %v1002
    %1357 = vmatprep.subr.mxu0 %v1019
    %1358 = vmatpush1.msra.mxu0 %v1018
    %1359 = vmatprep.subr.mxu0 %v1035
    %1360 = vmatpush1.msra.mxu0 %v1034
    %1361 = vmatprep.subr.mxu0 %v1051
    %1362 = vmatpush1.msra.mxu0 %v1050
    %1363 = vmatprep.subr.mxu0 %v1067
    %1364 = vmatpush1.msra.mxu0 %v1066
    %1365 = vmatprep.subr.mxu0 %v1083
    %1366 = vmatpush1.msra.mxu0 %v1082
    %1367 = vmatprep.subr.mxu0 %v1099
    %1368 = vmatpush1.msra.mxu0 %v1098
    %1369 = vmatprep.subr.mxu0 %v1115
    %1370 = vmatpush1.msra.mxu0 %v1114
    %1371 = vmatprep.subr.mxu0 %v1131
    %1372 = vmatpush1.msra.mxu0 %v1130
    %1373 = vmatprep.subr.mxu0 %v1147
    %1374 = vmatpush1.msra.mxu0 %v1146
    %1375 = vmatprep.subr.mxu0 %v1163
    %1376 = vmatpush1.msra.mxu0 %v1162
    %1377 = vmatprep.subr.mxu0 %v1179
    %1378 = vmatpush1.msra.mxu0 %v1178
    %1379 = vmatprep.subr.mxu0 %v1195
    %1380 = vmatpush1.msra.mxu0 %v1194
    %1381 = vmatprep.subr.mxu0 %v1211
    %1382 = vmatpush1.msra.mxu0 %v1210
    %1383 = vmatprep.mubr.f32.mxu0 %v1243
    %1384 = vmatmul.mubr.f32.gmra.mrb[0].mxu0 %v1241
    %v1385 = vpop.f32.mrb[0].mxu0
    %v1386 = vadd.f32 %v1315, %v1385
    %v1387 = vpop.f32.mrb[0].mxu0
    %v1388 = vadd.f32 %v1317, %v1387
    %1389 = vdwg.mxu0
    %1390 = vmatprep.subr.mxu0 %v205
    %1391 = vmatpush1.msra.mxu0 %v204
    %1392 = vmatprep.subr.mxu0 %v221
    %1393 = vmatpush1.msra.mxu0 %v220
    %1394 = vmatprep.subr.mxu0 %v237
    %1395 = vmatpush1.msra.mxu0 %v236
    %1396 = vmatprep.subr.mxu0 %v253
    %1397 = vmatpush1.msra.mxu0 %v252
    %1398 = vmatprep.subr.mxu0 %v269
    %1399 = vmatpush1.msra.mxu0 %v268
    %1400 = vmatprep.subr.mxu0 %v285
    %1401 = vmatpush1.msra.mxu0 %v284
    %1402 = vmatprep.subr.mxu0 %v301
    %1403 = vmatpush1.msra.mxu0 %v300
    %1404 = vmatprep.subr.mxu0 %v317
    %1405 = vmatpush1.msra.mxu0 %v316
    %1406 = vmatprep.subr.mxu0 %v333
    %1407 = vmatpush1.msra.mxu0 %v332
    %1408 = vmatprep.subr.mxu0 %v349
    %1409 = vmatpush1.msra.mxu0 %v348
    %1410 = vmatprep.subr.mxu0 %v365
    %1411 = vmatpush1.msra.mxu0 %v364
    %1412 = vmatprep.subr.mxu0 %v381
    %1413 = vmatpush1.msra.mxu0 %v380
    %1414 = vmatprep.subr.mxu0 %v397
    %1415 = vmatpush1.msra.mxu0 %v396
    %1416 = vmatprep.subr.mxu0 %v413
    %1417 = vmatpush1.msra.mxu0 %v412
    %1418 = vmatprep.subr.mxu0 %v429
    %1419 = vmatpush1.msra.mxu0 %v428
    %1420 = vmatprep.subr.mxu0 %v445
    %1421 = vmatpush1.msra.mxu0 %v444
    %1422 = vmatprep.subr.mxu0 %v461
    %1423 = vmatpush1.msra.mxu0 %v460
    %1424 = vmatprep.subr.mxu0 %v477
    %1425 = vmatpush1.msra.mxu0 %v476
    %1426 = vmatprep.subr.mxu0 %v493
    %1427 = vmatpush1.msra.mxu0 %v492
    %1428 = vmatprep.subr.mxu0 %v509
    %1429 = vmatpush1.msra.mxu0 %v508
    %1430 = vmatprep.subr.mxu0 %v525
    %1431 = vmatpush1.msra.mxu0 %v524
    %1432 = vmatprep.subr.mxu0 %v541
    %1433 = vmatpush1.msra.mxu0 %v540
    %1434 = vmatprep.subr.mxu0 %v557
    %1435 = vmatpush1.msra.mxu0 %v556
    %1436 = vmatprep.subr.mxu0 %v573
    %1437 = vmatpush1.msra.mxu0 %v572
    %1438 = vmatprep.subr.mxu0 %v589
    %1439 = vmatpush1.msra.mxu0 %v588
    %1440 = vmatprep.subr.mxu0 %v605
    %1441 = vmatpush1.msra.mxu0 %v604
    %1442 = vmatprep.subr.mxu0 %v621
    %1443 = vmatpush1.msra.mxu0 %v620
    %1444 = vmatprep.subr.mxu0 %v637
    %1445 = vmatpush1.msra.mxu0 %v636
    %1446 = vmatprep.subr.mxu0 %v653
    %1447 = vmatpush1.msra.mxu0 %v652
    %1448 = vmatprep.subr.mxu0 %v669
    %1449 = vmatpush1.msra.mxu0 %v668
    %1450 = vmatprep.subr.mxu0 %v685
    %1451 = vmatpush1.msra.mxu0 %v684
    %1452 = vmatprep.subr.mxu0 %v701
    %1453 = vmatpush1.msra.mxu0 %v700
    %1454 = vmatprep.mubr.f32.mxu0 %v1242
    %1455 = vmatmul.mubr.f32.gmra.mrb[0].mxu0 %v1234
    %v1456 = vpop.f32.mrb[0].mxu0
    %v1457 = vadd.f32 0.0, %v1456
    %v1458 = vpop.f32.mrb[0].mxu0
    %v1459 = vadd.f32 0.0, %v1458
    %1460 = vdwg.mxu0
    %1461 = vmatprep.subr.mxu0 %v717
    %1462 = vmatpush1.msra.mxu0 %v716
    %1463 = vmatprep.subr.mxu0 %v733
    %1464 = vmatpush1.msra.mxu0 %v732
    %1465 = vmatprep.subr.mxu0 %v749
    %1466 = vmatpush1.msra.mxu0 %v748
    %1467 = vmatprep.subr.mxu0 %v765
    %1468 = vmatpush1.msra.mxu0 %v764
    %1469 = vmatprep.subr.mxu0 %v781
    %1470 = vmatpush1.msra.mxu0 %v780
    %1471 = vmatprep.subr.mxu0 %v797
    %1472 = vmatpush1.msra.mxu0 %v796
    %1473 = vmatprep.subr.mxu0 %v813
    %1474 = vmatpush1.msra.mxu0 %v812
    %1475 = vmatprep.subr.mxu0 %v829
    %1476 = vmatpush1.msra.mxu0 %v828
    %1477 = vmatprep.subr.mxu0 %v845
    %1478 = vmatpush1.msra.mxu0 %v844
    %1479 = vmatprep.subr.mxu0 %v861
    %1480 = vmatpush1.msra.mxu0 %v860
    %1481 = vmatprep.subr.mxu0 %v877
    %1482 = vmatpush1.msra.mxu0 %v876
    %1483 = vmatprep.subr.mxu0 %v893
    %1484 = vmatpush1.msra.mxu0 %v892
    %1485 = vmatprep.subr.mxu0 %v909
    %1486 = vmatpush1.msra.mxu0 %v908
    %1487 = vmatprep.subr.mxu0 %v925
    %1488 = vmatpush1.msra.mxu0 %v924
    %1489 = vmatprep.subr.mxu0 %v941
    %1490 = vmatpush1.msra.mxu0 %v940
    %1491 = vmatprep.subr.mxu0 %v957
    %1492 = vmatpush1.msra.mxu0 %v956
    %1493 = vmatprep.subr.mxu0 %v973
    %1494 = vmatpush1.msra.mxu0 %v972
    %1495 = vmatprep.subr.mxu0 %v989
    %1496 = vmatpush1.msra.mxu0 %v988
    %1497 = vmatprep.subr.mxu0 %v1005
    %1498 = vmatpush1.msra.mxu0 %v1004
    %1499 = vmatprep.subr.mxu0 %v1021
    %1500 = vmatpush1.msra.mxu0 %v1020
    %1501 = vmatprep.subr.mxu0 %v1037
    %1502 = vmatpush1.msra.mxu0 %v1036
    %1503 = vmatprep.subr.mxu0 %v1053
    %1504 = vmatpush1.msra.mxu0 %v1052
    %1505 = vmatprep.subr.mxu0 %v1069
    %1506 = vmatpush1.msra.mxu0 %v1068
    %1507 = vmatprep.subr.mxu0 %v1085
    %1508 = vmatpush1.msra.mxu0 %v1084
    %1509 = vmatprep.subr.mxu0 %v1101
    %1510 = vmatpush1.msra.mxu0 %v1100
    %1511 = vmatprep.subr.mxu0 %v1117
    %1512 = vmatpush1.msra.mxu0 %v1116
    %1513 = vmatprep.subr.mxu0 %v1133
    %1514 = vmatpush1.msra.mxu0 %v1132
    %1515 = vmatprep.subr.mxu0 %v1149
    %1516 = vmatpush1.msra.mxu0 %v1148
    %1517 = vmatprep.subr.mxu0 %v1165
    %1518 = vmatpush1.msra.mxu0 %v1164
    %1519 = vmatprep.subr.mxu0 %v1181
    %1520 = vmatpush1.msra.mxu0 %v1180
    %1521 = vmatprep.subr.mxu0 %v1197
    %1522 = vmatpush1.msra.mxu0 %v1196
    %1523 = vmatprep.subr.mxu0 %v1213
    %1524 = vmatpush1.msra.mxu0 %v1212
    %1525 = vmatprep.mubr.f32.mxu0 %v1243
    %1526 = vmatmul.mubr.f32.gmra.mrb[0].mxu0 %v1241
    %v1527 = vpop.f32.mrb[0].mxu0
    %v1528 = vadd.f32 %v1457, %v1527
    %v1529 = vpop.f32.mrb[0].mxu0
    %v1530 = vadd.f32 %v1459, %v1529
    %1531 = vdwg.mxu0
    %1532 = vmatprep.subr.mxu0 %v207
    %1533 = vmatpush1.msra.mxu0 %v206
    %1534 = vmatprep.subr.mxu0 %v223
    %1535 = vmatpush1.msra.mxu0 %v222
    %1536 = vmatprep.subr.mxu0 %v239
    %1537 = vmatpush1.msra.mxu0 %v238
    %1538 = vmatprep.subr.mxu0 %v255
    %1539 = vmatpush1.msra.mxu0 %v254
    %1540 = vmatprep.subr.mxu0 %v271
    %1541 = vmatpush1.msra.mxu0 %v270
    %1542 = vmatprep.subr.mxu0 %v287
    %1543 = vmatpush1.msra.mxu0 %v286
    %1544 = vmatprep.subr.mxu0 %v303
    %1545 = vmatpush1.msra.mxu0 %v302
    %1546 = vmatprep.subr.mxu0 %v319
    %1547 = vmatpush1.msra.mxu0 %v318
    %1548 = vmatprep.subr.mxu0 %v335
    %1549 = vmatpush1.msra.mxu0 %v334
    %1550 = vmatprep.subr.mxu0 %v351
    %1551 = vmatpush1.msra.mxu0 %v350
    %1552 = vmatprep.subr.mxu0 %v367
    %1553 = vmatpush1.msra.mxu0 %v366
    %1554 = vmatprep.subr.mxu0 %v383
    %1555 = vmatpush1.msra.mxu0 %v382
    %1556 = vmatprep.subr.mxu0 %v399
    %1557 = vmatpush1.msra.mxu0 %v398
    %1558 = vmatprep.subr.mxu0 %v415
    %1559 = vmatpush1.msra.mxu0 %v414
    %1560 = vmatprep.subr.mxu0 %v431
    %1561 = vmatpush1.msra.mxu0 %v430
    %1562 = vmatprep.subr.mxu0 %v447
    %1563 = vmatpush1.msra.mxu0 %v446
    %1564 = vmatprep.subr.mxu0 %v463
    %1565 = vmatpush1.msra.mxu0 %v462
    %1566 = vmatprep.subr.mxu0 %v479
    %1567 = vmatpush1.msra.mxu0 %v478
    %1568 = vmatprep.subr.mxu0 %v495
    %1569 = vmatpush1.msra.mxu0 %v494
    %1570 = vmatprep.subr.mxu0 %v511
    %1571 = vmatpush1.msra.mxu0 %v510
    %1572 = vmatprep.subr.mxu0 %v527
    %1573 = vmatpush1.msra.mxu0 %v526
    %1574 = vmatprep.subr.mxu0 %v543
    %1575 = vmatpush1.msra.mxu0 %v542
    %1576 = vmatprep.subr.mxu0 %v559
    %1577 = vmatpush1.msra.mxu0 %v558
    %1578 = vmatprep.subr.mxu0 %v575
    %1579 = vmatpush1.msra.mxu0 %v574
    %1580 = vmatprep.subr.mxu0 %v591
    %1581 = vmatpush1.msra.mxu0 %v590
    %1582 = vmatprep.subr.mxu0 %v607
    %1583 = vmatpush1.msra.mxu0 %v606
    %1584 = vmatprep.subr.mxu0 %v623
    %1585 = vmatpush1.msra.mxu0 %v622
    %1586 = vmatprep.subr.mxu0 %v639
    %1587 = vmatpush1.msra.mxu0 %v638
    %1588 = vmatprep.subr.mxu0 %v655
    %1589 = vmatpush1.msra.mxu0 %v654
    %1590 = vmatprep.subr.mxu0 %v671
    %1591 = vmatpush1.msra.mxu0 %v670
    %1592 = vmatprep.subr.mxu0 %v687
    %1593 = vmatpush1.msra.mxu0 %v686
    %1594 = vmatprep.subr.mxu0 %v703
    %1595 = vmatpush1.msra.mxu0 %v702
    %1596 = vmatprep.mubr.f32.mxu0 %v1242
    %1597 = vmatmul.mubr.f32.gmra.mrb[0].mxu0 %v1234
    %v1598 = vpop.f32.mrb[0].mxu0
    %v1599 = vadd.f32 0.0, %v1598
    %v1600 = vpop.f32.mrb[0].mxu0
    %v1601 = vadd.f32 0.0, %v1600
    %1602 = vdwg.mxu0
    %1603 = vmatprep.subr.mxu0 %v719
    %1604 = vmatpush1.msra.mxu0 %v718
    %1605 = vmatprep.subr.mxu0 %v735
    %1606 = vmatpush1.msra.mxu0 %v734
    %1607 = vmatprep.subr.mxu0 %v751
    %1608 = vmatpush1.msra.mxu0 %v750
    %1609 = vmatprep.subr.mxu0 %v767
    %1610 = vmatpush1.msra.mxu0 %v766
    %1611 = vmatprep.subr.mxu0 %v783
    %1612 = vmatpush1.msra.mxu0 %v782
    %1613 = vmatprep.subr.mxu0 %v799
    %1614 = vmatpush1.msra.mxu0 %v798
    %1615 = vmatprep.subr.mxu0 %v815
    %1616 = vmatpush1.msra.mxu0 %v814
    %1617 = vmatprep.subr.mxu0 %v831
    %1618 = vmatpush1.msra.mxu0 %v830
    %1619 = vmatprep.subr.mxu0 %v847
    %1620 = vmatpush1.msra.mxu0 %v846
    %1621 = vmatprep.subr.mxu0 %v863
    %1622 = vmatpush1.msra.mxu0 %v862
    %1623 = vmatprep.subr.mxu0 %v879
    %1624 = vmatpush1.msra.mxu0 %v878
    %1625 = vmatprep.subr.mxu0 %v895
    %1626 = vmatpush1.msra.mxu0 %v894
    %1627 = vmatprep.subr.mxu0 %v911
    %1628 = vmatpush1.msra.mxu0 %v910
    %1629 = vmatprep.subr.mxu0 %v927
    %1630 = vmatpush1.msra.mxu0 %v926
    %1631 = vmatprep.subr.mxu0 %v943
    %1632 = vmatpush1.msra.mxu0 %v942
    %1633 = vmatprep.subr.mxu0 %v959
    %1634 = vmatpush1.msra.mxu0 %v958
    %1635 = vmatprep.subr.mxu0 %v975
    %1636 = vmatpush1.msra.mxu0 %v974
    %1637 = vmatprep.subr.mxu0 %v991
    %1638 = vmatpush1.msra.mxu0 %v990
    %1639 = vmatprep.subr.mxu0 %v1007
    %1640 = vmatpush1.msra.mxu0 %v1006
    %1641 = vmatprep.subr.mxu0 %v1023
    %1642 = vmatpush1.msra.mxu0 %v1022
    %1643 = vmatprep.subr.mxu0 %v1039
    %1644 = vmatpush1.msra.mxu0 %v1038
    %1645 = vmatprep.subr.mxu0 %v1055
    %1646 = vmatpush1.msra.mxu0 %v1054
    %1647 = vmatprep.subr.mxu0 %v1071
    %1648 = vmatpush1.msra.mxu0 %v1070
    %1649 = vmatprep.subr.mxu0 %v1087
    %1650 = vmatpush1.msra.mxu0 %v1086
    %1651 = vmatprep.subr.mxu0 %v1103
    %1652 = vmatpush1.msra.mxu0 %v1102
    %1653 = vmatprep.subr.mxu0 %v1119
    %1654 = vmatpush1.msra.mxu0 %v1118
    %1655 = vmatprep.subr.mxu0 %v1135
    %1656 = vmatpush1.msra.mxu0 %v1134
    %1657 = vmatprep.subr.mxu0 %v1151
    %1658 = vmatpush1.msra.mxu0 %v1150
    %1659 = vmatprep.subr.mxu0 %v1167
    %1660 = vmatpush1.msra.mxu0 %v1166
    %1661 = vmatprep.subr.mxu0 %v1183
    %1662 = vmatpush1.msra.mxu0 %v1182
    %1663 = vmatprep.subr.mxu0 %v1199
    %1664 = vmatpush1.msra.mxu0 %v1198
    %1665 = vmatprep.subr.mxu0 %v1215
    %1666 = vmatpush1.msra.mxu0 %v1214
    %1667 = vmatprep.mubr.f32.mxu0 %v1243
    %1668 = vmatmul.mubr.f32.gmra.mrb[0].mxu0 %v1241
    %v1669 = vpop.f32.mrb[0].mxu0
    %v1670 = vadd.f32 %v1599, %v1669
    %v1671 = vpop.f32.mrb[0].mxu0
    %v1672 = vadd.f32 %v1601, %v1671
    %1673 = vdwg.mxu0
    %1674 = vmatprep.subr.mxu0 %v209
    %1675 = vmatpush1.msra.mxu0 %v208
    %1676 = vmatprep.subr.mxu0 %v225
    %1677 = vmatpush1.msra.mxu0 %v224
    %1678 = vmatprep.subr.mxu0 %v241
    %1679 = vmatpush1.msra.mxu0 %v240
    %1680 = vmatprep.subr.mxu0 %v257
    %1681 = vmatpush1.msra.mxu0 %v256
    %1682 = vmatprep.subr.mxu0 %v273
    %1683 = vmatpush1.msra.mxu0 %v272
    %1684 = vmatprep.subr.mxu0 %v289
    %1685 = vmatpush1.msra.mxu0 %v288
    %1686 = vmatprep.subr.mxu0 %v305
    %1687 = vmatpush1.msra.mxu0 %v304
    %1688 = vmatprep.subr.mxu0 %v321
    %1689 = vmatpush1.msra.mxu0 %v320
    %1690 = vmatprep.subr.mxu0 %v337
    %1691 = vmatpush1.msra.mxu0 %v336
    %1692 = vmatprep.subr.mxu0 %v353
    %1693 = vmatpush1.msra.mxu0 %v352
    %1694 = vmatprep.subr.mxu0 %v369
    %1695 = vmatpush1.msra.mxu0 %v368
    %1696 = vmatprep.subr.mxu0 %v385
    %1697 = vmatpush1.msra.mxu0 %v384
    %1698 = vmatprep.subr.mxu0 %v401
    %1699 = vmatpush1.msra.mxu0 %v400
    %1700 = vmatprep.subr.mxu0 %v417
    %1701 = vmatpush1.msra.mxu0 %v416
    %1702 = vmatprep.subr.mxu0 %v433
    %1703 = vmatpush1.msra.mxu0 %v432
    %1704 = vmatprep.subr.mxu0 %v449
    %1705 = vmatpush1.msra.mxu0 %v448
    %1706 = vmatprep.subr.mxu0 %v465
    %1707 = vmatpush1.msra.mxu0 %v464
    %1708 = vmatprep.subr.mxu0 %v481
    %1709 = vmatpush1.msra.mxu0 %v480
    %1710 = vmatprep.subr.mxu0 %v497
    %1711 = vmatpush1.msra.mxu0 %v496
    %1712 = vmatprep.subr.mxu0 %v513
    %1713 = vmatpush1.msra.mxu0 %v512
    %1714 = vmatprep.subr.mxu0 %v529
    %1715 = vmatpush1.msra.mxu0 %v528
    %1716 = vmatprep.subr.mxu0 %v545
    %1717 = vmatpush1.msra.mxu0 %v544
    %1718 = vmatprep.subr.mxu0 %v561
    %1719 = vmatpush1.msra.mxu0 %v560
    %1720 = vmatprep.subr.mxu0 %v577
    %1721 = vmatpush1.msra.mxu0 %v576
    %1722 = vmatprep.subr.mxu0 %v593
    %1723 = vmatpush1.msra.mxu0 %v592
    %1724 = vmatprep.subr.mxu0 %v609
    %1725 = vmatpush1.msra.mxu0 %v608
    %1726 = vmatprep.subr.mxu0 %v625
    %1727 = vmatpush1.msra.mxu0 %v624
    %1728 = vmatprep.subr.mxu0 %v641
    %1729 = vmatpush1.msra.mxu0 %v640
    %1730 = vmatprep.subr.mxu0 %v657
    %1731 = vmatpush1.msra.mxu0 %v656
    %1732 = vmatprep.subr.mxu0 %v673
    %1733 = vmatpush1.msra.mxu0 %v672
    %1734 = vmatprep.subr.mxu0 %v689
    %1735 = vmatpush1.msra.mxu0 %v688
    %1736 = vmatprep.subr.mxu0 %v705
    %1737 = vmatpush1.msra.mxu0 %v704
    %1738 = vmatprep.mubr.f32.mxu0 %v1242
    %1739 = vmatmul.mubr.f32.gmra.mrb[0].mxu0 %v1234
    %v1740 = vpop.f32.mrb[0].mxu0
    %v1741 = vadd.f32 0.0, %v1740
    %v1742 = vpop.f32.mrb[0].mxu0
    %v1743 = vadd.f32 0.0, %v1742
    %1744 = vdwg.mxu0
    %1745 = vmatprep.subr.mxu0 %v721
    %1746 = vmatpush1.msra.mxu0 %v720
    %1747 = vmatprep.subr.mxu0 %v737
    %1748 = vmatpush1.msra.mxu0 %v736
    %1749 = vmatprep.subr.mxu0 %v753
    %1750 = vmatpush1.msra.mxu0 %v752
    %1751 = vmatprep.subr.mxu0 %v769
    %1752 = vmatpush1.msra.mxu0 %v768
    %1753 = vmatprep.subr.mxu0 %v785
    %1754 = vmatpush1.msra.mxu0 %v784
    %1755 = vmatprep.subr.mxu0 %v801
    %1756 = vmatpush1.msra.mxu0 %v800
    %1757 = vmatprep.subr.mxu0 %v817
    %1758 = vmatpush1.msra.mxu0 %v816
    %1759 = vmatprep.subr.mxu0 %v833
    %1760 = vmatpush1.msra.mxu0 %v832
    %1761 = vmatprep.subr.mxu0 %v849
    %1762 = vmatpush1.msra.mxu0 %v848
    %1763 = vmatprep.subr.mxu0 %v865
    %1764 = vmatpush1.msra.mxu0 %v864
    %1765 = vmatprep.subr.mxu0 %v881
    %1766 = vmatpush1.msra.mxu0 %v880
    %1767 = vmatprep.subr.mxu0 %v897
    %1768 = vmatpush1.msra.mxu0 %v896
    %1769 = vmatprep.subr.mxu0 %v913
    %1770 = vmatpush1.msra.mxu0 %v912
    %1771 = vmatprep.subr.mxu0 %v929
    %1772 = vmatpush1.msra.mxu0 %v928
    %1773 = vmatprep.subr.mxu0 %v945
    %1774 = vmatpush1.msra.mxu0 %v944
    %1775 = vmatprep.subr.mxu0 %v961
    %1776 = vmatpush1.msra.mxu0 %v960
    %1777 = vmatprep.subr.mxu0 %v977
    %1778 = vmatpush1.msra.mxu0 %v976
    %1779 = vmatprep.subr.mxu0 %v993
    %1780 = vmatpush1.msra.mxu0 %v992
    %1781 = vmatprep.subr.mxu0 %v1009
    %1782 = vmatpush1.msra.mxu0 %v1008
    %1783 = vmatprep.subr.mxu0 %v1025
    %1784 = vmatpush1.msra.mxu0 %v1024
    %1785 = vmatprep.subr.mxu0 %v1041
    %1786 = vmatpush1.msra.mxu0 %v1040
    %1787 = vmatprep.subr.mxu0 %v1057
    %1788 = vmatpush1.msra.mxu0 %v1056
    %1789 = vmatprep.subr.mxu0 %v1073
    %1790 = vmatpush1.msra.mxu0 %v1072
    %1791 = vmatprep.subr.mxu0 %v1089
    %1792 = vmatpush1.msra.mxu0 %v1088
    %1793 = vmatprep.subr.mxu0 %v1105
    %1794 = vmatpush1.msra.mxu0 %v1104
    %1795 = vmatprep.subr.mxu0 %v1121
    %1796 = vmatpush1.msra.mxu0 %v1120
    %1797 = vmatprep.subr.mxu0 %v1137
    %1798 = vmatpush1.msra.mxu0 %v1136
    %1799 = vmatprep.subr.mxu0 %v1153
    %1800 = vmatpush1.msra.mxu0 %v1152
    %1801 = vmatprep.subr.mxu0 %v1169
    %1802 = vmatpush1.msra.mxu0 %v1168
    %1803 = vmatprep.subr.mxu0 %v1185
    %1804 = vmatpush1.msra.mxu0 %v1184
    %1805 = vmatprep.subr.mxu0 %v1201
    %1806 = vmatpush1.msra.mxu0 %v1200
    %1807 = vmatprep.subr.mxu0 %v1217
    %1808 = vmatpush1.msra.mxu0 %v1216
    %1809 = vmatprep.mubr.f32.mxu0 %v1243
    %1810 = vmatmul.mubr.f32.gmra.mrb[0].mxu0 %v1241
    %v1811 = vpop.f32.mrb[0].mxu0
    %v1812 = vadd.f32 %v1741, %v1811
    %v1813 = vpop.f32.mrb[0].mxu0
    %v1814 = vadd.f32 %v1743, %v1813
    %1815 = vdwg.mxu0
    %1816 = vmatprep.subr.mxu0 %v211
    %1817 = vmatpush1.msra.mxu0 %v210
    %1818 = vmatprep.subr.mxu0 %v227
    %1819 = vmatpush1.msra.mxu0 %v226
    %1820 = vmatprep.subr.mxu0 %v243
    %1821 = vmatpush1.msra.mxu0 %v242
    %1822 = vmatprep.subr.mxu0 %v259
    %1823 = vmatpush1.msra.mxu0 %v258
    %1824 = vmatprep.subr.mxu0 %v275
    %1825 = vmatpush1.msra.mxu0 %v274
    %1826 = vmatprep.subr.mxu0 %v291
    %1827 = vmatpush1.msra.mxu0 %v290
    %1828 = vmatprep.subr.mxu0 %v307
    %1829 = vmatpush1.msra.mxu0 %v306
    %1830 = vmatprep.subr.mxu0 %v323
    %1831 = vmatpush1.msra.mxu0 %v322
    %1832 = vmatprep.subr.mxu0 %v339
    %1833 = vmatpush1.msra.mxu0 %v338
    %1834 = vmatprep.subr.mxu0 %v355
    %1835 = vmatpush1.msra.mxu0 %v354
    %1836 = vmatprep.subr.mxu0 %v371
    %1837 = vmatpush1.msra.mxu0 %v370
    %1838 = vmatprep.subr.mxu0 %v387
    %1839 = vmatpush1.msra.mxu0 %v386
    %1840 = vmatprep.subr.mxu0 %v403
    %1841 = vmatpush1.msra.mxu0 %v402
    %1842 = vmatprep.subr.mxu0 %v419
    %1843 = vmatpush1.msra.mxu0 %v418
    %1844 = vmatprep.subr.mxu0 %v435
    %1845 = vmatpush1.msra.mxu0 %v434
    %1846 = vmatprep.subr.mxu0 %v451
    %1847 = vmatpush1.msra.mxu0 %v450
    %1848 = vmatprep.subr.mxu0 %v467
    %1849 = vmatpush1.msra.mxu0 %v466
    %1850 = vmatprep.subr.mxu0 %v483
    %1851 = vmatpush1.msra.mxu0 %v482
    %1852 = vmatprep.subr.mxu0 %v499
    %1853 = vmatpush1.msra.mxu0 %v498
    %1854 = vmatprep.subr.mxu0 %v515
    %1855 = vmatpush1.msra.mxu0 %v514
    %1856 = vmatprep.subr.mxu0 %v531
    %1857 = vmatpush1.msra.mxu0 %v530
    %1858 = vmatprep.subr.mxu0 %v547
    %1859 = vmatpush1.msra.mxu0 %v546
    %1860 = vmatprep.subr.mxu0 %v563
    %1861 = vmatpush1.msra.mxu0 %v562
    %1862 = vmatprep.subr.mxu0 %v579
    %1863 = vmatpush1.msra.mxu0 %v578
    %1864 = vmatprep.subr.mxu0 %v595
    %1865 = vmatpush1.msra.mxu0 %v594
    %1866 = vmatprep.subr.mxu0 %v611
    %1867 = vmatpush1.msra.mxu0 %v610
    %1868 = vmatprep.subr.mxu0 %v627
    %1869 = vmatpush1.msra.mxu0 %v626
    %1870 = vmatprep.subr.mxu0 %v643
    %1871 = vmatpush1.msra.mxu0 %v642
    %1872 = vmatprep.subr.mxu0 %v659
    %1873 = vmatpush1.msra.mxu0 %v658
    %1874 = vmatprep.subr.mxu0 %v675
    %1875 = vmatpush1.msra.mxu0 %v674
    %1876 = vmatprep.subr.mxu0 %v691
    %1877 = vmatpush1.msra.mxu0 %v690
    %1878 = vmatprep.subr.mxu0 %v707
    %1879 = vmatpush1.msra.mxu0 %v706
    %1880 = vmatprep.mubr.f32.mxu0 %v1242
    %1881 = vmatmul.mubr.f32.gmra.mrb[0].mxu0 %v1234
    %v1882 = vpop.f32.mrb[0].mxu0
    %v1883 = vadd.f32 0.0, %v1882
    %v1884 = vpop.f32.mrb[0].mxu0
    %v1885 = vadd.f32 0.0, %v1884
    %1886 = vdwg.mxu0
    %1887 = vmatprep.subr.mxu0 %v723
    %1888 = vmatpush1.msra.mxu0 %v722
    %1889 = vmatprep.subr.mxu0 %v739
    %1890 = vmatpush1.msra.mxu0 %v738
    %1891 = vmatprep.subr.mxu0 %v755
    %1892 = vmatpush1.msra.mxu0 %v754
    %1893 = vmatprep.subr.mxu0 %v771
    %1894 = vmatpush1.msra.mxu0 %v770
    %1895 = vmatprep.subr.mxu0 %v787
    %1896 = vmatpush1.msra.mxu0 %v786
    %1897 = vmatprep.subr.mxu0 %v803
    %1898 = vmatpush1.msra.mxu0 %v802
    %1899 = vmatprep.subr.mxu0 %v819
    %1900 = vmatpush1.msra.mxu0 %v818
    %1901 = vmatprep.subr.mxu0 %v835
    %1902 = vmatpush1.msra.mxu0 %v834
    %1903 = vmatprep.subr.mxu0 %v851
    %1904 = vmatpush1.msra.mxu0 %v850
    %1905 = vmatprep.subr.mxu0 %v867
    %1906 = vmatpush1.msra.mxu0 %v866
    %1907 = vmatprep.subr.mxu0 %v883
    %1908 = vmatpush1.msra.mxu0 %v882
    %1909 = vmatprep.subr.mxu0 %v899
    %1910 = vmatpush1.msra.mxu0 %v898
    %1911 = vmatprep.subr.mxu0 %v915
    %1912 = vmatpush1.msra.mxu0 %v914
    %1913 = vmatprep.subr.mxu0 %v931
    %1914 = vmatpush1.msra.mxu0 %v930
    %1915 = vmatprep.subr.mxu0 %v947
    %1916 = vmatpush1.msra.mxu0 %v946
    %1917 = vmatprep.subr.mxu0 %v963
    %1918 = vmatpush1.msra.mxu0 %v962
    %1919 = vmatprep.subr.mxu0 %v979
    %1920 = vmatpush1.msra.mxu0 %v978
    %1921 = vmatprep.subr.mxu0 %v995
    %1922 = vmatpush1.msra.mxu0 %v994
    %1923 = vmatprep.subr.mxu0 %v1011
    %1924 = vmatpush1.msra.mxu0 %v1010
    %1925 = vmatprep.subr.mxu0 %v1027
    %1926 = vmatpush1.msra.mxu0 %v1026
    %1927 = vmatprep.subr.mxu0 %v1043
    %1928 = vmatpush1.msra.mxu0 %v1042
    %1929 = vmatprep.subr.mxu0 %v1059
    %1930 = vmatpush1.msra.mxu0 %v1058
    %1931 = vmatprep.subr.mxu0 %v1075
    %1932 = vmatpush1.msra.mxu0 %v1074
    %1933 = vmatprep.subr.mxu0 %v1091
    %1934 = vmatpush1.msra.mxu0 %v1090
    %1935 = vmatprep.subr.mxu0 %v1107
    %1936 = vmatpush1.msra.mxu0 %v1106
    %1937 = vmatprep.subr.mxu0 %v1123
    %1938 = vmatpush1.msra.mxu0 %v1122
    %1939 = vmatprep.subr.mxu0 %v1139
    %1940 = vmatpush1.msra.mxu0 %v1138
    %1941 = vmatprep.subr.mxu0 %v1155
    %1942 = vmatpush1.msra.mxu0 %v1154
    %1943 = vmatprep.subr.mxu0 %v1171
    %1944 = vmatpush1.msra.mxu0 %v1170
    %1945 = vmatprep.subr.mxu0 %v1187
    %1946 = vmatpush1.msra.mxu0 %v1186
    %1947 = vmatprep.subr.mxu0 %v1203
    %1948 = vmatpush1.msra.mxu0 %v1202
    %1949 = vmatprep.subr.mxu0 %v1219
    %1950 = vmatpush1.msra.mxu0 %v1218
    %1951 = vmatprep.mubr.f32.mxu0 %v1243
    %1952 = vmatmul.mubr.f32.gmra.mrb[0].mxu0 %v1241
    %v1953 = vpop.f32.mrb[0].mxu0
    %v1954 = vadd.f32 %v1883, %v1953
    %v1955 = vpop.f32.mrb[0].mxu0
    %v1956 = vadd.f32 %v1885, %v1955
    %1957 = vdwg.mxu0
    %1958 = vmatprep.subr.mxu0 %v213
    %1959 = vmatpush1.msra.mxu0 %v212
    %1960 = vmatprep.subr.mxu0 %v229
    %1961 = vmatpush1.msra.mxu0 %v228
    %1962 = vmatprep.subr.mxu0 %v245
    %1963 = vmatpush1.msra.mxu0 %v244
    %1964 = vmatprep.subr.mxu0 %v261
    %1965 = vmatpush1.msra.mxu0 %v260
    %1966 = vmatprep.subr.mxu0 %v277
    %1967 = vmatpush1.msra.mxu0 %v276
    %1968 = vmatprep.subr.mxu0 %v293
    %1969 = vmatpush1.msra.mxu0 %v292
    %1970 = vmatprep.subr.mxu0 %v309
    %1971 = vmatpush1.msra.mxu0 %v308
    %1972 = vmatprep.subr.mxu0 %v325
    %1973 = vmatpush1.msra.mxu0 %v324
    %1974 = vmatprep.subr.mxu0 %v341
    %1975 = vmatpush1.msra.mxu0 %v340
    %1976 = vmatprep.subr.mxu0 %v357
    %1977 = vmatpush1.msra.mxu0 %v356
    %1978 = vmatprep.subr.mxu0 %v373
    %1979 = vmatpush1.msra.mxu0 %v372
    %1980 = vmatprep.subr.mxu0 %v389
    %1981 = vmatpush1.msra.mxu0 %v388
    %1982 = vmatprep.subr.mxu0 %v405
    %1983 = vmatpush1.msra.mxu0 %v404
    %1984 = vmatprep.subr.mxu0 %v421
    %1985 = vmatpush1.msra.mxu0 %v420
    %1986 = vmatprep.subr.mxu0 %v437
    %1987 = vmatpush1.msra.mxu0 %v436
    %1988 = vmatprep.subr.mxu0 %v453
    %1989 = vmatpush1.msra.mxu0 %v452
    %1990 = vmatprep.subr.mxu0 %v469
    %1991 = vmatpush1.msra.mxu0 %v468
    %1992 = vmatprep.subr.mxu0 %v485
    %1993 = vmatpush1.msra.mxu0 %v484
    %1994 = vmatprep.subr.mxu0 %v501
    %1995 = vmatpush1.msra.mxu0 %v500
    %1996 = vmatprep.subr.mxu0 %v517
    %1997 = vmatpush1.msra.mxu0 %v516
    %1998 = vmatprep.subr.mxu0 %v533
    %1999 = vmatpush1.msra.mxu0 %v532
    %2000 = vmatprep.subr.mxu0 %v549
    %2001 = vmatpush1.msra.mxu0 %v548
    %2002 = vmatprep.subr.mxu0 %v565
    %2003 = vmatpush1.msra.mxu0 %v564
    %2004 = vmatprep.subr.mxu0 %v581
    %2005 = vmatpush1.msra.mxu0 %v580
    %2006 = vmatprep.subr.mxu0 %v597
    %2007 = vmatpush1.msra.mxu0 %v596
    %2008 = vmatprep.subr.mxu0 %v613
    %2009 = vmatpush1.msra.mxu0 %v612
    %2010 = vmatprep.subr.mxu0 %v629
    %2011 = vmatpush1.msra.mxu0 %v628
    %2012 = vmatprep.subr.mxu0 %v645
    %2013 = vmatpush1.msra.mxu0 %v644
    %2014 = vmatprep.subr.mxu0 %v661
    %2015 = vmatpush1.msra.mxu0 %v660
    %2016 = vmatprep.subr.mxu0 %v677
    %2017 = vmatpush1.msra.mxu0 %v676
    %2018 = vmatprep.subr.mxu0 %v693
    %2019 = vmatpush1.msra.mxu0 %v692
    %2020 = vmatprep.subr.mxu0 %v709
    %2021 = vmatpush1.msra.mxu0 %v708
    %2022 = vmatprep.mubr.f32.mxu0 %v1242
    %2023 = vmatmul.mubr.f32.gmra.mrb[0].mxu0 %v1234
    %v2024 = vpop.f32.mrb[0].mxu0
    %v2025 = vadd.f32 0.0, %v2024
    %v2026 = vpop.f32.mrb[0].mxu0
    %v2027 = vadd.f32 0.0, %v2026
    %2028 = vdwg.mxu0
    %2029 = vmatprep.subr.mxu0 %v725
    %2030 = vmatpush1.msra.mxu0 %v724
    %2031 = vmatprep.subr.mxu0 %v741
    %2032 = vmatpush1.msra.mxu0 %v740
    %2033 = vmatprep.subr.mxu0 %v757
    %2034 = vmatpush1.msra.mxu0 %v756
    %2035 = vmatprep.subr.mxu0 %v773
    %2036 = vmatpush1.msra.mxu0 %v772
    %2037 = vmatprep.subr.mxu0 %v789
    %2038 = vmatpush1.msra.mxu0 %v788
    %2039 = vmatprep.subr.mxu0 %v805
    %2040 = vmatpush1.msra.mxu0 %v804
    %2041 = vmatprep.subr.mxu0 %v821
    %2042 = vmatpush1.msra.mxu0 %v820
    %2043 = vmatprep.subr.mxu0 %v837
    %2044 = vmatpush1.msra.mxu0 %v836
    %2045 = vmatprep.subr.mxu0 %v853
    %2046 = vmatpush1.msra.mxu0 %v852
    %2047 = vmatprep.subr.mxu0 %v869
    %2048 = vmatpush1.msra.mxu0 %v868
    %2049 = vmatprep.subr.mxu0 %v885
    %2050 = vmatpush1.msra.mxu0 %v884
    %2051 = vmatprep.subr.mxu0 %v901
    %2052 = vmatpush1.msra.mxu0 %v900
    %2053 = vmatprep.subr.mxu0 %v917
    %2054 = vmatpush1.msra.mxu0 %v916
    %2055 = vmatprep.subr.mxu0 %v933
    %2056 = vmatpush1.msra.mxu0 %v932
    %2057 = vmatprep.subr.mxu0 %v949
    %2058 = vmatpush1.msra.mxu0 %v948
    %2059 = vmatprep.subr.mxu0 %v965
    %2060 = vmatpush1.msra.mxu0 %v964
    %2061 = vmatprep.subr.mxu0 %v981
    %2062 = vmatpush1.msra.mxu0 %v980
    %2063 = vmatprep.subr.mxu0 %v997
    %2064 = vmatpush1.msra.mxu0 %v996
    %2065 = vmatprep.subr.mxu0 %v1013
    %2066 = vmatpush1.msra.mxu0 %v1012
    %2067 = vmatprep.subr.mxu0 %v1029
    %2068 = vmatpush1.msra.mxu0 %v1028
    %2069 = vmatprep.subr.mxu0 %v1045
    %2070 = vmatpush1.msra.mxu0 %v1044
    %2071 = vmatprep.subr.mxu0 %v1061
    %2072 = vmatpush1.msra.mxu0 %v1060
    %2073 = vmatprep.subr.mxu0 %v1077
    %2074 = vmatpush1.msra.mxu0 %v1076
    %2075 = vmatprep.subr.mxu0 %v1093
    %2076 = vmatpush1.msra.mxu0 %v1092
    %2077 = vmatprep.subr.mxu0 %v1109
    %2078 = vmatpush1.msra.mxu0 %v1108
    %2079 = vmatprep.subr.mxu0 %v1125
    %2080 = vmatpush1.msra.mxu0 %v1124
    %2081 = vmatprep.subr.mxu0 %v1141
    %2082 = vmatpush1.msra.mxu0 %v1140
    %2083 = vmatprep.subr.mxu0 %v1157
    %2084 = vmatpush1.msra.mxu0 %v1156
    %2085 = vmatprep.subr.mxu0 %v1173
    %2086 = vmatpush1.msra.mxu0 %v1172
    %2087 = vmatprep.subr.mxu0 %v1189
    %2088 = vmatpush1.msra.mxu0 %v1188
    %2089 = vmatprep.subr.mxu0 %v1205
    %2090 = vmatpush1.msra.mxu0 %v1204
    %2091 = vmatprep.subr.mxu0 %v1221
    %2092 = vmatpush1.msra.mxu0 %v1220
    %2093 = vmatprep.mubr.f32.mxu0 %v1243
    %2094 = vmatmul.mubr.f32.gmra.mrb[0].mxu0 %v1241
    %v2095 = vpop.f32.mrb[0].mxu0
    %v2096 = vadd.f32 %v2025, %v2095
    %v2097 = vpop.f32.mrb[0].mxu0
    %v2098 = vadd.f32 %v2027, %v2097
    %2099 = vdwg.mxu0
    %2100 = vmatprep.subr.mxu0 %v215
    %2101 = vmatpush1.msra.mxu0 %v214
    %2102 = vmatprep.subr.mxu0 %v231
    %2103 = vmatpush1.msra.mxu0 %v230
    %2104 = vmatprep.subr.mxu0 %v247
    %2105 = vmatpush1.msra.mxu0 %v246
    %2106 = vmatprep.subr.mxu0 %v263
    %2107 = vmatpush1.msra.mxu0 %v262
    %2108 = vmatprep.subr.mxu0 %v279
    %2109 = vmatpush1.msra.mxu0 %v278
    %2110 = vmatprep.subr.mxu0 %v295
    %2111 = vmatpush1.msra.mxu0 %v294
    %2112 = vmatprep.subr.mxu0 %v311
    %2113 = vmatpush1.msra.mxu0 %v310
    %2114 = vmatprep.subr.mxu0 %v327
    %2115 = vmatpush1.msra.mxu0 %v326
    %2116 = vmatprep.subr.mxu0 %v343
    %2117 = vmatpush1.msra.mxu0 %v342
    %2118 = vmatprep.subr.mxu0 %v359
    %2119 = vmatpush1.msra.mxu0 %v358
    %2120 = vmatprep.subr.mxu0 %v375
    %2121 = vmatpush1.msra.mxu0 %v374
    %2122 = vmatprep.subr.mxu0 %v391
    %2123 = vmatpush1.msra.mxu0 %v390
    %2124 = vmatprep.subr.mxu0 %v407
    %2125 = vmatpush1.msra.mxu0 %v406
    %2126 = vmatprep.subr.mxu0 %v423
    %2127 = vmatpush1.msra.mxu0 %v422
    %2128 = vmatprep.subr.mxu0 %v439
    %2129 = vmatpush1.msra.mxu0 %v438
    %2130 = vmatprep.subr.mxu0 %v455
    %2131 = vmatpush1.msra.mxu0 %v454
    %2132 = vmatprep.subr.mxu0 %v471
    %2133 = vmatpush1.msra.mxu0 %v470
    %2134 = vmatprep.subr.mxu0 %v487
    %2135 = vmatpush1.msra.mxu0 %v486
    %2136 = vmatprep.subr.mxu0 %v503
    %2137 = vmatpush1.msra.mxu0 %v502
    %2138 = vmatprep.subr.mxu0 %v519
    %2139 = vmatpush1.msra.mxu0 %v518
    %2140 = vmatprep.subr.mxu0 %v535
    %2141 = vmatpush1.msra.mxu0 %v534
    %2142 = vmatprep.subr.mxu0 %v551
    %2143 = vmatpush1.msra.mxu0 %v550
    %2144 = vmatprep.subr.mxu0 %v567
    %2145 = vmatpush1.msra.mxu0 %v566
    %2146 = vmatprep.subr.mxu0 %v583
    %2147 = vmatpush1.msra.mxu0 %v582
    %2148 = vmatprep.subr.mxu0 %v599
    %2149 = vmatpush1.msra.mxu0 %v598
    %2150 = vmatprep.subr.mxu0 %v615
    %2151 = vmatpush1.msra.mxu0 %v614
    %2152 = vmatprep.subr.mxu0 %v631
    %2153 = vmatpush1.msra.mxu0 %v630
    %2154 = vmatprep.subr.mxu0 %v647
    %2155 = vmatpush1.msra.mxu0 %v646
    %2156 = vmatprep.subr.mxu0 %v663
    %2157 = vmatpush1.msra.mxu0 %v662
    %2158 = vmatprep.subr.mxu0 %v679
    %2159 = vmatpush1.msra.mxu0 %v678
    %2160 = vmatprep.subr.mxu0 %v695
    %2161 = vmatpush1.msra.mxu0 %v694
    %2162 = vmatprep.subr.mxu0 %v711
    %2163 = vmatpush1.msra.mxu0 %v710
    %2164 = vmatprep.mubr.f32.mxu0 %v1242
    %2165 = vmatmul.mubr.f32.gmra.mrb[0].mxu0 %v1234
    %v2166 = vpop.f32.mrb[0].mxu0
    %v2167 = vadd.f32 0.0, %v2166
    %v2168 = vpop.f32.mrb[0].mxu0
    %v2169 = vadd.f32 0.0, %v2168
    %2170 = vdwg.mxu0
    %2171 = vmatprep.subr.mxu0 %v727
    %2172 = vmatpush1.msra.mxu0 %v726
    %2173 = vmatprep.subr.mxu0 %v743
    %2174 = vmatpush1.msra.mxu0 %v742
    %2175 = vmatprep.subr.mxu0 %v759
    %2176 = vmatpush1.msra.mxu0 %v758
    %2177 = vmatprep.subr.mxu0 %v775
    %2178 = vmatpush1.msra.mxu0 %v774
    %2179 = vmatprep.subr.mxu0 %v791
    %2180 = vmatpush1.msra.mxu0 %v790
    %2181 = vmatprep.subr.mxu0 %v807
    %2182 = vmatpush1.msra.mxu0 %v806
    %2183 = vmatprep.subr.mxu0 %v823
    %2184 = vmatpush1.msra.mxu0 %v822
    %2185 = vmatprep.subr.mxu0 %v839
    %2186 = vmatpush1.msra.mxu0 %v838
    %2187 = vmatprep.subr.mxu0 %v855
    %2188 = vmatpush1.msra.mxu0 %v854
    %2189 = vmatprep.subr.mxu0 %v871
    %2190 = vmatpush1.msra.mxu0 %v870
    %2191 = vmatprep.subr.mxu0 %v887
    %2192 = vmatpush1.msra.mxu0 %v886
    %2193 = vmatprep.subr.mxu0 %v903
    %2194 = vmatpush1.msra.mxu0 %v902
    %2195 = vmatprep.subr.mxu0 %v919
    %2196 = vmatpush1.msra.mxu0 %v918
    %2197 = vmatprep.subr.mxu0 %v935
    %2198 = vmatpush1.msra.mxu0 %v934
    %2199 = vmatprep.subr.mxu0 %v951
    %2200 = vmatpush1.msra.mxu0 %v950
    %2201 = vmatprep.subr.mxu0 %v967
    %2202 = vmatpush1.msra.mxu0 %v966
    %2203 = vmatprep.subr.mxu0 %v983
    %2204 = vmatpush1.msra.mxu0 %v982
    %2205 = vmatprep.subr.mxu0 %v999
    %2206 = vmatpush1.msra.mxu0 %v998
    %2207 = vmatprep.subr.mxu0 %v1015
    %2208 = vmatpush1.msra.mxu0 %v1014
    %2209 = vmatprep.subr.mxu0 %v1031
    %2210 = vmatpush1.msra.mxu0 %v1030
    %2211 = vmatprep.subr.mxu0 %v1047
    %2212 = vmatpush1.msra.mxu0 %v1046
    %2213 = vmatprep.subr.mxu0 %v1063
    %2214 = vmatpush1.msra.mxu0 %v1062
    %2215 = vmatprep.subr.mxu0 %v1079
    %2216 = vmatpush1.msra.mxu0 %v1078
    %2217 = vmatprep.subr.mxu0 %v1095
    %2218 = vmatpush1.msra.mxu0 %v1094
    %2219 = vmatprep.subr.mxu0 %v1111
    %2220 = vmatpush1.msra.mxu0 %v1110
    %2221 = vmatprep.subr.mxu0 %v1127
    %2222 = vmatpush1.msra.mxu0 %v1126
    %2223 = vmatprep.subr.mxu0 %v1143
    %2224 = vmatpush1.msra.mxu0 %v1142
    %2225 = vmatprep.subr.mxu0 %v1159
    %2226 = vmatpush1.msra.mxu0 %v1158
    %2227 = vmatprep.subr.mxu0 %v1175
    %2228 = vmatpush1.msra.mxu0 %v1174
    %2229 = vmatprep.subr.mxu0 %v1191
    %2230 = vmatpush1.msra.mxu0 %v1190
    %2231 = vmatprep.subr.mxu0 %v1207
    %2232 = vmatpush1.msra.mxu0 %v1206
    %2233 = vmatprep.subr.mxu0 %v1223
    %2234 = vmatpush1.msra.mxu0 %v1222
    %2235 = vmatprep.mubr.f32.mxu0 %v1243
    %2236 = vmatmul.mubr.f32.gmra.mrb[0].mxu0 %v1241
    %v2237 = vpop.f32.mrb[0].mxu0
    %v2238 = vadd.f32 %v2167, %v2237
    %v2239 = vpop.f32.mrb[0].mxu0
    %v2240 = vadd.f32 %v2169, %v2239
    %2241 = vdwg.mxu0
    %2242 = vmatprep.subr.mxu0 %v217
    %2243 = vmatpush1.msra.mxu0 %v216
    %2244 = vmatprep.subr.mxu0 %v233
    %2245 = vmatpush1.msra.mxu0 %v232
    %2246 = vmatprep.subr.mxu0 %v249
    %2247 = vmatpush1.msra.mxu0 %v248
    %2248 = vmatprep.subr.mxu0 %v265
    %2249 = vmatpush1.msra.mxu0 %v264
    %2250 = vmatprep.subr.mxu0 %v281
    %2251 = vmatpush1.msra.mxu0 %v280
    %2252 = vmatprep.subr.mxu0 %v297
    %2253 = vmatpush1.msra.mxu0 %v296
    %2254 = vmatprep.subr.mxu0 %v313
    %2255 = vmatpush1.msra.mxu0 %v312
    %2256 = vmatprep.subr.mxu0 %v329
    %2257 = vmatpush1.msra.mxu0 %v328
    %2258 = vmatprep.subr.mxu0 %v345
    %2259 = vmatpush1.msra.mxu0 %v344
    %2260 = vmatprep.subr.mxu0 %v361
    %2261 = vmatpush1.msra.mxu0 %v360
    %2262 = vmatprep.subr.mxu0 %v377
    %2263 = vmatpush1.msra.mxu0 %v376
    %2264 = vmatprep.subr.mxu0 %v393
    %2265 = vmatpush1.msra.mxu0 %v392
    %2266 = vmatprep.subr.mxu0 %v409
    %2267 = vmatpush1.msra.mxu0 %v408
    %2268 = vmatprep.subr.mxu0 %v425
    %2269 = vmatpush1.msra.mxu0 %v424
    %2270 = vmatprep.subr.mxu0 %v441
    %2271 = vmatpush1.msra.mxu0 %v440
    %2272 = vmatprep.subr.mxu0 %v457
    %2273 = vmatpush1.msra.mxu0 %v456
    %2274 = vmatprep.subr.mxu0 %v473
    %2275 = vmatpush1.msra.mxu0 %v472
    %2276 = vmatprep.subr.mxu0 %v489
    %2277 = vmatpush1.msra.mxu0 %v488
    %2278 = vmatprep.subr.mxu0 %v505
    %2279 = vmatpush1.msra.mxu0 %v504
    %2280 = vmatprep.subr.mxu0 %v521
    %2281 = vmatpush1.msra.mxu0 %v520
    %2282 = vmatprep.subr.mxu0 %v537
    %2283 = vmatpush1.msra.mxu0 %v536
    %2284 = vmatprep.subr.mxu0 %v553
    %2285 = vmatpush1.msra.mxu0 %v552
    %2286 = vmatprep.subr.mxu0 %v569
    %2287 = vmatpush1.msra.mxu0 %v568
    %2288 = vmatprep.subr.mxu0 %v585
    %2289 = vmatpush1.msra.mxu0 %v584
    %2290 = vmatprep.subr.mxu0 %v601
    %2291 = vmatpush1.msra.mxu0 %v600
    %2292 = vmatprep.subr.mxu0 %v617
    %2293 = vmatpush1.msra.mxu0 %v616
    %2294 = vmatprep.subr.mxu0 %v633
    %2295 = vmatpush1.msra.mxu0 %v632
    %2296 = vmatprep.subr.mxu0 %v649
    %2297 = vmatpush1.msra.mxu0 %v648
    %2298 = vmatprep.subr.mxu0 %v665
    %2299 = vmatpush1.msra.mxu0 %v664
    %2300 = vmatprep.subr.mxu0 %v681
    %2301 = vmatpush1.msra.mxu0 %v680
    %2302 = vmatprep.subr.mxu0 %v697
    %2303 = vmatpush1.msra.mxu0 %v696
    %2304 = vmatprep.subr.mxu0 %v713
    %2305 = vmatpush1.msra.mxu0 %v712
    %2306 = vmatprep.mubr.f32.mxu0 %v1242
    %2307 = vmatmul.mubr.f32.gmra.mrb[0].mxu0 %v1234
    %v2308 = vpop.f32.mrb[0].mxu0
    %v2309 = vadd.f32 0.0, %v2308
    %v2310 = vpop.f32.mrb[0].mxu0
    %v2311 = vadd.f32 0.0, %v2310
    %2312 = vdwg.mxu0
    %2313 = vmatprep.subr.mxu0 %v729
    %2314 = vmatpush1.msra.mxu0 %v728
    %2315 = vmatprep.subr.mxu0 %v745
    %2316 = vmatpush1.msra.mxu0 %v744
    %2317 = vmatprep.subr.mxu0 %v761
    %2318 = vmatpush1.msra.mxu0 %v760
    %2319 = vmatprep.subr.mxu0 %v777
    %2320 = vmatpush1.msra.mxu0 %v776
    %2321 = vmatprep.subr.mxu0 %v793
    %2322 = vmatpush1.msra.mxu0 %v792
    %2323 = vmatprep.subr.mxu0 %v809
    %2324 = vmatpush1.msra.mxu0 %v808
    %2325 = vmatprep.subr.mxu0 %v825
    %2326 = vmatpush1.msra.mxu0 %v824
    %2327 = vmatprep.subr.mxu0 %v841
    %2328 = vmatpush1.msra.mxu0 %v840
    %2329 = vmatprep.subr.mxu0 %v857
    %2330 = vmatpush1.msra.mxu0 %v856
    %2331 = vmatprep.subr.mxu0 %v873
    %2332 = vmatpush1.msra.mxu0 %v872
    %2333 = vmatprep.subr.mxu0 %v889
    %2334 = vmatpush1.msra.mxu0 %v888
    %2335 = vmatprep.subr.mxu0 %v905
    %2336 = vmatpush1.msra.mxu0 %v904
    %2337 = vmatprep.subr.mxu0 %v921
    %2338 = vmatpush1.msra.mxu0 %v920
    %2339 = vmatprep.subr.mxu0 %v937
    %2340 = vmatpush1.msra.mxu0 %v936
    %2341 = vmatprep.subr.mxu0 %v953
    %2342 = vmatpush1.msra.mxu0 %v952
    %2343 = vmatprep.subr.mxu0 %v969
    %2344 = vmatpush1.msra.mxu0 %v968
    %2345 = vmatprep.subr.mxu0 %v985
    %2346 = vmatpush1.msra.mxu0 %v984
    %2347 = vmatprep.subr.mxu0 %v1001
    %2348 = vmatpush1.msra.mxu0 %v1000
    %2349 = vmatprep.subr.mxu0 %v1017
    %2350 = vmatpush1.msra.mxu0 %v1016
    %2351 = vmatprep.subr.mxu0 %v1033
    %2352 = vmatpush1.msra.mxu0 %v1032
    %2353 = vmatprep.subr.mxu0 %v1049
    %2354 = vmatpush1.msra.mxu0 %v1048
    %2355 = vmatprep.subr.mxu0 %v1065
    %2356 = vmatpush1.msra.mxu0 %v1064
    %2357 = vmatprep.subr.mxu0 %v1081
    %2358 = vmatpush1.msra.mxu0 %v1080
    %2359 = vmatprep.subr.mxu0 %v1097
    %2360 = vmatpush1.msra.mxu0 %v1096
    %2361 = vmatprep.subr.mxu0 %v1113
    %2362 = vmatpush1.msra.mxu0 %v1112
    %2363 = vmatprep.subr.mxu0 %v1129
    %2364 = vmatpush1.msra.mxu0 %v1128
    %2365 = vmatprep.subr.mxu0 %v1145
    %2366 = vmatpush1.msra.mxu0 %v1144
    %2367 = vmatprep.subr.mxu0 %v1161
    %2368 = vmatpush1.msra.mxu0 %v1160
    %2369 = vmatprep.subr.mxu0 %v1177
    %2370 = vmatpush1.msra.mxu0 %v1176
    %2371 = vmatprep.subr.mxu0 %v1193
    %2372 = vmatpush1.msra.mxu0 %v1192
    %2373 = vmatprep.subr.mxu0 %v1209
    %2374 = vmatpush1.msra.mxu0 %v1208
    %2375 = vmatprep.subr.mxu0 %v1225
    %2376 = vmatpush1.msra.mxu0 %v1224
    %2377 = vmatprep.mubr.f32.mxu0 %v1243
    %2378 = vmatmul.mubr.f32.gmra.mrb[0].mxu0 %v1241
    %v2379 = vpop.f32.mrb[0].mxu0
    %v2380 = vadd.f32 %v2309, %v2379
    %v2381 = vpop.f32.mrb[0].mxu0
    %v2382 = vadd.f32 %v2311, %v2381
    %2383 = vdwg.mxu0
    %vm2384 = vcmask 1041408
    %v2385 = vsel %vm2384, %v1386, 0.0
    %v2386 = vsel %vm2384, %v1388, 0.0
    %v2387 = vadd.f32 %v2385, %v2386
    %v2388 = vsel %vm2384, %v1528, 0.0
    %v2389 = vadd.f32 %v2387, %v2388
    %v2390 = vsel %vm2384, %v1530, 0.0
    %v2391 = vadd.f32 %v2389, %v2390
    %v2392 = vsel %vm2384, %v1670, 0.0
    %v2393 = vadd.f32 %v2391, %v2392
    %v2394 = vsel %vm2384, %v1672, 0.0
    %v2395 = vadd.f32 %v2393, %v2394
    %v2396 = vsel %vm2384, %v1812, 0.0
    %v2397 = vadd.f32 %v2395, %v2396
    %v2398 = vsel %vm2384, %v1814, 0.0
    %v2399 = vadd.f32 %v2397, %v2398
    %v2400 = vsel %vm2384, %v1954, 0.0
    %v2401 = vadd.f32 %v2399, %v2400
    %v2402 = vsel %vm2384, %v1956, 0.0
    %v2403 = vadd.f32 %v2401, %v2402
    %v2404 = vsel %vm2384, %v2096, 0.0
    %v2405 = vadd.f32 %v2403, %v2404
    %v2406 = vsel %vm2384, %v2098, 0.0
    %v2407 = vadd.f32 %v2405, %v2406
    %v2408 = vsel %vm2384, %v2238, 0.0
    %v2409 = vadd.f32 %v2407, %v2408
    %v2410 = vsel %vm2384, %v2240, 0.0
    %v2411 = vadd.f32 %v2409, %v2410
    %v2412 = vsel %vm2384, %v2380, 0.0
    %v2413 = vadd.f32 %v2411, %v2412
    %v2414 = vsel %vm2384, %v2382, 0.0
    %v2415 = vadd.f32 %v2413, %v2414
    %2416 = vadd.xlane.f32.xlu0 %v2415
    %v2417 = vpop.xlane.xlu0 %2416
    %v2418 = vmul.f32 %v2417, 0.00048828125
    %v2419 = vmul.f32 %v1386, %v1386
    %v2420 = vmul.f32 %v1388, %v1388
    %v2421 = vmul.f32 %v1528, %v1528
    %v2422 = vmul.f32 %v1530, %v1530
    %v2423 = vmul.f32 %v1670, %v1670
    %v2424 = vmul.f32 %v1672, %v1672
    %v2425 = vmul.f32 %v1812, %v1812
    %v2426 = vmul.f32 %v1814, %v1814
    %v2427 = vmul.f32 %v1954, %v1954
    %v2428 = vmul.f32 %v1956, %v1956
    %v2429 = vmul.f32 %v2096, %v2096
    %v2430 = vmul.f32 %v2098, %v2098
    %v2431 = vmul.f32 %v2238, %v2238
    %v2432 = vmul.f32 %v2240, %v2240
    %v2433 = vmul.f32 %v2380, %v2380
    %v2434 = vmul.f32 %v2382, %v2382
    %v2435 = vsel %vm2384, %v2419, 0.0
    %v2436 = vsel %vm2384, %v2420, 0.0
    %v2437 = vadd.f32 %v2435, %v2436
    %v2438 = vsel %vm2384, %v2421, 0.0
    %v2439 = vadd.f32 %v2437, %v2438
    %v2440 = vsel %vm2384, %v2422, 0.0
    %v2441 = vadd.f32 %v2439, %v2440
    %v2442 = vsel %vm2384, %v2423, 0.0
    %v2443 = vadd.f32 %v2441, %v2442
    %v2444 = vsel %vm2384, %v2424, 0.0
    %v2445 = vadd.f32 %v2443, %v2444
    %v2446 = vsel %vm2384, %v2425, 0.0
    %v2447 = vadd.f32 %v2445, %v2446
    %v2448 = vsel %vm2384, %v2426, 0.0
    %v2449 = vadd.f32 %v2447, %v2448
    %v2450 = vsel %vm2384, %v2427, 0.0
    %v2451 = vadd.f32 %v2449, %v2450
    %v2452 = vsel %vm2384, %v2428, 0.0
    %v2453 = vadd.f32 %v2451, %v2452
    %v2454 = vsel %vm2384, %v2429, 0.0
    %v2455 = vadd.f32 %v2453, %v2454
    %v2456 = vsel %vm2384, %v2430, 0.0
    %v2457 = vadd.f32 %v2455, %v2456
    %v2458 = vsel %vm2384, %v2431, 0.0
    %v2459 = vadd.f32 %v2457, %v2458
    %v2460 = vsel %vm2384, %v2432, 0.0
    %v2461 = vadd.f32 %v2459, %v2460
    %v2462 = vsel %vm2384, %v2433, 0.0
    %v2463 = vadd.f32 %v2461, %v2462
    %v2464 = vsel %vm2384, %v2434, 0.0
    %v2465 = vadd.f32 %v2463, %v2464
    %2466 = vadd.xlane.f32.xlu0 %v2465
    %v2467 = vpop.xlane.xlu0 %2466
    %v2468 = vmul.f32 %v2467, 0.00048828125
    %v2469 = vmul.f32 %v2418, %v2418
    %v2470 = vsub.f32 %v2468, %v2469
    %v2471 = vld [vmem:[#allocation8] sm:$0xff]
    %v2472 = vld [vmem:[#allocation8 + $0x8] sm:$0xff]
    %v2473 = vadd.f32 %v2470, 1e-05
    %v2474 = vrsqrt.pop %v2473
    %v2477 = vlaneseq
    %v2478 = vshrl.u32 %v2477, 7
    %v2479 = vsub.s32 0, %v2478
    %v2480 = vrot.slane %v2471, %v2479
    %v2481 = vlaneseq
    %v2482 = vshrl.u32 %v2481, 7
    %v2483 = vsub.s32 1, %v2482
    %v2484 = vrot.slane %v2471, %v2483
    %v2485 = vlaneseq
    %v2486 = vshrl.u32 %v2485, 7
    %v2487 = vsub.s32 2, %v2486
    %v2488 = vrot.slane %v2471, %v2487
    %v2489 = vlaneseq
    %v2490 = vshrl.u32 %v2489, 7
    %v2491 = vsub.s32 3, %v2490
    %v2492 = vrot.slane %v2471, %v2491
    %v2493 = vlaneseq
    %v2494 = vshrl.u32 %v2493, 7
    %v2495 = vsub.s32 4, %v2494
    %v2496 = vrot.slane %v2471, %v2495
    %v2497 = vlaneseq
    %v2498 = vshrl.u32 %v2497, 7
    %v2499 = vsub.s32 5, %v2498
    %v2500 = vrot.slane %v2471, %v2499
    %v2501 = vlaneseq
    %v2502 = vshrl.u32 %v2501, 7
    %v2503 = vsub.s32 6, %v2502
    %v2504 = vrot.slane %v2471, %v2503
    %v2505 = vlaneseq
    %v2506 = vshrl.u32 %v2505, 7
    %v2507 = vsub.s32 7, %v2506
    %v2508 = vrot.slane %v2471, %v2507
    %v2509 = vlaneseq
    %v2510 = vshrl.u32 %v2509, 7
    %v2511 = vsub.s32 0, %v2510
    %v2512 = vrot.slane %v2472, %v2511
    %v2513 = vlaneseq
    %v2514 = vshrl.u32 %v2513, 7
    %v2515 = vsub.s32 1, %v2514
    %v2516 = vrot.slane %v2472, %v2515
    %v2517 = vlaneseq
    %v2518 = vshrl.u32 %v2517, 7
    %v2519 = vsub.s32 2, %v2518
    %v2520 = vrot.slane %v2472, %v2519
    %v2521 = vlaneseq
    %v2522 = vshrl.u32 %v2521, 7
    %v2523 = vsub.s32 3, %v2522
    %v2524 = vrot.slane %v2472, %v2523
    %v2525 = vlaneseq
    %v2526 = vshrl.u32 %v2525, 7
    %v2527 = vsub.s32 4, %v2526
    %v2528 = vrot.slane %v2472, %v2527
    %v2529 = vlaneseq
    %v2530 = vshrl.u32 %v2529, 7
    %v2531 = vsub.s32 5, %v2530
    %v2532 = vrot.slane %v2472, %v2531
    %v2533 = vlaneseq
    %v2534 = vshrl.u32 %v2533, 7
    %v2535 = vsub.s32 6, %v2534
    %v2536 = vrot.slane %v2472, %v2535
    %v2537 = vlaneseq
    %v2538 = vshrl.u32 %v2537, 7
    %v2539 = vsub.s32 7, %v2538
    %v2540 = vrot.slane %v2472, %v2539
    %v2557 = vmul.f32 %v2480, %v2474
    %v2558 = vmul.f32 %v2484, %v2474
    %v2559 = vmul.f32 %v2488, %v2474
    %v2560 = vmul.f32 %v2492, %v2474
    %v2561 = vmul.f32 %v2496, %v2474
    %v2562 = vmul.f32 %v2500, %v2474
    %v2563 = vmul.f32 %v2504, %v2474
    %v2564 = vmul.f32 %v2508, %v2474
    %v2565 = vmul.f32 %v2512, %v2474
    %v2566 = vmul.f32 %v2516, %v2474
    %v2567 = vmul.f32 %v2520, %v2474
    %v2568 = vmul.f32 %v2524, %v2474
    %v2569 = vmul.f32 %v2528, %v2474
    %v2570 = vmul.f32 %v2532, %v2474
    %v2571 = vmul.f32 %v2536, %v2474
    %v2572 = vmul.f32 %v2540, %v2474
    %v2573 = vmul.f32 %v1386, %v2557
    %v2574 = vmul.f32 %v1388, %v2558
    %v2575 = vmul.f32 %v1528, %v2559
    %v2576 = vmul.f32 %v1530, %v2560
    %v2577 = vmul.f32 %v1670, %v2561
    %v2578 = vmul.f32 %v1672, %v2562
    %v2579 = vmul.f32 %v1812, %v2563
    %v2580 = vmul.f32 %v1814, %v2564
    %v2581 = vmul.f32 %v1954, %v2565
    %v2582 = vmul.f32 %v1956, %v2566
    %v2583 = vmul.f32 %v2096, %v2567
    %v2584 = vmul.f32 %v2098, %v2568
    %v2585 = vmul.f32 %v2238, %v2569
    %v2586 = vmul.f32 %v2240, %v2570
    %v2587 = vmul.f32 %v2380, %v2571
    %v2588 = vmul.f32 %v2382, %v2572
    %v2589 = vld [vmem:[#allocation10] sm:$0xff]
    %v2590 = vld [vmem:[#allocation10 + $0x8] sm:$0xff]
    %v2591 = vmul.f32 %v2418, %v2557
    %v2592 = vmul.f32 %v2418, %v2558
    %v2593 = vmul.f32 %v2418, %v2559
    %v2594 = vmul.f32 %v2418, %v2560
    %v2595 = vmul.f32 %v2418, %v2561
    %v2596 = vmul.f32 %v2418, %v2562
    %v2597 = vmul.f32 %v2418, %v2563
    %v2598 = vmul.f32 %v2418, %v2564
    %v2599 = vmul.f32 %v2418, %v2565
    %v2600 = vmul.f32 %v2418, %v2566
    %v2601 = vmul.f32 %v2418, %v2567
    %v2602 = vmul.f32 %v2418, %v2568
    %v2603 = vmul.f32 %v2418, %v2569
    %v2604 = vmul.f32 %v2418, %v2570
    %v2605 = vmul.f32 %v2418, %v2571
    %v2606 = vmul.f32 %v2418, %v2572
    %v2609 = vlaneseq
    %v2610 = vshrl.u32 %v2609, 7
    %v2611 = vsub.s32 0, %v2610
    %v2612 = vrot.slane %v2589, %v2611
    %v2613 = vlaneseq
    %v2614 = vshrl.u32 %v2613, 7
    %v2615 = vsub.s32 1, %v2614
    %v2616 = vrot.slane %v2589, %v2615
    %v2617 = vlaneseq
    %v2618 = vshrl.u32 %v2617, 7
    %v2619 = vsub.s32 2, %v2618
    %v2620 = vrot.slane %v2589, %v2619
    %v2621 = vlaneseq
    %v2622 = vshrl.u32 %v2621, 7
    %v2623 = vsub.s32 3, %v2622
    %v2624 = vrot.slane %v2589, %v2623
    %v2625 = vlaneseq
    %v2626 = vshrl.u32 %v2625, 7
    %v2627 = vsub.s32 4, %v2626
    %v2628 = vrot.slane %v2589, %v2627
    %v2629 = vlaneseq
    %v2630 = vshrl.u32 %v2629, 7
    %v2631 = vsub.s32 5, %v2630
    %v2632 = vrot.slane %v2589, %v2631
    %v2633 = vlaneseq
    %v2634 = vshrl.u32 %v2633, 7
    %v2635 = vsub.s32 6, %v2634
    %v2636 = vrot.slane %v2589, %v2635
    %v2637 = vlaneseq
    %v2638 = vshrl.u32 %v2637, 7
    %v2639 = vsub.s32 7, %v2638
    %v2640 = vrot.slane %v2589, %v2639
    %v2641 = vlaneseq
    %v2642 = vshrl.u32 %v2641, 7
    %v2643 = vsub.s32 0, %v2642
    %v2644 = vrot.slane %v2590, %v2643
    %v2645 = vlaneseq
    %v2646 = vshrl.u32 %v2645, 7
    %v2647 = vsub.s32 1, %v2646
    %v2648 = vrot.slane %v2590, %v2647
    %v2649 = vlaneseq
    %v2650 = vshrl.u32 %v2649, 7
    %v2651 = vsub.s32 2, %v2650
    %v2652 = vrot.slane %v2590, %v2651
    %v2653 = vlaneseq
    %v2654 = vshrl.u32 %v2653, 7
    %v2655 = vsub.s32 3, %v2654
    %v2656 = vrot.slane %v2590, %v2655
    %v2657 = vlaneseq
    %v2658 = vshrl.u32 %v2657, 7
    %v2659 = vsub.s32 4, %v2658
    %v2660 = vrot.slane %v2590, %v2659
    %v2661 = vlaneseq
    %v2662 = vshrl.u32 %v2661, 7
    %v2663 = vsub.s32 5, %v2662
    %v2664 = vrot.slane %v2590, %v2663
    %v2665 = vlaneseq
    %v2666 = vshrl.u32 %v2665, 7
    %v2667 = vsub.s32 6, %v2666
    %v2668 = vrot.slane %v2590, %v2667
    %v2669 = vlaneseq
    %v2670 = vshrl.u32 %v2669, 7
    %v2671 = vsub.s32 7, %v2670
    %v2672 = vrot.slane %v2590, %v2671
    %v2689 = vsub.f32 %v2612, %v2591
    %v2690 = vsub.f32 %v2616, %v2592
    %v2691 = vsub.f32 %v2620, %v2593
    %v2692 = vsub.f32 %v2624, %v2594
    %v2693 = vsub.f32 %v2628, %v2595
    %v2694 = vsub.f32 %v2632, %v2596
    %v2695 = vsub.f32 %v2636, %v2597
    %v2696 = vsub.f32 %v2640, %v2598
    %v2697 = vsub.f32 %v2644, %v2599
    %v2698 = vsub.f32 %v2648, %v2600
    %v2699 = vsub.f32 %v2652, %v2601
    %v2700 = vsub.f32 %v2656, %v2602
    %v2701 = vsub.f32 %v2660, %v2603
    %v2702 = vsub.f32 %v2664, %v2604
    %v2703 = vsub.f32 %v2668, %v2605
    %v2704 = vsub.f32 %v2672, %v2606
    %v2705 = vadd.f32 %v2573, %v2689
    %v2706 = vadd.f32 %v2574, %v2690
    %v2707 = vadd.f32 %v2575, %v2691
    %v2708 = vadd.f32 %v2576, %v2692
    %v2709 = vadd.f32 %v2577, %v2693
    %v2710 = vadd.f32 %v2578, %v2694
    %v2711 = vadd.f32 %v2579, %v2695
    %v2712 = vadd.f32 %v2580, %v2696
    %v2713 = vadd.f32 %v2581, %v2697
    %v2714 = vadd.f32 %v2582, %v2698
    %v2715 = vadd.f32 %v2583, %v2699
    %v2716 = vadd.f32 %v2584, %v2700
    %v2717 = vadd.f32 %v2585, %v2701
    %v2718 = vadd.f32 %v2586, %v2702
    %v2719 = vadd.f32 %v2587, %v2703
    %v2720 = vadd.f32 %v2588, %v2704
    %v2737 = vcombine.low %v2705, %v2706
    %v2738 = vcombine.low %v2707, %v2708
    %v2740 = vunpack.c.l.s4 1983009808
    %v2741 = vunpack.c.0.s8 %v2740
    %v2742 = vlaneseq
    %v2743 = vshrl.u32 %v2742, 7
    %v2744 = vsub.s32 %v2741, %v2743
    %v2745 = vrot.slane %v2737, %v2744
    %v2747 = vunpack.c.l.s4 1983009808
    %v2748 = vunpack.c.0.s8 %v2747
    %v2749 = vlaneseq
    %v2750 = vshrl.u32 %v2749, 7
    %v2751 = vsub.s32 %v2748, %v2750
    %v2752 = vrot.slane %v2738, %v2751
    %v2753 = vcombine.low %v2745, %v2752
    %v2754 = vcombine.low %v2709, %v2710
    %v2755 = vcombine.low %v2711, %v2712
    %v2757 = vunpack.c.l.s4 1983009808
    %v2758 = vunpack.c.0.s8 %v2757
    %v2759 = vlaneseq
    %v2760 = vshrl.u32 %v2759, 7
    %v2761 = vsub.s32 %v2758, %v2760
    %v2762 = vrot.slane %v2754, %v2761
    %v2764 = vunpack.c.l.s4 1983009808
    %v2765 = vunpack.c.0.s8 %v2764
    %v2766 = vlaneseq
    %v2767 = vshrl.u32 %v2766, 7
    %v2768 = vsub.s32 %v2765, %v2767
    %v2769 = vrot.slane %v2755, %v2768
    %v2770 = vcombine.low %v2762, %v2769
    %v2771 = vcombine.low %v2713, %v2714
    %v2772 = vcombine.low %v2715, %v2716
    %v2774 = vunpack.c.l.s4 1983009808
    %v2775 = vunpack.c.0.s8 %v2774
    %v2776 = vlaneseq
    %v2777 = vshrl.u32 %v2776, 7
    %v2778 = vsub.s32 %v2775, %v2777
    %v2779 = vrot.slane %v2771, %v2778
    %v2781 = vunpack.c.l.s4 1983009808
    %v2782 = vunpack.c.0.s8 %v2781
    %v2783 = vlaneseq
    %v2784 = vshrl.u32 %v2783, 7
    %v2785 = vsub.s32 %v2782, %v2784
    %v2786 = vrot.slane %v2772, %v2785
    %v2787 = vcombine.low %v2779, %v2786
    %v2788 = vcombine.low %v2717, %v2718
    %v2789 = vcombine.low %v2719, %v2720
    %v2791 = vunpack.c.l.s4 1983009808
    %v2792 = vunpack.c.0.s8 %v2791
    %v2793 = vlaneseq
    %v2794 = vshrl.u32 %v2793, 7
    %v2795 = vsub.s32 %v2792, %v2794
    %v2796 = vrot.slane %v2788, %v2795
    %v2798 = vunpack.c.l.s4 1983009808
    %v2799 = vunpack.c.0.s8 %v2798
    %v2800 = vlaneseq
    %v2801 = vshrl.u32 %v2800, 7
    %v2802 = vsub.s32 %v2799, %v2801
    %v2803 = vrot.slane %v2789, %v2802
    %v2804 = vcombine.low %v2796, %v2803
    %2809 = vst [vmem:[#allocation11] sm:$0xff] %v2753
    %2810 = vst [vmem:[#allocation11 + $0x8] sm:$0xff] %v2770
    %2811 = vst [vmem:[#allocation11 + $0x10] sm:$0xff] %v2787
    %2812 = vst [vmem:[#allocation11 + $0x18] sm:$0xff] %v2804
    // Predicated region
    $region42: #{tpu_custom_call.1} parent=1 // pred_check
      _
    $region43: #{tpu_custom_call.1} parent=1 // pred_check_branch
      %2814 = sbr.rel (0) target = $region45
    $region44: #{tpu_custom_call.1} parent=1 // pred_region
      %s2816 = ssub.s32 512, 512
      %2817 = vsyncadd [#allocation4], %s2816
      %s2819 = sshll.u32 [#allocation11], 4
      %s2820 = int_to_ptr.vmem [resolvable:$true] %s2819
      %2822 = dma.vmem_to_hbm [thread:$0]  %s2820, 512, %s5, [#allocation4]
    $region45: #{tpu_custom_call.1} parent=1 // pred_fallthru
      _
    // Predicated region
    $region46: #{tpu_custom_call.1} parent=1 // pred_check
      _
    $region47: #{tpu_custom_call.1} parent=1 // pred_check_branch
      %2824 = sbr.rel (0) target = $region49
    $region48: #{tpu_custom_call.1} parent=1 // pred_region
      %2825 = dma.done [#allocation4], 512
    $region49: #{tpu_custom_call.1} parent=1 // pred_fallthru
      _
    %2826 = vsyncpa [#allocation3], 1
    %2827 = vsyncpa [#allocation6], 1
    %2828 = vsyncpa [#allocation9], 1
    %2829 = vsyncpa [#allocation4], 1

</llo_original>
